<compile_context>
chip_gen: v7x
topology: tpu7x:2x2x1
jax: 0.10.0
libtpu: 0.0.40
codegen_flags: <defaults>
</compile_context>

<pallas_src>
import functools

import numpy as np
import jax
import jax.numpy as jnp
from jax import lax
from jax.experimental import pallas as pl
from jax.experimental.pallas import tpu as pltpu

# ----------------------------- hyperparameters -----------------------------
NUM_USERS = 12
NUM_ITEMS = 20
NUM_GROUPS = 6
EMB_DIM = 32
INPUT_DIM = 32            # GRU input dim == embedding dim
HIDDEN_SIZE = 32          # num_layers*hidden_size must equal EMB_DIM (usr_forward semantics)
NUM_LAYERS = 1
GCN_LAYERS = 2
MEMBERS_PER_GROUP = 3
EVENTS_PER_USER = 8
DROP_RATIO = 0.0          # dropout inactive (eval semantics)
TEMPERATURE = 0.5         # only used by Contrastive_learning1/2/3 (not in forward path)
LAMBDA1 = 0.1             # only used by Contrastive_learning1/2/3 (not in forward path)

N_NODES = NUM_USERS + NUM_ITEMS


# =============================== Pallas kernels ===============================

def _user_fused_kernel(graph_ref, all_emb_ref, event_emb_ref,
                       uid_ref, iid_ref, ev_ref,
                       wih_r_ref, wih_z_ref, wih_n_ref,
                       whh_r_ref, whh_z_ref, whh_n_ref,
                       b_r_ref, b_z_ref, b_ni_ref, b_nh_ref,
                       pw1t_ref, pb1_ref, pw2t_ref, pb2_ref,
                       out_ref, *, n_gcn_layers):
    """Fused user path: LightGCN + in-kernel one-hot gathers + GRU + distance
    correlation + 3x PredictLayer + sigmoid.

    out_ref is (B, 2): column 0 = sigmoid((p1+p2+p3)/3), column 1 = the
    distance-correlation contrastive loss (broadcast).
    """
    N = graph_ref.shape[0]
    E = all_emb_ref.shape[1]
    H = whh_r_ref.shape[0]
    B = uid_ref.shape[0]
    LB = ev_ref.shape[0]
    L = LB // B
    n_items = event_emb_ref.shape[0]

    # ---------------- LightGCN propagation + layer mean ----------------
    graph = graph_ref[...]                      # (N, N) dense normalized adjacency
    all_emb = all_emb_ref[...]                  # (N, E)
    e = all_emb
    acc = e
    for _ in range(n_gcn_layers):
        e = jnp.dot(graph, e, preferred_element_type=jnp.float32)
        acc = acc + e
    gcn_all = acc * (1.0 / float(n_gcn_layers + 1))       # (N, E)

    # ---------------- row gathers via in-kernel one-hot matmuls ----------------
    lane_n = lax.broadcasted_iota(jnp.int32, (B, N), 1)
    sel_u = jnp.where(lane_n == uid_ref[...], 1.0, 0.0)    # (B, N) user rows
    sel_i = jnp.where(lane_n == iid_ref[...], 1.0, 0.0)    # (B, N) item rows (pre-offset)
    gcn_user = jnp.dot(sel_u, gcn_all, preferred_element_type=jnp.float32)      # (B, E)
    user_pure = jnp.dot(sel_u, all_emb, preferred_element_type=jnp.float32)     # (B, E)
    # gcn_item_emb + item_embeds_pure in one matmul
    item_embeds = jnp.dot(sel_i, gcn_all + all_emb,
                          preferred_element_type=jnp.float32)                   # (B, E)

    # event embedding gather, time-major flat (L*B, E)
    lane_e = lax.broadcasted_iota(jnp.int32, (LB, n_items), 1)
    sel_ev = jnp.where(lane_e == ev_ref[...], 1.0, 0.0)                          # (L*B, n_items)
    x_flat = jnp.dot(sel_ev, event_emb_ref[...], preferred_element_type=jnp.float32)

    # ---------------- GRU: hoisted input matmuls, per-gate weights ----------------
    gi_r = jnp.dot(x_flat, wih_r_ref[...], preferred_element_type=jnp.float32) + b_r_ref[...]
    gi_z = jnp.dot(x_flat, wih_z_ref[...], preferred_element_type=jnp.float32) + b_z_ref[...]
    gi_n = jnp.dot(x_flat, wih_n_ref[...], preferred_element_type=jnp.float32) + b_ni_ref[...]

    whh_r = whh_r_ref[...]
    whh_z = whh_z_ref[...]
    whh_n = whh_n_ref[...]
    b_nh = b_nh_ref[...]

    h = jnp.zeros((B, H), jnp.float32)
    for t in range(L):                          # static unroll (L = 8)
        lo = t * B                              # sublane-aligned static slice
        r = jax.nn.sigmoid(gi_r[lo:lo + B]
                           + jnp.dot(h, whh_r, preferred_element_type=jnp.float32))
        z = jax.nn.sigmoid(gi_z[lo:lo + B]
                           + jnp.dot(h, whh_z, preferred_element_type=jnp.float32))
        n = jnp.tanh(gi_n[lo:lo + B]
                     + r * (jnp.dot(h, whh_n, preferred_element_type=jnp.float32) + b_nh))
        h = (1.0 - z) * n + z * h
    gru_user = h                                # (B, H) final hidden state

    # ---------------- distance correlation (faithful to the torch source) ----------------
    # NOTE: reproduces the original's 'r - 2*X@(X.T + r.T)' expression verbatim.
    def centered(X):
        r = jnp.sum(X * X, axis=1, keepdims=True)                               # (n, 1)
        value = r - 2.0 * jnp.dot(X, X.T + r.T, preferred_element_type=jnp.float32)
        value = jnp.where(value > 0.0, value, 0.0)
        D = jnp.sqrt(value + 1e-8)
        D = (D - jnp.mean(D, axis=0, keepdims=True)
               - jnp.mean(D, axis=1, keepdims=True)
               + jnp.mean(D))
        return D

    def dcov(D1, D2):
        n = float(D1.shape[0])
        v = jnp.sum(D1 * D2) / (n * n)
        v = jnp.where(v > 0.0, v, 0.0)
        return jnp.sqrt(v + 1e-8)

    D1 = centered(gcn_user)
    D2 = centered(gru_user)
    d12 = dcov(D1, D2)
    d11 = dcov(D1, D1)
    d22 = dcov(D2, D2)
    vv = d11 * d22
    vv = jnp.where(vv > 0.0, vv, 0.0)
    con = d12 / (jnp.sqrt(vv) + 1e-10)          # scalar

    # ---------------- PredictLayer on stacked operands: (3B, E) ----------------
    x_all = jnp.concatenate([gcn_user * item_embeds,
                             gru_user * item_embeds,
                             user_pure * item_embeds], axis=0)                   # (3B, E)
    hh = jnp.maximum(jnp.dot(x_all, pw1t_ref[...],
                             preferred_element_type=jnp.float32) + pb1_ref[...], 0.0)
    p_all = jnp.dot(hh, pw2t_ref[...], preferred_element_type=jnp.float32) + pb2_ref[...]
    p = (p_all[0:B] + p_all[B:2 * B] + p_all[2 * B:3 * B]) / 3.0                 # (B, 1)
    y = jax.nn.sigmoid(p)

    # pack y (col 0) and con_loss (col 1) into one full-tile store
    col = lax.broadcasted_iota(jnp.int32, (B, 2), 1)
    out_ref[...] = jnp.where(col == 0, y, con)


def _group_fused_kernel(user_emb_ref, item_emb_ref, group_emb_ref,
                        mid_ref, iid_gm_ref, gid_ref, iid_g_ref,
                        aw1u_ref, aw1i_ref, ab1_ref, aw2t_ref, ab2_ref,
                        pw1t_ref, pb1_ref, pw2t_ref, pb2_ref, y_ref):
    """Fused group path: in-kernel one-hot gathers, attention MLP over all
    (group, member) rows at once, per-group softmax via a one-hot membership
    matrix built from iota, weighted member aggregation, PredictLayer, sigmoid."""
    n_users = user_emb_ref.shape[0]
    n_items = item_emb_ref.shape[0]
    n_groups = group_emb_ref.shape[0]
    GM = mid_ref.shape[0]
    G = gid_ref.shape[0]
    M = GM // G

    # ---- one-hot gathers (all stay in VMEM) ----
    lane_u = lax.broadcasted_iota(jnp.int32, (GM, n_users), 1)
    sel_m = jnp.where(lane_u == mid_ref[...], 1.0, 0.0)                          # (GM, U)
    u = jnp.dot(sel_m, user_emb_ref[...], preferred_element_type=jnp.float32)    # (GM, E)

    lane_i_gm = lax.broadcasted_iota(jnp.int32, (GM, n_items), 1)
    sel_it = jnp.where(lane_i_gm == iid_gm_ref[...], 1.0, 0.0)                   # (GM, I)
    it = jnp.dot(sel_it, item_emb_ref[...], preferred_element_type=jnp.float32)  # (GM, E)

    lane_g = lax.broadcasted_iota(jnp.int32, (G, n_groups), 1)
    sel_g = jnp.where(lane_g == gid_ref[...], 1.0, 0.0)                          # (G, NG)
    grp_pure = jnp.dot(sel_g, group_emb_ref[...], preferred_element_type=jnp.float32)

    lane_i_g = lax.broadcasted_iota(jnp.int32, (G, n_items), 1)
    sel_ig = jnp.where(lane_i_g == iid_g_ref[...], 1.0, 0.0)                     # (G, I)
    item_grp = jnp.dot(sel_ig, item_emb_ref[...], preferred_element_type=jnp.float32)

    # membership matrix (G, GM): column j belongs to group j // M
    row = lax.broadcasted_iota(jnp.int32, (G, GM), 0)
    col = lax.broadcasted_iota(jnp.int32, (G, GM), 1)
    mmat = jnp.where((col >= row * M) & (col < (row + 1) * M), 1.0, 0.0)

    # attention MLP [member ; item] -> 16 -> 1 with pre-split/pre-transposed W1
    h = (jnp.dot(u, aw1u_ref[...], preferred_element_type=jnp.float32)
         + jnp.dot(it, aw1i_ref[...], preferred_element_type=jnp.float32)
         + ab1_ref[...])
    h = jnp.maximum(h, 0.0)                                                      # (GM, 16)
    s = jnp.dot(h, aw2t_ref[...], preferred_element_type=jnp.float32) + ab2_ref[...]  # (GM, 1)

    # per-group softmax over members: a global max shift preserves each group's softmax
    e = jnp.exp(s - jnp.max(s))                                                  # (GM, 1)
    num = jnp.dot(mmat, e * u, preferred_element_type=jnp.float32)               # (G, E)
    denom = jnp.dot(mmat, e, preferred_element_type=jnp.float32)                 # (G, 1)
    g_att = num / denom                                                          # (G, E)

    g_emb = g_att + grp_pure                                                     # + group embeds

    # PredictLayer(g_emb * item_emb) -> sigmoid
    x = g_emb * item_grp
    h2 = jnp.maximum(jnp.dot(x, pw1t_ref[...],
                             preferred_element_type=jnp.float32) + pb1_ref[...], 0.0)
    p = jnp.dot(h2, pw2t_ref[...], preferred_element_type=jnp.float32) + pb2_ref[...]
    y_ref[...] = jax.nn.sigmoid(p)


# =============================== forward wrappers ===============================

@jax.jit
def usr_forward(params, graph, user_inputs, item_inputs, ev_idx):
    """User branch. ev_idx is a (B, L) device int32 array of per-user event ids
    (built once outside this jitted function)."""
    B = user_inputs.shape[0]
    L = ev_idx.shape[1]
    E = EMB_DIM
    H = HIDDEN_SIZE
    N = N_NODES

    uid = user_inputs.astype(jnp.int32).reshape(B, 1)
    iid = (item_inputs.astype(jnp.int32) + NUM_USERS).reshape(B, 1)   # offset into all_emb rows
    ev_flat = jnp.transpose(ev_idx.astype(jnp.int32)).reshape(L * B, 1)  # time-major

    full = lambda i: (0, 0)
    out = pl.pallas_call(
        functools.partial(_user_fused_kernel, n_gcn_layers=GCN_LAYERS),
        out_shape=jax.ShapeDtypeStruct((B, 2), jnp.float32),
        grid=(1,),
        in_specs=[
            pl.BlockSpec((N, N), full),            # graph
            pl.BlockSpec((N, E), full),            # all_emb (user||item), precomputed
            pl.BlockSpec((NUM_ITEMS, E), full),    # event embedding table
            pl.BlockSpec((B, 1), full),            # user ids
            pl.BlockSpec((B, 1), full),            # item ids (offset)
            pl.BlockSpec((L * B, 1), full),        # event ids, time-major
            pl.BlockSpec((E, H), full),            # gru_wih_r_t
            pl.BlockSpec((E, H), full),            # gru_wih_z_t
            pl.BlockSpec((E, H), full),            # gru_wih_n_t
            pl.BlockSpec((H, H), full),            # gru_whh_r_t
            pl.BlockSpec((H, H), full),            # gru_whh_z_t
            pl.BlockSpec((H, H), full),            # gru_whh_n_t
            pl.BlockSpec((1, H), full),            # b_r  (bih_r + bhh_r)
            pl.BlockSpec((1, H), full),            # b_z  (bih_z + bhh_z)
            pl.BlockSpec((1, H), full),            # b_ni (bih_n)
            pl.BlockSpec((1, H), full),            # b_nh (bhh_n)
            pl.BlockSpec((E, 8), full),            # pred_w1_t
            pl.BlockSpec((1, 8), full),            # pred_b1
            pl.BlockSpec((8, 1), full),            # pred_w2_t
            pl.BlockSpec((1, 1), full),            # pred_b2
        ],
        out_specs=pl.BlockSpec((B, 2), full),
    )(graph, params['all_emb'], params['event_emb'], uid, iid, ev_flat,
      params['gru_wih_r_t'], params['gru_wih_z_t'], params['gru_wih_n_t'],
      params['gru_whh_r_t'], params['gru_whh_z_t'], params['gru_whh_n_t'],
      params['gru_b_r'], params['gru_b_z'], params['gru_b_ni'], params['gru_b_nh'],
      params['pred_w1_t'], params['pred_b1'], params['pred_w2_t'], params['pred_b2'])

    y = out[:, 0:1]          # (B, 1)
    con_loss = out[0, 1]     # scalar
    return y, con_loss


@jax.jit
def grp_forward(params, members, group_inputs, item_inputs):
    """Group branch. members is a (G, M) device int32 array of member user ids
    (built once outside this jitted function)."""
    G, M = members.shape
    GM = G * M
    E = EMB_DIM

    mid = members.astype(jnp.int32).reshape(GM, 1)
    iid_gm = jnp.repeat(item_inputs.astype(jnp.int32), M).reshape(GM, 1)
    gid = group_inputs.astype(jnp.int32).reshape(G, 1)
    iid_g = item_inputs.astype(jnp.int32).reshape(G, 1)

    full = lambda i: (0, 0)
    y = pl.pallas_call(
        _group_fused_kernel,
        out_shape=jax.ShapeDtypeStruct((G, 1), jnp.float32),
        grid=(1,),
        in_specs=[
            pl.BlockSpec((NUM_USERS, E), full),    # user embedding table
            pl.BlockSpec((NUM_ITEMS, E), full),    # item embedding table
            pl.BlockSpec((NUM_GROUPS, E), full),   # group embedding table
            pl.BlockSpec((GM, 1), full),           # member user ids
            pl.BlockSpec((GM, 1), full),           # item ids per member
            pl.BlockSpec((G, 1), full),            # group ids
            pl.BlockSpec((G, 1), full),            # item ids per group
            pl.BlockSpec((E, 16), full),           # att_w1_u_t
            pl.BlockSpec((E, 16), full),           # att_w1_i_t
            pl.BlockSpec((1, 16), full),           # att_b1
            pl.BlockSpec((16, 1), full),           # att_w2_t
            pl.BlockSpec((1, 1), full),            # att_b2
            pl.BlockSpec((E, 8), full),            # pred_w1_t
            pl.BlockSpec((1, 8), full),            # pred_b1
            pl.BlockSpec((8, 1), full),            # pred_w2_t
            pl.BlockSpec((1, 1), full),            # pred_b2
        ],
        out_specs=pl.BlockSpec((G, 1), full),
    )(params['user_emb'], params['item_emb'], params['group_emb'],
      mid, iid_gm, gid, iid_g,
      params['att_w1_u_t'], params['att_w1_i_t'], params['att_b1'],
      params['att_w2_t'], params['att_b2'],
      params['pred_w1_t'], params['pred_b1'], params['pred_w2_t'], params['pred_b2'])
    return y


def stmp_crl_forward(params, graph, type_, inputs, item_inputs, *, ev_idx=None, members=None):
    if type_ == 'group':
        return grp_forward(params, members, inputs, item_inputs)
    elif type_ == 'user':
        return usr_forward(params, graph, inputs, item_inputs, ev_idx)


# =============================== params & graph ===============================

def init_params(key):
    ks = jax.random.split(key, 12)

    def xavier(k, shape):
        std = (2.0 / (shape[0] + shape[1])) ** 0.5
        return std * jax.random.normal(k, shape, jnp.float32)

    s = 1.0 / (HIDDEN_SIZE ** 0.5)
    params = {
        'user_emb':  xavier(ks[0], (NUM_USERS, EMB_DIM)),
        'item_emb':  xavier(ks[1], (NUM_ITEMS, EMB_DIM)),
        'group_emb': xavier(ks[2], (NUM_GROUPS, EMB_DIM)),
        'event_emb': xavier(ks[3], (NUM_ITEMS, EMB_DIM)),
        # AttentionLayer: Linear(2E,16) -> ReLU -> Linear(16,1)
        'att_w1': 0.1 * jax.random.normal(ks[4], (16, 2 * EMB_DIM), jnp.float32),
        'att_b1': jnp.zeros((1, 16), jnp.float32),
        'att_w2': 0.1 * jax.random.normal(ks[5], (1, 16), jnp.float32),
        'att_b2': jnp.zeros((1, 1), jnp.float32),
        # PredictLayer: Linear(E,8) -> ReLU -> Linear(8,1)
        'pred_w1': 0.1 * jax.random.normal(ks[6], (8, EMB_DIM), jnp.float32),
        'pred_b1': jnp.zeros((1, 8), jnp.float32),
        'pred_w2': 0.1 * jax.random.normal(ks[7], (1, 8), jnp.float32),
        'pred_b2': jnp.zeros((1, 1), jnp.float32),
        # GRU (single layer, PyTorch gate order r,z,n)
        'gru_wih': jax.random.uniform(ks[8], (3 * HIDDEN_SIZE, INPUT_DIM), jnp.float32, -s, s),
        'gru_whh': jax.random.uniform(ks[9], (3 * HIDDEN_SIZE, HIDDEN_SIZE), jnp.float32, -s, s),
        'gru_bih': jax.random.uniform(ks[10], (1, 3 * HIDDEN_SIZE), jnp.float32, -s, s),
        'gru_bhh': jax.random.uniform(ks[11], (1, 3 * HIDDEN_SIZE), jnp.float32, -s, s),
    }
    return params


def prep_params(p):
    """One-time host-side weight prep: transposes, per-gate splits, fused biases,
    and the user||item embedding concat — so kernels never transpose or slice
    weights at lane offsets in-VMEM."""
    H = HIDDEN_SIZE
    q = dict(p)
    q['all_emb'] = jnp.concatenate([p['user_emb'], p['item_emb']], axis=0)   # (N, E)

    wih, whh, bih, bhh = p['gru_wih'], p['gru_whh'], p['gru_bih'], p['gru_bhh']
    q['gru_wih_r_t'] = jnp.asarray(wih[0:H].T)            # (E, H)
    q['gru_wih_z_t'] = jnp.asarray(wih[H:2 * H].T)
    q['gru_wih_n_t'] = jnp.asarray(wih[2 * H:3 * H].T)
    q['gru_whh_r_t'] = jnp.asarray(whh[0:H].T)            # (H, H)
    q['gru_whh_z_t'] = jnp.asarray(whh[H:2 * H].T)
    q['gru_whh_n_t'] = jnp.asarray(whh[2 * H:3 * H].T)
    q['gru_b_r'] = bih[:, 0:H] + bhh[:, 0:H]               # fused r-gate bias
    q['gru_b_z'] = bih[:, H:2 * H] + bhh[:, H:2 * H]        # fused z-gate bias
    q['gru_b_ni'] = bih[:, 2 * H:3 * H]                     # n-gate input bias
    q['gru_b_nh'] = bhh[:, 2 * H:3 * H]                     # n-gate hidden bias (kept separate)

    q['pred_w1_t'] = jnp.asarray(p['pred_w1'].T)            # (E, 8)
    q['pred_w2_t'] = jnp.asarray(p['pred_w2'].T)            # (8, 1)
    q['att_w1_u_t'] = jnp.asarray(p['att_w1'][:, :EMB_DIM].T)   # (E, 16)
    q['att_w1_i_t'] = jnp.asarray(p['att_w1'][:, EMB_DIM:].T)   # (E, 16)
    q['att_w2_t'] = jnp.asarray(p['att_w2'].T)               # (16, 1)
    return q


def build_graph(member_event_dict):
    # TODO(synk): original uses torch.sparse.mm on a sparse normalized adjacency;
    # here the graph is built dense (small synthetic sizes) and multiplied densely.
    N = N_NODES
    A = np.zeros((N, N), np.float32)
    for u, events in member_event_dict.items():
        for it in events:
            A[u, NUM_USERS + it] = 1.0
            A[NUM_USERS + it, u] = 1.0
    deg = A.sum(axis=1)
    d_inv_sqrt = np.where(deg > 0, deg ** -0.5, 0.0).astype(np.float32)
    A = A * d_inv_sqrt[:, None] * d_inv_sqrt[None, :]
    return jnp.asarray(A)


# =============================== main ===============================

if __name__ == "__main__":
    key = jax.random.PRNGKey(0)
    params = prep_params(init_params(key))

    group_member_dict = {g: [(g * 2 + m) % NUM_USERS for m in range(MEMBERS_PER_GROUP)]
                         for g in range(NUM_GROUPS)}
    member_event_dict = {u: [(u * 3 + t) % NUM_ITEMS for t in range(EVENTS_PER_USER)]
                         for u in range(NUM_USERS)}
    graph = build_graph(member_event_dict)

    user_inputs_np = np.array([0, 3, 5, 7, 2, 9, 11, 4], np.int32)
    item_inputs_u_np = np.array([1, 4, 7, 10, 13, 16, 19, 2], np.int32)
    group_inputs_np = np.array([0, 2, 3, 5], np.int32)
    item_inputs_g_np = np.array([3, 8, 12, 17], np.int32)

    # Host-side Python-dict lookups happen ONCE here, outside the jitted forwards.
    ev_idx = jnp.asarray(np.stack([member_event_dict[int(u)] for u in user_inputs_np])
                         .astype(np.int32))                                   # (B, L)
    members = jnp.asarray(np.stack([group_member_dict[int(g)] for g in group_inputs_np])
                          .astype(np.int32))                                  # (G, M)

    user_inputs = jnp.asarray(user_inputs_np)
    item_inputs_u = jnp.asarray(item_inputs_u_np)
    group_inputs = jnp.asarray(group_inputs_np)
    item_inputs_g = jnp.asarray(item_inputs_g_np)

    y_user, con_loss = stmp_crl_forward(params, graph, 'user',
                                        user_inputs, item_inputs_u, ev_idx=ev_idx)
    y_group = stmp_crl_forward(params, graph, 'group',
                               group_inputs, item_inputs_g, members=members)

    jax.block_until_ready((y_user, con_loss, y_group))
    assert y_user.shape == (user_inputs.shape[0], 1)
    assert y_group.shape == (group_inputs.shape[0], 1)
    assert con_loss.shape == ()
    print("KERNEL_OK")
</pallas_src>

<mosaic_0001>
module attributes {stable_mosaic.version = 11 : i64} {
  func.func @_user_fused_kernel(%arg0: i32, %arg1: memref<32x32xf32, #tpu.memory_space<vmem>>, %arg2: memref<32x32xf32, #tpu.memory_space<vmem>>, %arg3: memref<20x32xf32, #tpu.memory_space<vmem>>, %arg4: memref<8x1xi32, #tpu.memory_space<vmem>>, %arg5: memref<8x1xi32, #tpu.memory_space<vmem>>, %arg6: memref<64x1xi32, #tpu.memory_space<vmem>>, %arg7: memref<32x32xf32, #tpu.memory_space<vmem>>, %arg8: memref<32x32xf32, #tpu.memory_space<vmem>>, %arg9: memref<32x32xf32, #tpu.memory_space<vmem>>, %arg10: memref<32x32xf32, #tpu.memory_space<vmem>>, %arg11: memref<32x32xf32, #tpu.memory_space<vmem>>, %arg12: memref<32x32xf32, #tpu.memory_space<vmem>>, %arg13: memref<1x32xf32, #tpu.memory_space<vmem>>, %arg14: memref<1x32xf32, #tpu.memory_space<vmem>>, %arg15: memref<1x32xf32, #tpu.memory_space<vmem>>, %arg16: memref<1x32xf32, #tpu.memory_space<vmem>>, %arg17: memref<32x8xf32, #tpu.memory_space<vmem>>, %arg18: memref<1x8xf32, #tpu.memory_space<vmem>>, %arg19: memref<8x1xf32, #tpu.memory_space<vmem>>, %arg20: memref<1x1xf32, #tpu.memory_space<vmem>>, %arg21: memref<8x2xf32, #tpu.memory_space<vmem>>) attributes {dimension_semantics = [#tpu.dimension_semantics<arbitrary>], iteration_bounds = array<i64: 1>, scalar_prefetch = 0 : i64, scratch_operands = 0 : i64, tpu.core_type = #tpu.core_type<tc>, window_params = [{pipeline_mode = #tpu.pipeline_mode<synchronous>, transform_indices = @transform_0, window_bounds = array<i64: 32, 32>}, {pipeline_mode = #tpu.pipeline_mode<synchronous>, transform_indices = @transform_1, window_bounds = array<i64: 32, 32>}, {pipeline_mode = #tpu.pipeline_mode<synchronous>, transform_indices = @transform_2, window_bounds = array<i64: 20, 32>}, {pipeline_mode = #tpu.pipeline_mode<synchronous>, transform_indices = @transform_3, window_bounds = array<i64: 8, 1>}, {pipeline_mode = #tpu.pipeline_mode<synchronous>, transform_indices = @transform_4, window_bounds = array<i64: 8, 1>}, {pipeline_mode = #tpu.pipeline_mode<synchronous>, transform_indices = @transform_5, window_bounds = array<i64: 64, 1>}, {pipeline_mode = #tpu.pipeline_mode<synchronous>, transform_indices = @transform_6, window_bounds = array<i64: 32, 32>}, {pipeline_mode = #tpu.pipeline_mode<synchronous>, transform_indices = @transform_7, window_bounds = array<i64: 32, 32>}, {pipeline_mode = #tpu.pipeline_mode<synchronous>, transform_indices = @transform_8, window_bounds = array<i64: 32, 32>}, {pipeline_mode = #tpu.pipeline_mode<synchronous>, transform_indices = @transform_9, window_bounds = array<i64: 32, 32>}, {pipeline_mode = #tpu.pipeline_mode<synchronous>, transform_indices = @transform_10, window_bounds = array<i64: 32, 32>}, {pipeline_mode = #tpu.pipeline_mode<synchronous>, transform_indices = @transform_11, window_bounds = array<i64: 32, 32>}, {pipeline_mode = #tpu.pipeline_mode<synchronous>, transform_indices = @transform_12, window_bounds = array<i64: 1, 32>}, {pipeline_mode = #tpu.pipeline_mode<synchronous>, transform_indices = @transform_13, window_bounds = array<i64: 1, 32>}, {pipeline_mode = #tpu.pipeline_mode<synchronous>, transform_indices = @transform_14, window_bounds = array<i64: 1, 32>}, {pipeline_mode = #tpu.pipeline_mode<synchronous>, transform_indices = @transform_15, window_bounds = array<i64: 1, 32>}, {pipeline_mode = #tpu.pipeline_mode<synchronous>, transform_indices = @transform_16, window_bounds = array<i64: 32, 8>}, {pipeline_mode = #tpu.pipeline_mode<synchronous>, transform_indices = @transform_17, window_bounds = array<i64: 1, 8>}, {pipeline_mode = #tpu.pipeline_mode<synchronous>, transform_indices = @transform_18, window_bounds = array<i64: 8, 1>}, {pipeline_mode = #tpu.pipeline_mode<synchronous>, transform_indices = @transform_19, window_bounds = array<i64: 1, 1>}, {pipeline_mode = #tpu.pipeline_mode<synchronous>, transform_indices = @transform_20, window_bounds = array<i64: 8, 2>}]} {
    %c0 = arith.constant 0 : index
    %c0_0 = arith.constant 0 : index
    %0 = vector.load %arg1[%c0, %c0_0] : memref<32x32xf32, #tpu.memory_space<vmem>>, vector<32x32xf32>
    %c0_1 = arith.constant 0 : index
    %c0_2 = arith.constant 0 : index
    %1 = vector.load %arg2[%c0_1, %c0_2] : memref<32x32xf32, #tpu.memory_space<vmem>>, vector<32x32xf32>
    %cst = arith.constant dense<0.000000e+00> : vector<32x32xf32>
    %2 = tpu.matmul %0, %1, %cst {dimension_numbers = #tpu.dot_dimension_numbers<[1], [0], [0], [1], [0, 0, 1, 1], [], []>} : vector<32x32xf32>, vector<32x32xf32>, vector<32x32xf32> -> vector<32x32xf32>
    %3 = arith.addf %1, %2 : vector<32x32xf32>
    %cst_3 = arith.constant dense<0.000000e+00> : vector<32x32xf32>
    %4 = tpu.matmul %0, %2, %cst_3 {dimension_numbers = #tpu.dot_dimension_numbers<[1], [0], [0], [1], [0, 0, 1, 1], [], []>} : vector<32x32xf32>, vector<32x32xf32>, vector<32x32xf32> -> vector<32x32xf32>
    %5 = arith.addf %3, %4 : vector<32x32xf32>
    %cst_4 = arith.constant 0.333333343 : f32
    %6 = vector.broadcast %cst_4 : f32 to vector<32x32xf32>
    %7 = arith.mulf %5, %6 : vector<32x32xf32>
    %8 = tpu.iota {dimensions = array<i32: 1>} : vector<8x32xi32>
    %c0_5 = arith.constant 0 : index
    %c0_6 = arith.constant 0 : index
    %9 = vector.load %arg4[%c0_5, %c0_6] : memref<8x1xi32, #tpu.memory_space<vmem>>, vector<8x1xi32>
    %10 = vector.broadcast %9 : vector<8x1xi32> to vector<8x32xi32>
    %11 = arith.cmpi eq, %8, %10 : vector<8x32xi32>
    %cst_7 = arith.constant 1.000000e+00 : f32
    %cst_8 = arith.constant 0.000000e+00 : f32
    %12 = vector.broadcast %cst_7 : f32 to vector<8x32xf32>
    %13 = vector.broadcast %cst_8 : f32 to vector<8x32xf32>
    %14 = arith.select %11, %12, %13 : vector<8x32xi1>, vector<8x32xf32>
    %c0_9 = arith.constant 0 : index
    %c0_10 = arith.constant 0 : index
    %15 = vector.load %arg5[%c0_9, %c0_10] : memref<8x1xi32, #tpu.memory_space<vmem>>, vector<8x1xi32>
    %16 = vector.broadcast %15 : vector<8x1xi32> to vector<8x32xi32>
    %17 = arith.cmpi eq, %8, %16 : vector<8x32xi32>
    %cst_11 = arith.constant 1.000000e+00 : f32
    %cst_12 = arith.constant 0.000000e+00 : f32
    %18 = vector.broadcast %cst_11 : f32 to vector<8x32xf32>
    %19 = vector.broadcast %cst_12 : f32 to vector<8x32xf32>
    %20 = arith.select %17, %18, %19 : vector<8x32xi1>, vector<8x32xf32>
    %cst_13 = arith.constant dense<0.000000e+00> : vector<8x32xf32>
    %21 = tpu.matmul %14, %7, %cst_13 {dimension_numbers = #tpu.dot_dimension_numbers<[1], [0], [0], [1], [0, 0, 1, 1], [], []>} : vector<8x32xf32>, vector<32x32xf32>, vector<8x32xf32> -> vector<8x32xf32>
    %cst_14 = arith.constant dense<0.000000e+00> : vector<8x32xf32>
    %22 = tpu.matmul %14, %1, %cst_14 {dimension_numbers = #tpu.dot_dimension_numbers<[1], [0], [0], [1], [0, 0, 1, 1], [], []>} : vector<8x32xf32>, vector<32x32xf32>, vector<8x32xf32> -> vector<8x32xf32>
    %23 = arith.addf %7, %1 : vector<32x32xf32>
    %cst_15 = arith.constant dense<0.000000e+00> : vector<8x32xf32>
    %24 = tpu.matmul %20, %23, %cst_15 {dimension_numbers = #tpu.dot_dimension_numbers<[1], [0], [0], [1], [0, 0, 1, 1], [], []>} : vector<8x32xf32>, vector<32x32xf32>, vector<8x32xf32> -> vector<8x32xf32>
    %25 = tpu.iota {dimensions = array<i32: 1>} : vector<64x20xi32>
    %c0_16 = arith.constant 0 : index
    %c0_17 = arith.constant 0 : index
    %26 = vector.load %arg6[%c0_16, %c0_17] : memref<64x1xi32, #tpu.memory_space<vmem>>, vector<64x1xi32>
    %27 = vector.broadcast %26 : vector<64x1xi32> to vector<64x20xi32>
    %28 = arith.cmpi eq, %25, %27 : vector<64x20xi32>
    %cst_18 = arith.constant 1.000000e+00 : f32
    %cst_19 = arith.constant 0.000000e+00 : f32
    %29 = vector.broadcast %cst_18 : f32 to vector<64x20xf32>
    %30 = vector.broadcast %cst_19 : f32 to vector<64x20xf32>
    %31 = arith.select %28, %29, %30 : vector<64x20xi1>, vector<64x20xf32>
    %c0_20 = arith.constant 0 : index
    %c0_21 = arith.constant 0 : index
    %32 = vector.load %arg3[%c0_20, %c0_21] : memref<20x32xf32, #tpu.memory_space<vmem>>, vector<20x32xf32>
    %cst_22 = arith.constant dense<0.000000e+00> : vector<64x32xf32>
    %33 = tpu.matmul %31, %32, %cst_22 {dimension_numbers = #tpu.dot_dimension_numbers<[1], [0], [0], [1], [0, 0, 1, 1], [], []>} : vector<64x20xf32>, vector<20x32xf32>, vector<64x32xf32> -> vector<64x32xf32>
    %c0_23 = arith.constant 0 : index
    %c0_24 = arith.constant 0 : index
    %34 = vector.load %arg7[%c0_23, %c0_24] : memref<32x32xf32, #tpu.memory_space<vmem>>, vector<32x32xf32>
    %cst_25 = arith.constant dense<0.000000e+00> : vector<64x32xf32>
    %35 = tpu.matmul %33, %34, %cst_25 {dimension_numbers = #tpu.dot_dimension_numbers<[1], [0], [0], [1], [0, 0, 1, 1], [], []>} : vector<64x32xf32>, vector<32x32xf32>, vector<64x32xf32> -> vector<64x32xf32>
    %c0_26 = arith.constant 0 : index
    %c0_27 = arith.constant 0 : index
    %36 = vector.load %arg13[%c0_26, %c0_27] : memref<1x32xf32, #tpu.memory_space<vmem>>, vector<1x32xf32>
    %37 = vector.broadcast %36 : vector<1x32xf32> to vector<64x32xf32>
    %38 = arith.addf %35, %37 : vector<64x32xf32>
    %c0_28 = arith.constant 0 : index
    %c0_29 = arith.constant 0 : index
    %39 = vector.load %arg8[%c0_28, %c0_29] : memref<32x32xf32, #tpu.memory_space<vmem>>, vector<32x32xf32>
    %cst_30 = arith.constant dense<0.000000e+00> : vector<64x32xf32>
    %40 = tpu.matmul %33, %39, %cst_30 {dimension_numbers = #tpu.dot_dimension_numbers<[1], [0], [0], [1], [0, 0, 1, 1], [], []>} : vector<64x32xf32>, vector<32x32xf32>, vector<64x32xf32> -> vector<64x32xf32>
    %c0_31 = arith.constant 0 : index
    %c0_32 = arith.constant 0 : index
    %41 = vector.load %arg14[%c0_31, %c0_32] : memref<1x32xf32, #tpu.memory_space<vmem>>, vector<1x32xf32>
    %42 = vector.broadcast %41 : vector<1x32xf32> to vector<64x32xf32>
    %43 = arith.addf %40, %42 : vector<64x32xf32>
    %c0_33 = arith.constant 0 : index
    %c0_34 = arith.constant 0 : index
    %44 = vector.load %arg9[%c0_33, %c0_34] : memref<32x32xf32, #tpu.memory_space<vmem>>, vector<32x32xf32>
    %cst_35 = arith.constant dense<0.000000e+00> : vector<64x32xf32>
    %45 = tpu.matmul %33, %44, %cst_35 {dimension_numbers = #tpu.dot_dimension_numbers<[1], [0], [0], [1], [0, 0, 1, 1], [], []>} : vector<64x32xf32>, vector<32x32xf32>, vector<64x32xf32> -> vector<64x32xf32>
    %c0_36 = arith.constant 0 : index
    %c0_37 = arith.constant 0 : index
    %46 = vector.load %arg15[%c0_36, %c0_37] : memref<1x32xf32, #tpu.memory_space<vmem>>, vector<1x32xf32>
    %47 = vector.broadcast %46 : vector<1x32xf32> to vector<64x32xf32>
    %48 = arith.addf %45, %47 : vector<64x32xf32>
    %c0_38 = arith.constant 0 : index
    %c0_39 = arith.constant 0 : index
    %49 = vector.load %arg10[%c0_38, %c0_39] : memref<32x32xf32, #tpu.memory_space<vmem>>, vector<32x32xf32>
    %c0_40 = arith.constant 0 : index
    %c0_41 = arith.constant 0 : index
    %50 = vector.load %arg11[%c0_40, %c0_41] : memref<32x32xf32, #tpu.memory_space<vmem>>, vector<32x32xf32>
    %c0_42 = arith.constant 0 : index
    %c0_43 = arith.constant 0 : index
    %51 = vector.load %arg12[%c0_42, %c0_43] : memref<32x32xf32, #tpu.memory_space<vmem>>, vector<32x32xf32>
    %c0_44 = arith.constant 0 : index
    %c0_45 = arith.constant 0 : index
    %52 = vector.load %arg16[%c0_44, %c0_45] : memref<1x32xf32, #tpu.memory_space<vmem>>, vector<1x32xf32>
    %cst_46 = arith.constant 0.000000e+00 : f32
    %53 = vector.broadcast %cst_46 : f32 to vector<8x32xf32>
    %54 = vector.extract_strided_slice %38 {offsets = [0, 0], sizes = [8, 32], strides = [1, 1]} : vector<64x32xf32> to vector<8x32xf32>
    %cst_47 = arith.constant dense<0.000000e+00> : vector<8x32xf32>
    %55 = tpu.matmul %53, %49, %cst_47 {dimension_numbers = #tpu.dot_dimension_numbers<[1], [0], [0], [1], [0, 0, 1, 1], [], []>} : vector<8x32xf32>, vector<32x32xf32>, vector<8x32xf32> -> vector<8x32xf32>
    %56 = arith.addf %54, %55 : vector<8x32xf32>
    %57 = arith.negf %56 : vector<8x32xf32>
    %58 = math.exp %57 : vector<8x32xf32>
    %cst_48 = arith.constant 1.000000e+00 : f32
    %59 = vector.broadcast %cst_48 : f32 to vector<8x32xf32>
    %60 = arith.addf %59, %58 : vector<8x32xf32>
    %61 = arith.divf %59, %60 : vector<8x32xf32>
    %62 = vector.extract_strided_slice %43 {offsets = [0, 0], sizes = [8, 32], strides = [1, 1]} : vector<64x32xf32> to vector<8x32xf32>
    %cst_49 = arith.constant dense<0.000000e+00> : vector<8x32xf32>
    %63 = tpu.matmul %53, %50, %cst_49 {dimension_numbers = #tpu.dot_dimension_numbers<[1], [0], [0], [1], [0, 0, 1, 1], [], []>} : vector<8x32xf32>, vector<32x32xf32>, vector<8x32xf32> -> vector<8x32xf32>
    %64 = arith.addf %62, %63 : vector<8x32xf32>
    %65 = arith.negf %64 : vector<8x32xf32>
    %66 = math.exp %65 : vector<8x32xf32>
    %cst_50 = arith.constant 1.000000e+00 : f32
    %67 = vector.broadcast %cst_50 : f32 to vector<8x32xf32>
    %68 = arith.addf %67, %66 : vector<8x32xf32>
    %69 = arith.divf %67, %68 : vector<8x32xf32>
    %70 = vector.extract_strided_slice %48 {offsets = [0, 0], sizes = [8, 32], strides = [1, 1]} : vector<64x32xf32> to vector<8x32xf32>
    %cst_51 = arith.constant dense<0.000000e+00> : vector<8x32xf32>
    %71 = tpu.matmul %53, %51, %cst_51 {dimension_numbers = #tpu.dot_dimension_numbers<[1], [0], [0], [1], [0, 0, 1, 1], [], []>} : vector<8x32xf32>, vector<32x32xf32>, vector<8x32xf32> -> vector<8x32xf32>
    %72 = vector.broadcast %52 : vector<1x32xf32> to vector<8x32xf32>
    %73 = arith.addf %71, %72 : vector<8x32xf32>
    %74 = arith.mulf %61, %73 : vector<8x32xf32>
    %75 = arith.addf %70, %74 : vector<8x32xf32>
    %76 = math.tanh %75 : vector<8x32xf32>
    %cst_52 = arith.constant 1.000000e+00 : f32
    %77 = vector.broadcast %cst_52 : f32 to vector<8x32xf32>
    %78 = arith.subf %77, %69 : vector<8x32xf32>
    %79 = arith.mulf %78, %76 : vector<8x32xf32>
    %80 = arith.mulf %69, %53 : vector<8x32xf32>
    %81 = arith.addf %79, %80 : vector<8x32xf32>
    %82 = vector.extract_strided_slice %38 {offsets = [8, 0], sizes = [8, 32], strides = [1, 1]} : vector<64x32xf32> to vector<8x32xf32>
    %cst_53 = arith.constant dense<0.000000e+00> : vector<8x32xf32>
    %83 = tpu.matmul %81, %49, %cst_53 {dimension_numbers = #tpu.dot_dimension_numbers<[1], [0], [0], [1], [0, 0, 1, 1], [], []>} : vector<8x32xf32>, vector<32x32xf32>, vector<8x32xf32> -> vector<8x32xf32>
    %84 = arith.addf %82, %83 : vector<8x32xf32>
    %85 = arith.negf %84 : vector<8x32xf32>
    %86 = math.exp %85 : vector<8x32xf32>
    %cst_54 = arith.constant 1.000000e+00 : f32
    %87 = vector.broadcast %cst_54 : f32 to vector<8x32xf32>
    %88 = arith.addf %87, %86 : vector<8x32xf32>
    %89 = arith.divf %87, %88 : vector<8x32xf32>
    %90 = vector.extract_strided_slice %43 {offsets = [8, 0], sizes = [8, 32], strides = [1, 1]} : vector<64x32xf32> to vector<8x32xf32>
    %cst_55 = arith.constant dense<0.000000e+00> : vector<8x32xf32>
    %91 = tpu.matmul %81, %50, %cst_55 {dimension_numbers = #tpu.dot_dimension_numbers<[1], [0], [0], [1], [0, 0, 1, 1], [], []>} : vector<8x32xf32>, vector<32x32xf32>, vector<8x32xf32> -> vector<8x32xf32>
    %92 = arith.addf %90, %91 : vector<8x32xf32>
    %93 = arith.negf %92 : vector<8x32xf32>
    %94 = math.exp %93 : vector<8x32xf32>
    %cst_56 = arith.constant 1.000000e+00 : f32
    %95 = vector.broadcast %cst_56 : f32 to vector<8x32xf32>
    %96 = arith.addf %95, %94 : vector<8x32xf32>
    %97 = arith.divf %95, %96 : vector<8x32xf32>
    %98 = vector.extract_strided_slice %48 {offsets = [8, 0], sizes = [8, 32], strides = [1, 1]} : vector<64x32xf32> to vector<8x32xf32>
    %cst_57 = arith.constant dense<0.000000e+00> : vector<8x32xf32>
    %99 = tpu.matmul %81, %51, %cst_57 {dimension_numbers = #tpu.dot_dimension_numbers<[1], [0], [0], [1], [0, 0, 1, 1], [], []>} : vector<8x32xf32>, vector<32x32xf32>, vector<8x32xf32> -> vector<8x32xf32>
    %100 = vector.broadcast %52 : vector<1x32xf32> to vector<8x32xf32>
    %101 = arith.addf %99, %100 : vector<8x32xf32>
    %102 = arith.mulf %89, %101 : vector<8x32xf32>
    %103 = arith.addf %98, %102 : vector<8x32xf32>
    %104 = math.tanh %103 : vector<8x32xf32>
    %cst_58 = arith.constant 1.000000e+00 : f32
    %105 = vector.broadcast %cst_58 : f32 to vector<8x32xf32>
    %106 = arith.subf %105, %97 : vector<8x32xf32>
    %107 = arith.mulf %106, %104 : vector<8x32xf32>
    %108 = arith.mulf %97, %81 : vector<8x32xf32>
    %109 = arith.addf %107, %108 : vector<8x32xf32>
    %110 = vector.extract_strided_slice %38 {offsets = [16, 0], sizes = [8, 32], strides = [1, 1]} : vector<64x32xf32> to vector<8x32xf32>
    %cst_59 = arith.constant dense<0.000000e+00> : vector<8x32xf32>
    %111 = tpu.matmul %109, %49, %cst_59 {dimension_numbers = #tpu.dot_dimension_numbers<[1], [0], [0], [1], [0, 0, 1, 1], [], []>} : vector<8x32xf32>, vector<32x32xf32>, vector<8x32xf32> -> vector<8x32xf32>
    %112 = arith.addf %110, %111 : vector<8x32xf32>
    %113 = arith.negf %112 : vector<8x32xf32>
    %114 = math.exp %113 : vector<8x32xf32>
    %cst_60 = arith.constant 1.000000e+00 : f32
    %115 = vector.broadcast %cst_60 : f32 to vector<8x32xf32>
    %116 = arith.addf %115, %114 : vector<8x32xf32>
    %117 = arith.divf %115, %116 : vector<8x32xf32>
    %118 = vector.extract_strided_slice %43 {offsets = [16, 0], sizes = [8, 32], strides = [1, 1]} : vector<64x32xf32> to vector<8x32xf32>
    %cst_61 = arith.constant dense<0.000000e+00> : vector<8x32xf32>
    %119 = tpu.matmul %109, %50, %cst_61 {dimension_numbers = #tpu.dot_dimension_numbers<[1], [0], [0], [1], [0, 0, 1, 1], [], []>} : vector<8x32xf32>, vector<32x32xf32>, vector<8x32xf32> -> vector<8x32xf32>
    %120 = arith.addf %118, %119 : vector<8x32xf32>
    %121 = arith.negf %120 : vector<8x32xf32>
    %122 = math.exp %121 : vector<8x32xf32>
    %cst_62 = arith.constant 1.000000e+00 : f32
    %123 = vector.broadcast %cst_62 : f32 to vector<8x32xf32>
    %124 = arith.addf %123, %122 : vector<8x32xf32>
    %125 = arith.divf %123, %124 : vector<8x32xf32>
    %126 = vector.extract_strided_slice %48 {offsets = [16, 0], sizes = [8, 32], strides = [1, 1]} : vector<64x32xf32> to vector<8x32xf32>
    %cst_63 = arith.constant dense<0.000000e+00> : vector<8x32xf32>
    %127 = tpu.matmul %109, %51, %cst_63 {dimension_numbers = #tpu.dot_dimension_numbers<[1], [0], [0], [1], [0, 0, 1, 1], [], []>} : vector<8x32xf32>, vector<32x32xf32>, vector<8x32xf32> -> vector<8x32xf32>
    %128 = vector.broadcast %52 : vector<1x32xf32> to vector<8x32xf32>
    %129 = arith.addf %127, %128 : vector<8x32xf32>
    %130 = arith.mulf %117, %129 : vector<8x32xf32>
    %131 = arith.addf %126, %130 : vector<8x32xf32>
    %132 = math.tanh %131 : vector<8x32xf32>
    %cst_64 = arith.constant 1.000000e+00 : f32
    %133 = vector.broadcast %cst_64 : f32 to vector<8x32xf32>
    %134 = arith.subf %133, %125 : vector<8x32xf32>
    %135 = arith.mulf %134, %132 : vector<8x32xf32>
    %136 = arith.mulf %125, %109 : vector<8x32xf32>
    %137 = arith.addf %135, %136 : vector<8x32xf32>
    %138 = vector.extract_strided_slice %38 {offsets = [24, 0], sizes = [8, 32], strides = [1, 1]} : vector<64x32xf32> to vector<8x32xf32>
    %cst_65 = arith.constant dense<0.000000e+00> : vector<8x32xf32>
    %139 = tpu.matmul %137, %49, %cst_65 {dimension_numbers = #tpu.dot_dimension_numbers<[1], [0], [0], [1], [0, 0, 1, 1], [], []>} : vector<8x32xf32>, vector<32x32xf32>, vector<8x32xf32> -> vector<8x32xf32>
    %140 = arith.addf %138, %139 : vector<8x32xf32>
    %141 = arith.negf %140 : vector<8x32xf32>
    %142 = math.exp %141 : vector<8x32xf32>
    %cst_66 = arith.constant 1.000000e+00 : f32
    %143 = vector.broadcast %cst_66 : f32 to vector<8x32xf32>
    %144 = arith.addf %143, %142 : vector<8x32xf32>
    %145 = arith.divf %143, %144 : vector<8x32xf32>
    %146 = vector.extract_strided_slice %43 {offsets = [24, 0], sizes = [8, 32], strides = [1, 1]} : vector<64x32xf32> to vector<8x32xf32>
    %cst_67 = arith.constant dense<0.000000e+00> : vector<8x32xf32>
    %147 = tpu.matmul %137, %50, %cst_67 {dimension_numbers = #tpu.dot_dimension_numbers<[1], [0], [0], [1], [0, 0, 1, 1], [], []>} : vector<8x32xf32>, vector<32x32xf32>, vector<8x32xf32> -> vector<8x32xf32>
    %148 = arith.addf %146, %147 : vector<8x32xf32>
    %149 = arith.negf %148 : vector<8x32xf32>
    %150 = math.exp %149 : vector<8x32xf32>
    %cst_68 = arith.constant 1.000000e+00 : f32
    %151 = vector.broadcast %cst_68 : f32 to vector<8x32xf32>
    %152 = arith.addf %151, %150 : vector<8x32xf32>
    %153 = arith.divf %151, %152 : vector<8x32xf32>
    %154 = vector.extract_strided_slice %48 {offsets = [24, 0], sizes = [8, 32], strides = [1, 1]} : vector<64x32xf32> to vector<8x32xf32>
    %cst_69 = arith.constant dense<0.000000e+00> : vector<8x32xf32>
    %155 = tpu.matmul %137, %51, %cst_69 {dimension_numbers = #tpu.dot_dimension_numbers<[1], [0], [0], [1], [0, 0, 1, 1], [], []>} : vector<8x32xf32>, vector<32x32xf32>, vector<8x32xf32> -> vector<8x32xf32>
    %156 = vector.broadcast %52 : vector<1x32xf32> to vector<8x32xf32>
    %157 = arith.addf %155, %156 : vector<8x32xf32>
    %158 = arith.mulf %145, %157 : vector<8x32xf32>
    %159 = arith.addf %154, %158 : vector<8x32xf32>
    %160 = math.tanh %159 : vector<8x32xf32>
    %cst_70 = arith.constant 1.000000e+00 : f32
    %161 = vector.broadcast %cst_70 : f32 to vector<8x32xf32>
    %162 = arith.subf %161, %153 : vector<8x32xf32>
    %163 = arith.mulf %162, %160 : vector<8x32xf32>
    %164 = arith.mulf %153, %137 : vector<8x32xf32>
    %165 = arith.addf %163, %164 : vector<8x32xf32>
    %166 = vector.extract_strided_slice %38 {offsets = [32, 0], sizes = [8, 32], strides = [1, 1]} : vector<64x32xf32> to vector<8x32xf32>
    %cst_71 = arith.constant dense<0.000000e+00> : vector<8x32xf32>
    %167 = tpu.matmul %165, %49, %cst_71 {dimension_numbers = #tpu.dot_dimension_numbers<[1], [0], [0], [1], [0, 0, 1, 1], [], []>} : vector<8x32xf32>, vector<32x32xf32>, vector<8x32xf32> -> vector<8x32xf32>
    %168 = arith.addf %166, %167 : vector<8x32xf32>
    %169 = arith.negf %168 : vector<8x32xf32>
    %170 = math.exp %169 : vector<8x32xf32>
    %cst_72 = arith.constant 1.000000e+00 : f32
    %171 = vector.broadcast %cst_72 : f32 to vector<8x32xf32>
    %172 = arith.addf %171, %170 : vector<8x32xf32>
    %173 = arith.divf %171, %172 : vector<8x32xf32>
    %174 = vector.extract_strided_slice %43 {offsets = [32, 0], sizes = [8, 32], strides = [1, 1]} : vector<64x32xf32> to vector<8x32xf32>
    %cst_73 = arith.constant dense<0.000000e+00> : vector<8x32xf32>
    %175 = tpu.matmul %165, %50, %cst_73 {dimension_numbers = #tpu.dot_dimension_numbers<[1], [0], [0], [1], [0, 0, 1, 1], [], []>} : vector<8x32xf32>, vector<32x32xf32>, vector<8x32xf32> -> vector<8x32xf32>
    %176 = arith.addf %174, %175 : vector<8x32xf32>
    %177 = arith.negf %176 : vector<8x32xf32>
    %178 = math.exp %177 : vector<8x32xf32>
    %cst_74 = arith.constant 1.000000e+00 : f32
    %179 = vector.broadcast %cst_74 : f32 to vector<8x32xf32>
    %180 = arith.addf %179, %178 : vector<8x32xf32>
    %181 = arith.divf %179, %180 : vector<8x32xf32>
    %182 = vector.extract_strided_slice %48 {offsets = [32, 0], sizes = [8, 32], strides = [1, 1]} : vector<64x32xf32> to vector<8x32xf32>
    %cst_75 = arith.constant dense<0.000000e+00> : vector<8x32xf32>
    %183 = tpu.matmul %165, %51, %cst_75 {dimension_numbers = #tpu.dot_dimension_numbers<[1], [0], [0], [1], [0, 0, 1, 1], [], []>} : vector<8x32xf32>, vector<32x32xf32>, vector<8x32xf32> -> vector<8x32xf32>
    %184 = vector.broadcast %52 : vector<1x32xf32> to vector<8x32xf32>
    %185 = arith.addf %183, %184 : vector<8x32xf32>
    %186 = arith.mulf %173, %185 : vector<8x32xf32>
    %187 = arith.addf %182, %186 : vector<8x32xf32>
    %188 = math.tanh %187 : vector<8x32xf32>
    %cst_76 = arith.constant 1.000000e+00 : f32
    %189 = vector.broadcast %cst_76 : f32 to vector<8x32xf32>
    %190 = arith.subf %189, %181 : vector<8x32xf32>
    %191 = arith.mulf %190, %188 : vector<8x32xf32>
    %192 = arith.mulf %181, %165 : vector<8x32xf32>
    %193 = arith.addf %191, %192 : vector<8x32xf32>
    %194 = vector.extract_strided_slice %38 {offsets = [40, 0], sizes = [8, 32], strides = [1, 1]} : vector<64x32xf32> to vector<8x32xf32>
    %cst_77 = arith.constant dense<0.000000e+00> : vector<8x32xf32>
    %195 = tpu.matmul %193, %49, %cst_77 {dimension_numbers = #tpu.dot_dimension_numbers<[1], [0], [0], [1], [0, 0, 1, 1], [], []>} : vector<8x32xf32>, vector<32x32xf32>, vector<8x32xf32> -> vector<8x32xf32>
    %196 = arith.addf %194, %195 : vector<8x32xf32>
    %197 = arith.negf %196 : vector<8x32xf32>
    %198 = math.exp %197 : vector<8x32xf32>
    %cst_78 = arith.constant 1.000000e+00 : f32
    %199 = vector.broadcast %cst_78 : f32 to vector<8x32xf32>
    %200 = arith.addf %199, %198 : vector<8x32xf32>
    %201 = arith.divf %199, %200 : vector<8x32xf32>
    %202 = vector.extract_strided_slice %43 {offsets = [40, 0], sizes = [8, 32], strides = [1, 1]} : vector<64x32xf32> to vector<8x32xf32>
    %cst_79 = arith.constant dense<0.000000e+00> : vector<8x32xf32>
    %203 = tpu.matmul %193, %50, %cst_79 {dimension_numbers = #tpu.dot_dimension_numbers<[1], [0], [0], [1], [0, 0, 1, 1], [], []>} : vector<8x32xf32>, vector<32x32xf32>, vector<8x32xf32> -> vector<8x32xf32>
    %204 = arith.addf %202, %203 : vector<8x32xf32>
    %205 = arith.negf %204 : vector<8x32xf32>
    %206 = math.exp %205 : vector<8x32xf32>
    %cst_80 = arith.constant 1.000000e+00 : f32
    %207 = vector.broadcast %cst_80 : f32 to vector<8x32xf32>
    %208 = arith.addf %207, %206 : vector<8x32xf32>
    %209 = arith.divf %207, %208 : vector<8x32xf32>
    %210 = vector.extract_strided_slice %48 {offsets = [40, 0], sizes = [8, 32], strides = [1, 1]} : vector<64x32xf32> to vector<8x32xf32>
    %cst_81 = arith.constant dense<0.000000e+00> : vector<8x32xf32>
    %211 = tpu.matmul %193, %51, %cst_81 {dimension_numbers = #tpu.dot_dimension_numbers<[1], [0], [0], [1], [0, 0, 1, 1], [], []>} : vector<8x32xf32>, vector<32x32xf32>, vector<8x32xf32> -> vector<8x32xf32>
    %212 = vector.broadcast %52 : vector<1x32xf32> to vector<8x32xf32>
    %213 = arith.addf %211, %212 : vector<8x32xf32>
    %214 = arith.mulf %201, %213 : vector<8x32xf32>
    %215 = arith.addf %210, %214 : vector<8x32xf32>
    %216 = math.tanh %215 : vector<8x32xf32>
    %cst_82 = arith.constant 1.000000e+00 : f32
    %217 = vector.broadcast %cst_82 : f32 to vector<8x32xf32>
    %218 = arith.subf %217, %209 : vector<8x32xf32>
    %219 = arith.mulf %218, %216 : vector<8x32xf32>
    %220 = arith.mulf %209, %193 : vector<8x32xf32>
    %221 = arith.addf %219, %220 : vector<8x32xf32>
    %222 = vector.extract_strided_slice %38 {offsets = [48, 0], sizes = [8, 32], strides = [1, 1]} : vector<64x32xf32> to vector<8x32xf32>
    %cst_83 = arith.constant dense<0.000000e+00> : vector<8x32xf32>
    %223 = tpu.matmul %221, %49, %cst_83 {dimension_numbers = #tpu.dot_dimension_numbers<[1], [0], [0], [1], [0, 0, 1, 1], [], []>} : vector<8x32xf32>, vector<32x32xf32>, vector<8x32xf32> -> vector<8x32xf32>
    %224 = arith.addf %222, %223 : vector<8x32xf32>
    %225 = arith.negf %224 : vector<8x32xf32>
    %226 = math.exp %225 : vector<8x32xf32>
    %cst_84 = arith.constant 1.000000e+00 : f32
    %227 = vector.broadcast %cst_84 : f32 to vector<8x32xf32>
    %228 = arith.addf %227, %226 : vector<8x32xf32>
    %229 = arith.divf %227, %228 : vector<8x32xf32>
    %230 = vector.extract_strided_slice %43 {offsets = [48, 0], sizes = [8, 32], strides = [1, 1]} : vector<64x32xf32> to vector<8x32xf32>
    %cst_85 = arith.constant dense<0.000000e+00> : vector<8x32xf32>
    %231 = tpu.matmul %221, %50, %cst_85 {dimension_numbers = #tpu.dot_dimension_numbers<[1], [0], [0], [1], [0, 0, 1, 1], [], []>} : vector<8x32xf32>, vector<32x32xf32>, vector<8x32xf32> -> vector<8x32xf32>
    %232 = arith.addf %230, %231 : vector<8x32xf32>
    %233 = arith.negf %232 : vector<8x32xf32>
    %234 = math.exp %233 : vector<8x32xf32>
    %cst_86 = arith.constant 1.000000e+00 : f32
    %235 = vector.broadcast %cst_86 : f32 to vector<8x32xf32>
    %236 = arith.addf %235, %234 : vector<8x32xf32>
    %237 = arith.divf %235, %236 : vector<8x32xf32>
    %238 = vector.extract_strided_slice %48 {offsets = [48, 0], sizes = [8, 32], strides = [1, 1]} : vector<64x32xf32> to vector<8x32xf32>
    %cst_87 = arith.constant dense<0.000000e+00> : vector<8x32xf32>
    %239 = tpu.matmul %221, %51, %cst_87 {dimension_numbers = #tpu.dot_dimension_numbers<[1], [0], [0], [1], [0, 0, 1, 1], [], []>} : vector<8x32xf32>, vector<32x32xf32>, vector<8x32xf32> -> vector<8x32xf32>
    %240 = vector.broadcast %52 : vector<1x32xf32> to vector<8x32xf32>
    %241 = arith.addf %239, %240 : vector<8x32xf32>
    %242 = arith.mulf %229, %241 : vector<8x32xf32>
    %243 = arith.addf %238, %242 : vector<8x32xf32>
    %244 = math.tanh %243 : vector<8x32xf32>
    %cst_88 = arith.constant 1.000000e+00 : f32
    %245 = vector.broadcast %cst_88 : f32 to vector<8x32xf32>
    %246 = arith.subf %245, %237 : vector<8x32xf32>
    %247 = arith.mulf %246, %244 : vector<8x32xf32>
    %248 = arith.mulf %237, %221 : vector<8x32xf32>
    %249 = arith.addf %247, %248 : vector<8x32xf32>
    %250 = vector.extract_strided_slice %38 {offsets = [56, 0], sizes = [8, 32], strides = [1, 1]} : vector<64x32xf32> to vector<8x32xf32>
    %cst_89 = arith.constant dense<0.000000e+00> : vector<8x32xf32>
    %251 = tpu.matmul %249, %49, %cst_89 {dimension_numbers = #tpu.dot_dimension_numbers<[1], [0], [0], [1], [0, 0, 1, 1], [], []>} : vector<8x32xf32>, vector<32x32xf32>, vector<8x32xf32> -> vector<8x32xf32>
    %252 = arith.addf %250, %251 : vector<8x32xf32>
    %253 = arith.negf %252 : vector<8x32xf32>
    %254 = math.exp %253 : vector<8x32xf32>
    %cst_90 = arith.constant 1.000000e+00 : f32
    %255 = vector.broadcast %cst_90 : f32 to vector<8x32xf32>
    %256 = arith.addf %255, %254 : vector<8x32xf32>
    %257 = arith.divf %255, %256 : vector<8x32xf32>
    %258 = vector.extract_strided_slice %43 {offsets = [56, 0], sizes = [8, 32], strides = [1, 1]} : vector<64x32xf32> to vector<8x32xf32>
    %cst_91 = arith.constant dense<0.000000e+00> : vector<8x32xf32>
    %259 = tpu.matmul %249, %50, %cst_91 {dimension_numbers = #tpu.dot_dimension_numbers<[1], [0], [0], [1], [0, 0, 1, 1], [], []>} : vector<8x32xf32>, vector<32x32xf32>, vector<8x32xf32> -> vector<8x32xf32>
    %260 = arith.addf %258, %259 : vector<8x32xf32>
    %261 = arith.negf %260 : vector<8x32xf32>
    %262 = math.exp %261 : vector<8x32xf32>
    %cst_92 = arith.constant 1.000000e+00 : f32
    %263 = vector.broadcast %cst_92 : f32 to vector<8x32xf32>
    %264 = arith.addf %263, %262 : vector<8x32xf32>
    %265 = arith.divf %263, %264 : vector<8x32xf32>
    %266 = vector.extract_strided_slice %48 {offsets = [56, 0], sizes = [8, 32], strides = [1, 1]} : vector<64x32xf32> to vector<8x32xf32>
    %cst_93 = arith.constant dense<0.000000e+00> : vector<8x32xf32>
    %267 = tpu.matmul %249, %51, %cst_93 {dimension_numbers = #tpu.dot_dimension_numbers<[1], [0], [0], [1], [0, 0, 1, 1], [], []>} : vector<8x32xf32>, vector<32x32xf32>, vector<8x32xf32> -> vector<8x32xf32>
    %268 = vector.broadcast %52 : vector<1x32xf32> to vector<8x32xf32>
    %269 = arith.addf %267, %268 : vector<8x32xf32>
    %270 = arith.mulf %257, %269 : vector<8x32xf32>
    %271 = arith.addf %266, %270 : vector<8x32xf32>
    %272 = math.tanh %271 : vector<8x32xf32>
    %cst_94 = arith.constant 1.000000e+00 : f32
    %273 = vector.broadcast %cst_94 : f32 to vector<8x32xf32>
    %274 = arith.subf %273, %265 : vector<8x32xf32>
    %275 = arith.mulf %274, %272 : vector<8x32xf32>
    %276 = arith.mulf %265, %249 : vector<8x32xf32>
    %277 = arith.addf %275, %276 : vector<8x32xf32>
    %278 = arith.mulf %21, %21 : vector<8x32xf32>
    %cst_95 = arith.constant dense<0.000000e+00> : vector<8xf32>
    %279 = vector.multi_reduction <add>, %278, %cst_95 [1] : vector<8x32xf32> to vector<8xf32>
    %280 = vector.shape_cast %279 : vector<8xf32> to vector<8x1xf32>
    %281 = tpu.transpose %21, [1, 0] : vector<8x32xf32> -> vector<32x8xf32>
    %282 = tpu.transpose %280, [1, 0] : vector<8x1xf32> -> vector<1x8xf32>
    %283 = vector.broadcast %282 : vector<1x8xf32> to vector<32x8xf32>
    %284 = arith.addf %281, %283 : vector<32x8xf32>
    %cst_96 = arith.constant dense<0.000000e+00> : vector<8x8xf32>
    %285 = tpu.matmul %21, %284, %cst_96 {dimension_numbers = #tpu.dot_dimension_numbers<[1], [0], [0], [1], [0, 0, 1, 1], [], []>} : vector<8x32xf32>, vector<32x8xf32>, vector<8x8xf32> -> vector<8x8xf32>
    %cst_97 = arith.constant 2.000000e+00 : f32
    %286 = vector.broadcast %cst_97 : f32 to vector<8x8xf32>
    %287 = arith.mulf %286, %285 : vector<8x8xf32>
    %288 = vector.broadcast %280 : vector<8x1xf32> to vector<8x8xf32>
    %289 = arith.subf %288, %287 : vector<8x8xf32>
    %cst_98 = arith.constant 0.000000e+00 : f32
    %290 = vector.broadcast %cst_98 : f32 to vector<8x8xf32>
    %291 = arith.cmpf ogt, %289, %290 : vector<8x8xf32>
    %cst_99 = arith.constant 0.000000e+00 : f32
    %292 = vector.broadcast %cst_99 : f32 to vector<8x8xf32>
    %293 = arith.select %291, %289, %292 : vector<8x8xi1>, vector<8x8xf32>
    %cst_100 = arith.constant 9.99999993E-9 : f32
    %294 = vector.broadcast %cst_100 : f32 to vector<8x8xf32>
    %295 = arith.addf %293, %294 : vector<8x8xf32>
    %296 = math.sqrt %295 : vector<8x8xf32>
    %cst_101 = arith.constant dense<0.000000e+00> : vector<8xf32>
    %297 = vector.multi_reduction <add>, %296, %cst_101 [0] : vector<8x8xf32> to vector<8xf32>
    %298 = vector.shape_cast %297 : vector<8xf32> to vector<1x8xf32>
    %cst_102 = arith.constant 8.000000e+00 : f32
    %299 = vector.broadcast %cst_102 : f32 to vector<1x8xf32>
    %300 = arith.divf %298, %299 : vector<1x8xf32>
    %301 = vector.broadcast %300 : vector<1x8xf32> to vector<8x8xf32>
    %302 = arith.subf %296, %301 : vector<8x8xf32>
    %cst_103 = arith.constant dense<0.000000e+00> : vector<8xf32>
    %303 = vector.multi_reduction <add>, %296, %cst_103 [1] : vector<8x8xf32> to vector<8xf32>
    %304 = vector.shape_cast %303 : vector<8xf32> to vector<8x1xf32>
    %cst_104 = arith.constant 8.000000e+00 : f32
    %305 = vector.broadcast %cst_104 : f32 to vector<8x1xf32>
    %306 = arith.divf %304, %305 : vector<8x1xf32>
    %307 = vector.broadcast %306 : vector<8x1xf32> to vector<8x8xf32>
    %308 = arith.subf %302, %307 : vector<8x8xf32>
    %309 = vector.shape_cast %296 : vector<8x8xf32> to vector<1x8x8xf32>
    %cst_105 = arith.constant dense<0.000000e+00> : vector<1xf32>
    %310 = vector.multi_reduction <add>, %309, %cst_105 [1, 2] : vector<1x8x8xf32> to vector<1xf32>
    %311 = vector.shape_cast %310 : vector<1xf32> to vector<1x1x1xf32>
    %312 = vector.extract %311[0, 0, 0] : f32 from vector<1x1x1xf32>
    %cst_106 = arith.constant 6.400000e+01 : f32
    %313 = arith.divf %312, %cst_106 : f32
    %314 = vector.broadcast %313 : f32 to vector<8x8xf32>
    %315 = arith.addf %308, %314 : vector<8x8xf32>
    %316 = arith.mulf %277, %277 : vector<8x32xf32>
    %cst_107 = arith.constant dense<0.000000e+00> : vector<8xf32>
    %317 = vector.multi_reduction <add>, %316, %cst_107 [1] : vector<8x32xf32> to vector<8xf32>
    %318 = vector.shape_cast %317 : vector<8xf32> to vector<8x1xf32>
    %319 = tpu.transpose %277, [1, 0] : vector<8x32xf32> -> vector<32x8xf32>
    %320 = tpu.transpose %318, [1, 0] : vector<8x1xf32> -> vector<1x8xf32>
    %321 = vector.broadcast %320 : vector<1x8xf32> to vector<32x8xf32>
    %322 = arith.addf %319, %321 : vector<32x8xf32>
    %cst_108 = arith.constant dense<0.000000e+00> : vector<8x8xf32>
    %323 = tpu.matmul %277, %322, %cst_108 {dimension_numbers = #tpu.dot_dimension_numbers<[1], [0], [0], [1], [0, 0, 1, 1], [], []>} : vector<8x32xf32>, vector<32x8xf32>, vector<8x8xf32> -> vector<8x8xf32>
    %cst_109 = arith.constant 2.000000e+00 : f32
    %324 = vector.broadcast %cst_109 : f32 to vector<8x8xf32>
    %325 = arith.mulf %324, %323 : vector<8x8xf32>
    %326 = vector.broadcast %318 : vector<8x1xf32> to vector<8x8xf32>
    %327 = arith.subf %326, %325 : vector<8x8xf32>
    %cst_110 = arith.constant 0.000000e+00 : f32
    %328 = vector.broadcast %cst_110 : f32 to vector<8x8xf32>
    %329 = arith.cmpf ogt, %327, %328 : vector<8x8xf32>
    %cst_111 = arith.constant 0.000000e+00 : f32
    %330 = vector.broadcast %cst_111 : f32 to vector<8x8xf32>
    %331 = arith.select %329, %327, %330 : vector<8x8xi1>, vector<8x8xf32>
    %cst_112 = arith.constant 9.99999993E-9 : f32
    %332 = vector.broadcast %cst_112 : f32 to vector<8x8xf32>
    %333 = arith.addf %331, %332 : vector<8x8xf32>
    %334 = math.sqrt %333 : vector<8x8xf32>
    %cst_113 = arith.constant dense<0.000000e+00> : vector<8xf32>
    %335 = vector.multi_reduction <add>, %334, %cst_113 [0] : vector<8x8xf32> to vector<8xf32>
    %336 = vector.shape_cast %335 : vector<8xf32> to vector<1x8xf32>
    %cst_114 = arith.constant 8.000000e+00 : f32
    %337 = vector.broadcast %cst_114 : f32 to vector<1x8xf32>
    %338 = arith.divf %336, %337 : vector<1x8xf32>
    %339 = vector.broadcast %338 : vector<1x8xf32> to vector<8x8xf32>
    %340 = arith.subf %334, %339 : vector<8x8xf32>
    %cst_115 = arith.constant dense<0.000000e+00> : vector<8xf32>
    %341 = vector.multi_reduction <add>, %334, %cst_115 [1] : vector<8x8xf32> to vector<8xf32>
    %342 = vector.shape_cast %341 : vector<8xf32> to vector<8x1xf32>
    %cst_116 = arith.constant 8.000000e+00 : f32
    %343 = vector.broadcast %cst_116 : f32 to vector<8x1xf32>
    %344 = arith.divf %342, %343 : vector<8x1xf32>
    %345 = vector.broadcast %344 : vector<8x1xf32> to vector<8x8xf32>
    %346 = arith.subf %340, %345 : vector<8x8xf32>
    %347 = vector.shape_cast %334 : vector<8x8xf32> to vector<1x8x8xf32>
    %cst_117 = arith.constant dense<0.000000e+00> : vector<1xf32>
    %348 = vector.multi_reduction <add>, %347, %cst_117 [1, 2] : vector<1x8x8xf32> to vector<1xf32>
    %349 = vector.shape_cast %348 : vector<1xf32> to vector<1x1x1xf32>
    %350 = vector.extract %349[0, 0, 0] : f32 from vector<1x1x1xf32>
    %cst_118 = arith.constant 6.400000e+01 : f32
    %351 = arith.divf %350, %cst_118 : f32
    %352 = vector.broadcast %351 : f32 to vector<8x8xf32>
    %353 = arith.addf %346, %352 : vector<8x8xf32>
    %354 = arith.mulf %315, %353 : vector<8x8xf32>
    %355 = vector.shape_cast %354 : vector<8x8xf32> to vector<1x8x8xf32>
    %cst_119 = arith.constant dense<0.000000e+00> : vector<1xf32>
    %356 = vector.multi_reduction <add>, %355, %cst_119 [1, 2] : vector<1x8x8xf32> to vector<1xf32>
    %357 = vector.shape_cast %356 : vector<1xf32> to vector<1x1x1xf32>
    %358 = vector.extract %357[0, 0, 0] : f32 from vector<1x1x1xf32>
    %cst_120 = arith.constant 6.400000e+01 : f32
    %359 = arith.divf %358, %cst_120 : f32
    %cst_121 = arith.constant 0.000000e+00 : f32
    %360 = arith.cmpf ogt, %359, %cst_121 : f32
    %cst_122 = arith.constant 0.000000e+00 : f32
    %361 = arith.select %360, %359, %cst_122 : f32
    %cst_123 = arith.constant 9.99999993E-9 : f32
    %362 = arith.addf %361, %cst_123 : f32
    %363 = math.sqrt %362 : f32
    %364 = arith.mulf %315, %315 : vector<8x8xf32>
    %365 = vector.shape_cast %364 : vector<8x8xf32> to vector<1x8x8xf32>
    %cst_124 = arith.constant dense<0.000000e+00> : vector<1xf32>
    %366 = vector.multi_reduction <add>, %365, %cst_124 [1, 2] : vector<1x8x8xf32> to vector<1xf32>
    %367 = vector.shape_cast %366 : vector<1xf32> to vector<1x1x1xf32>
    %368 = vector.extract %367[0, 0, 0] : f32 from vector<1x1x1xf32>
    %cst_125 = arith.constant 6.400000e+01 : f32
    %369 = arith.divf %368, %cst_125 : f32
    %cst_126 = arith.constant 0.000000e+00 : f32
    %370 = arith.cmpf ogt, %369, %cst_126 : f32
    %cst_127 = arith.constant 0.000000e+00 : f32
    %371 = arith.select %370, %369, %cst_127 : f32
    %cst_128 = arith.constant 9.99999993E-9 : f32
    %372 = arith.addf %371, %cst_128 : f32
    %373 = math.sqrt %372 : f32
    %374 = arith.mulf %353, %353 : vector<8x8xf32>
    %375 = vector.shape_cast %374 : vector<8x8xf32> to vector<1x8x8xf32>
    %cst_129 = arith.constant dense<0.000000e+00> : vector<1xf32>
    %376 = vector.multi_reduction <add>, %375, %cst_129 [1, 2] : vector<1x8x8xf32> to vector<1xf32>
    %377 = vector.shape_cast %376 : vector<1xf32> to vector<1x1x1xf32>
    %378 = vector.extract %377[0, 0, 0] : f32 from vector<1x1x1xf32>
    %cst_130 = arith.constant 6.400000e+01 : f32
    %379 = arith.divf %378, %cst_130 : f32
    %cst_131 = arith.constant 0.000000e+00 : f32
    %380 = arith.cmpf ogt, %379, %cst_131 : f32
    %cst_132 = arith.constant 0.000000e+00 : f32
    %381 = arith.select %380, %379, %cst_132 : f32
    %cst_133 = arith.constant 9.99999993E-9 : f32
    %382 = arith.addf %381, %cst_133 : f32
    %383 = math.sqrt %382 : f32
    %384 = arith.mulf %373, %383 : f32
    %cst_134 = arith.constant 0.000000e+00 : f32
    %385 = arith.cmpf ogt, %384, %cst_134 : f32
    %cst_135 = arith.constant 0.000000e+00 : f32
    %386 = arith.select %385, %384, %cst_135 : f32
    %387 = math.sqrt %386 : f32
    %cst_136 = arith.constant 1.000000e-10 : f32
    %388 = arith.addf %387, %cst_136 : f32
    %389 = arith.divf %363, %388 : f32
    %390 = arith.mulf %21, %24 : vector<8x32xf32>
    %391 = arith.mulf %277, %24 : vector<8x32xf32>
    %392 = arith.mulf %22, %24 : vector<8x32xf32>
    %393 = tpu.concatenate %390, %391, %392 in 0 : vector<8x32xf32>, vector<8x32xf32>, vector<8x32xf32> -> vector<24x32xf32>
    %c0_137 = arith.constant 0 : index
    %c0_138 = arith.constant 0 : index
    %394 = vector.load %arg17[%c0_137, %c0_138] : memref<32x8xf32, #tpu.memory_space<vmem>>, vector<32x8xf32>
    %cst_139 = arith.constant dense<0.000000e+00> : vector<24x8xf32>
    %395 = tpu.matmul %393, %394, %cst_139 {dimension_numbers = #tpu.dot_dimension_numbers<[1], [0], [0], [1], [0, 0, 1, 1], [], []>} : vector<24x32xf32>, vector<32x8xf32>, vector<24x8xf32> -> vector<24x8xf32>
    %c0_140 = arith.constant 0 : index
    %c0_141 = arith.constant 0 : index
    %396 = vector.load %arg18[%c0_140, %c0_141] : memref<1x8xf32, #tpu.memory_space<vmem>>, vector<1x8xf32>
    %397 = vector.broadcast %396 : vector<1x8xf32> to vector<24x8xf32>
    %398 = arith.addf %395, %397 : vector<24x8xf32>
    %cst_142 = arith.constant 0.000000e+00 : f32
    %399 = vector.broadcast %cst_142 : f32 to vector<24x8xf32>
    %400 = arith.maximumf %398, %399 : vector<24x8xf32>
    %c0_143 = arith.constant 0 : index
    %c0_144 = arith.constant 0 : index
    %401 = vector.load %arg19[%c0_143, %c0_144] : memref<8x1xf32, #tpu.memory_space<vmem>>, vector<8x1xf32>
    %cst_145 = arith.constant dense<0.000000e+00> : vector<24x1xf32>
    %402 = tpu.matmul %400, %401, %cst_145 {dimension_numbers = #tpu.dot_dimension_numbers<[1], [0], [0], [1], [0, 0, 1, 1], [], []>} : vector<24x8xf32>, vector<8x1xf32>, vector<24x1xf32> -> vector<24x1xf32>
    %c0_146 = arith.constant 0 : index
    %c0_147 = arith.constant 0 : index
    %403 = vector.load %arg20[%c0_146, %c0_147] : memref<1x1xf32, #tpu.memory_space<vmem>>, vector<1x1xf32>
    %404 = vector.broadcast %403 : vector<1x1xf32> to vector<24x1xf32>
    %405 = arith.addf %402, %404 : vector<24x1xf32>
    %406 = vector.extract_strided_slice %405 {offsets = [0, 0], sizes = [8, 1], strides = [1, 1]} : vector<24x1xf32> to vector<8x1xf32>
    %407 = vector.extract_strided_slice %405 {offsets = [8, 0], sizes = [8, 1], strides = [1, 1]} : vector<24x1xf32> to vector<8x1xf32>
    %408 = arith.addf %406, %407 : vector<8x1xf32>
    %409 = vector.extract_strided_slice %405 {offsets = [16, 0], sizes = [8, 1], strides = [1, 1]} : vector<24x1xf32> to vector<8x1xf32>
    %410 = arith.addf %408, %409 : vector<8x1xf32>
    %cst_148 = arith.constant 3.000000e+00 : f32
    %411 = vector.broadcast %cst_148 : f32 to vector<8x1xf32>
    %412 = arith.divf %410, %411 : vector<8x1xf32>
    %413 = arith.negf %412 : vector<8x1xf32>
    %414 = math.exp %413 : vector<8x1xf32>
    %cst_149 = arith.constant 1.000000e+00 : f32
    %415 = vector.broadcast %cst_149 : f32 to vector<8x1xf32>
    %416 = arith.addf %415, %414 : vector<8x1xf32>
    %417 = arith.divf %415, %416 : vector<8x1xf32>
    %418 = tpu.iota {dimensions = array<i32: 1>} : vector<8x2xi32>
    %c0_i32 = arith.constant 0 : i32
    %419 = vector.broadcast %c0_i32 : i32 to vector<8x2xi32>
    %420 = arith.cmpi eq, %418, %419 : vector<8x2xi32>
    %421 = vector.shape_cast %417 : vector<8x1xf32> to vector<8x1xf32>
    %422 = vector.broadcast %421 : vector<8x1xf32> to vector<8x2xf32>
    %423 = vector.broadcast %389 : f32 to vector<8x2xf32>
    %424 = arith.select %420, %422, %423 : vector<8x2xi1>, vector<8x2xf32>
    %c0_150 = arith.constant 0 : index
    %c0_151 = arith.constant 0 : index
    %425 = vector.load %arg21[%c0_150, %c0_151] : memref<8x2xf32, #tpu.memory_space<vmem>>, vector<8x2xf32>
    tpu.vector_store %arg21[%c0_150, %c0_151], %424 {strides = array<i32>} : memref<8x2xf32, #tpu.memory_space<vmem>>, vector<8x2xf32>,
    return
  }
  func.func @transform_0(%arg0: i32) -> (i32, i32) {
    %c0_i32 = arith.constant 0 : i32
    %c0_i32_0 = arith.constant 0 : i32
    %c0_i32_1 = arith.constant 0 : i32
    return %c0_i32, %c0_i32_0 : i32, i32
  }
  func.func @transform_1(%arg0: i32) -> (i32, i32) {
    %c0_i32 = arith.constant 0 : i32
    %c0_i32_0 = arith.constant 0 : i32
    %c0_i32_1 = arith.constant 0 : i32
    return %c0_i32, %c0_i32_0 : i32, i32
  }
  func.func @transform_2(%arg0: i32) -> (i32, i32) {
    %c0_i32 = arith.constant 0 : i32
    %c0_i32_0 = arith.constant 0 : i32
    %c0_i32_1 = arith.constant 0 : i32
    return %c0_i32, %c0_i32_0 : i32, i32
  }
  func.func @transform_3(%arg0: i32) -> (i32, i32) {
    %c0_i32 = arith.constant 0 : i32
    %c0_i32_0 = arith.constant 0 : i32
    %c0_i32_1 = arith.constant 0 : i32
    return %c0_i32, %c0_i32_0 : i32, i32
  }
  func.func @transform_4(%arg0: i32) -> (i32, i32) {
    %c0_i32 = arith.constant 0 : i32
    %c0_i32_0 = arith.constant 0 : i32
    %c0_i32_1 = arith.constant 0 : i32
    return %c0_i32, %c0_i32_0 : i32, i32
  }
  func.func @transform_5(%arg0: i32) -> (i32, i32) {
    %c0_i32 = arith.constant 0 : i32
    %c0_i32_0 = arith.constant 0 : i32
    %c0_i32_1 = arith.constant 0 : i32
    return %c0_i32, %c0_i32_0 : i32, i32
  }
  func.func @transform_6(%arg0: i32) -> (i32, i32) {
    %c0_i32 = arith.constant 0 : i32
    %c0_i32_0 = arith.constant 0 : i32
    %c0_i32_1 = arith.constant 0 : i32
    return %c0_i32, %c0_i32_0 : i32, i32
  }
  func.func @transform_7(%arg0: i32) -> (i32, i32) {
    %c0_i32 = arith.constant 0 : i32
    %c0_i32_0 = arith.constant 0 : i32
    %c0_i32_1 = arith.constant 0 : i32
    return %c0_i32, %c0_i32_0 : i32, i32
  }
  func.func @transform_8(%arg0: i32) -> (i32, i32) {
    %c0_i32 = arith.constant 0 : i32
    %c0_i32_0 = arith.constant 0 : i32
    %c0_i32_1 = arith.constant 0 : i32
    return %c0_i32, %c0_i32_0 : i32, i32
  }
  func.func @transform_9(%arg0: i32) -> (i32, i32) {
    %c0_i32 = arith.constant 0 : i32
    %c0_i32_0 = arith.constant 0 : i32
    %c0_i32_1 = arith.constant 0 : i32
    return %c0_i32, %c0_i32_0 : i32, i32
  }
  func.func @transform_10(%arg0: i32) -> (i32, i32) {
    %c0_i32 = arith.constant 0 : i32
    %c0_i32_0 = arith.constant 0 : i32
    %c0_i32_1 = arith.constant 0 : i32
    return %c0_i32, %c0_i32_0 : i32, i32
  }
  func.func @transform_11(%arg0: i32) -> (i32, i32) {
    %c0_i32 = arith.constant 0 : i32
    %c0_i32_0 = arith.constant 0 : i32
    %c0_i32_1 = arith.constant 0 : i32
    return %c0_i32, %c0_i32_0 : i32, i32
  }
  func.func @transform_12(%arg0: i32) -> (i32, i32) {
    %c0_i32 = arith.constant 0 : i32
    %c0_i32_0 = arith.constant 0 : i32
    %c0_i32_1 = arith.constant 0 : i32
    return %c0_i32, %c0_i32_0 : i32, i32
  }
  func.func @transform_13(%arg0: i32) -> (i32, i32) {
    %c0_i32 = arith.constant 0 : i32
    %c0_i32_0 = arith.constant 0 : i32
    %c0_i32_1 = arith.constant 0 : i32
    return %c0_i32, %c0_i32_0 : i32, i32
  }
  func.func @transform_14(%arg0: i32) -> (i32, i32) {
    %c0_i32 = arith.constant 0 : i32
    %c0_i32_0 = arith.constant 0 : i32
    %c0_i32_1 = arith.constant 0 : i32
    return %c0_i32, %c0_i32_0 : i32, i32
  }
  func.func @transform_15(%arg0: i32) -> (i32, i32) {
    %c0_i32 = arith.constant 0 : i32
    %c0_i32_0 = arith.constant 0 : i32
    %c0_i32_1 = arith.constant 0 : i32
    return %c0_i32, %c0_i32_0 : i32, i32
  }
  func.func @transform_16(%arg0: i32) -> (i32, i32) {
    %c0_i32 = arith.constant 0 : i32
    %c0_i32_0 = arith.constant 0 : i32
    %c0_i32_1 = arith.constant 0 : i32
    return %c0_i32, %c0_i32_0 : i32, i32
  }
  func.func @transform_17(%arg0: i32) -> (i32, i32) {
    %c0_i32 = arith.constant 0 : i32
    %c0_i32_0 = arith.constant 0 : i32
    %c0_i32_1 = arith.constant 0 : i32
    return %c0_i32, %c0_i32_0 : i32, i32
  }
  func.func @transform_18(%arg0: i32) -> (i32, i32) {
    %c0_i32 = arith.constant 0 : i32
    %c0_i32_0 = arith.constant 0 : i32
    %c0_i32_1 = arith.constant 0 : i32
    return %c0_i32, %c0_i32_0 : i32, i32
  }
  func.func @transform_19(%arg0: i32) -> (i32, i32) {
    %c0_i32 = arith.constant 0 : i32
    %c0_i32_0 = arith.constant 0 : i32
    %c0_i32_1 = arith.constant 0 : i32
    return %c0_i32, %c0_i32_0 : i32, i32
  }
  func.func @transform_20(%arg0: i32) -> (i32, i32) {
    %c0_i32 = arith.constant 0 : i32
    %c0_i32_0 = arith.constant 0 : i32
    %c0_i32_1 = arith.constant 0 : i32
    return %c0_i32, %c0_i32_0 : i32, i32
  }
}

</mosaic_0001>

<llo_original>
// kernel: usr_forward.1
$region0: #{usr_forward.1}
  #allocation0 [shape = 'u32[]', space=smem, size = 0x4, offset = 0x4, fixed_abs, tag = 'smem constant byte address 0x4 - core index']
  #allocation1 [shape = 'u32[144,128]{1,0:T(1,128)}', space=vmem, size = 0x12000, scoped, tag = 'internal scratch']
  #allocation2 [shape = 'f32[1,1]{1,0:T(1,128)S(1)}', space=vmem, size = 0x200, scoped, tag = 'scoped memory for usr_forward.1']
  %s0 = inlined_call_operand.vmem [shape: f32[32,32], index: 0, kind: input, shape index: {}]
  %s1 = inlined_call_operand.vmem [shape: f32[32,32], index: 1, kind: input, shape index: {}]
  %s2 = inlined_call_operand.hbm [shape: f32[20,32], index: 2, kind: input, shape index: {}]
  %s3 = inlined_call_operand.vmem [shape: s32[8,1], index: 3, kind: input, shape index: {}]
  %s4 = inlined_call_operand.vmem [shape: s32[8,1], index: 4, kind: input, shape index: {}]
  %s5 = inlined_call_operand.vmem [shape: s32[64,1], index: 5, kind: input, shape index: {}]
  %s6 = inlined_call_operand.vmem [shape: f32[32,32], index: 6, kind: input, shape index: {}]
  %s7 = inlined_call_operand.vmem [shape: f32[32,32], index: 7, kind: input, shape index: {}]
  %s8 = inlined_call_operand.vmem [shape: f32[32,32], index: 8, kind: input, shape index: {}]
  %s9 = inlined_call_operand.vmem [shape: f32[32,32], index: 9, kind: input, shape index: {}]
  %s10 = inlined_call_operand.hbm [shape: f32[32,32], index: 10, kind: input, shape index: {}]
  %s11 = inlined_call_operand.hbm [shape: f32[32,32], index: 11, kind: input, shape index: {}]
  %s12 = inlined_call_operand.hbm [shape: f32[1,32], index: 12, kind: input, shape index: {}]
  %s13 = inlined_call_operand.hbm [shape: f32[1,32], index: 13, kind: input, shape index: {}]
  %s14 = inlined_call_operand.hbm [shape: f32[1,32], index: 14, kind: input, shape index: {}]
  %s15 = inlined_call_operand.hbm [shape: f32[1,32], index: 15, kind: input, shape index: {}]
  %s16 = inlined_call_operand.vmem [shape: f32[32,8], index: 16, kind: input, shape index: {}]
  %s17 = inlined_call_operand.vmem [shape: f32[1,8], index: 17, kind: input, shape index: {}]
  %s18 = inlined_call_operand.vmem [shape: f32[8,1], index: 18, kind: input, shape index: {}]
  %s19 = inlined_call_operand.<no memory space> [shape: f32[1,1], index: 19, kind: input, shape index: {}]
  %s20 = inlined_call_operand.vmem [shape: f32[8,2], index: 20, kind: output, shape index: {}]
  %s21 = sld [smem:[#allocation0]]
  $region118: #{usr_forward.1} parent=0
    _
  %s23 = ssub.s32 1, %s21
  %s24 = scalar_select 0, %s23, %s21
  %v25 = vstv %s19
  %26 = vst [vmem:[#allocation2] sm:$0x1] %v25
  $region1: #{usr_forward.1} parent=0
    #allocation3 [shape = 'u8[12288]{0}', space=vmem, size = 0x3000, scoped, tag = 'input window, operand 2, single buffered']
    #allocation4 [shape = 's32[1]{0}', space=sflag, size = 0x4, scoped, tag = 'scoped memory for usr_forward.1']
    #allocation5 [shape = 'u8[16384]{0}', space=vmem, size = 0x4000, scoped, tag = 'input window, operand 10, single buffered']
    #allocation6 [shape = 's32[1]{0}', space=sflag, size = 0x4, scoped, tag = 'scoped memory for usr_forward.1']
    #allocation7 [shape = 'u8[16384]{0}', space=vmem, size = 0x4000, scoped, tag = 'input window, operand 11, single buffered']
    #allocation8 [shape = 'u8[512]{0}', space=vmem, size = 0x400, scoped, tag = 'input window, operand 12, single buffered']
    #allocation9 [shape = 's32[1]{0}', space=sflag, size = 0x4, scoped, tag = 'scoped memory for usr_forward.1']
    #allocation10 [shape = 'u8[512]{0}', space=vmem, size = 0x400, scoped, tag = 'input window, operand 13, single buffered']
    #allocation11 [shape = 'u8[512]{0}', space=vmem, size = 0x400, scoped, tag = 'input window, operand 14, single buffered']
    #allocation12 [shape = 's32[1]{0}', space=sflag, size = 0x4, scoped, tag = 'scoped memory for usr_forward.1']
    #allocation13 [shape = 'u8[512]{0}', space=vmem, size = 0x400, scoped, tag = 'input window, operand 15, single buffered']
    %27 = vsyncpa [#allocation4], 0
    %28 = vsyncpa [#allocation6], 0
    %29 = vsyncpa [#allocation9], 0
    %30 = vsyncpa [#allocation12], 0
    // Predicated region
    $region2: #{usr_forward.1} parent=1 // pred_check
      _
    $region3: #{usr_forward.1} parent=1 // pred_check_branch
      %32 = sbr.rel (0) target = $region5
    $region4: #{usr_forward.1} parent=1 // pred_region
      _
    $region5: #{usr_forward.1} parent=1 // pred_fallthru
      _
    // Predicated region
    $region6: #{usr_forward.1} parent=1 // pred_check
      _
    $region7: #{usr_forward.1} parent=1 // pred_check_branch
      %34 = sbr.rel (0) target = $region9
    $region8: #{usr_forward.1} parent=1 // pred_region
      _
    $region9: #{usr_forward.1} parent=1 // pred_fallthru
      _
    // Predicated region
    $region10: #{usr_forward.1} parent=1 // pred_check
      _
    $region11: #{usr_forward.1} parent=1 // pred_check_branch
      %36 = sbr.rel (0) target = $region13
    $region12: #{usr_forward.1} parent=1 // pred_region
      %s38 = ssub.s32 384, 384
      %39 = vsyncadd [#allocation4], %s38
      %s40 = sshll.u32 [#allocation3], 4
      %s41 = int_to_ptr.vmem [resolvable:$true] %s40
      %46 = dma.hbm_to_vmem [thread:$0]  %s2, 384, %s41, [#allocation4], 128, 128, 8
    $region13: #{usr_forward.1} parent=1 // pred_fallthru
      _
    // Predicated region
    $region14: #{usr_forward.1} parent=1 // pred_check
      _
    $region15: #{usr_forward.1} parent=1 // pred_check_branch
      %48 = sbr.rel (0) target = $region17
    $region16: #{usr_forward.1} parent=1 // pred_region
      _
    $region17: #{usr_forward.1} parent=1 // pred_fallthru
      _
    // Predicated region
    $region18: #{usr_forward.1} parent=1 // pred_check
      _
    $region19: #{usr_forward.1} parent=1 // pred_check_branch
      %50 = sbr.rel (0) target = $region21
    $region20: #{usr_forward.1} parent=1 // pred_region
      _
    $region21: #{usr_forward.1} parent=1 // pred_fallthru
      _
    // Predicated region
    $region22: #{usr_forward.1} parent=1 // pred_check
      _
    $region23: #{usr_forward.1} parent=1 // pred_check_branch
      %52 = sbr.rel (0) target = $region25
    $region24: #{usr_forward.1} parent=1 // pred_region
      _
    $region25: #{usr_forward.1} parent=1 // pred_fallthru
      _
    // Predicated region
    $region26: #{usr_forward.1} parent=1 // pred_check
      _
    $region27: #{usr_forward.1} parent=1 // pred_check_branch
      %54 = sbr.rel (0) target = $region29
    $region28: #{usr_forward.1} parent=1 // pred_region
      _
    $region29: #{usr_forward.1} parent=1 // pred_fallthru
      _
    // Predicated region
    $region30: #{usr_forward.1} parent=1 // pred_check
      _
    $region31: #{usr_forward.1} parent=1 // pred_check_branch
      %56 = sbr.rel (0) target = $region33
    $region32: #{usr_forward.1} parent=1 // pred_region
      _
    $region33: #{usr_forward.1} parent=1 // pred_fallthru
      _
    // Predicated region
    $region34: #{usr_forward.1} parent=1 // pred_check
      _
    $region35: #{usr_forward.1} parent=1 // pred_check_branch
      %58 = sbr.rel (0) target = $region37
    $region36: #{usr_forward.1} parent=1 // pred_region
      _
    $region37: #{usr_forward.1} parent=1 // pred_fallthru
      _
    // Predicated region
    $region38: #{usr_forward.1} parent=1 // pred_check
      _
    $region39: #{usr_forward.1} parent=1 // pred_check_branch
      %60 = sbr.rel (0) target = $region41
    $region40: #{usr_forward.1} parent=1 // pred_region
      _
    $region41: #{usr_forward.1} parent=1 // pred_fallthru
      _
    // Predicated region
    $region42: #{usr_forward.1} parent=1 // pred_check
      _
    $region43: #{usr_forward.1} parent=1 // pred_check_branch
      %62 = sbr.rel (0) target = $region45
    $region44: #{usr_forward.1} parent=1 // pred_region
      %s64 = ssub.s32 512, 512
      %65 = vsyncadd [#allocation6], %s64
      %s66 = sshll.u32 [#allocation5], 4
      %s67 = int_to_ptr.vmem [resolvable:$true] %s66
      %72 = dma.hbm_to_vmem [thread:$0]  %s10, 512, %s67, [#allocation6], 128, 128, 8
    $region45: #{usr_forward.1} parent=1 // pred_fallthru
      _
    // Predicated region
    $region46: #{usr_forward.1} parent=1 // pred_check
      _
    $region47: #{usr_forward.1} parent=1 // pred_check_branch
      %74 = sbr.rel (0) target = $region49
    $region48: #{usr_forward.1} parent=1 // pred_region
      %s76 = ssub.s32 512, 512
      %77 = vsyncadd [#allocation6], %s76
      %s78 = sshll.u32 [#allocation7], 4
      %s79 = int_to_ptr.vmem [resolvable:$true] %s78
      %84 = dma.hbm_to_vmem [thread:$0]  %s11, 512, %s79, [#allocation6], 128, 128, 8
    $region49: #{usr_forward.1} parent=1 // pred_fallthru
      _
    // Predicated region
    $region50: #{usr_forward.1} parent=1 // pred_check
      _
    $region51: #{usr_forward.1} parent=1 // pred_check_branch
      %86 = sbr.rel (0) target = $region53
    $region52: #{usr_forward.1} parent=1 // pred_region
      %s88 = ssub.s32 16, 16
      %89 = vsyncadd [#allocation9], %s88
      %s91 = sshll.u32 [#allocation8], 4
      %s92 = int_to_ptr.vmem [resolvable:$true] %s91
      %94 = dma.hbm_to_vmem [thread:$0]  %s12, 16, %s92, [#allocation9]
    $region53: #{usr_forward.1} parent=1 // pred_fallthru
      _
    // Predicated region
    $region54: #{usr_forward.1} parent=1 // pred_check
      _
    $region55: #{usr_forward.1} parent=1 // pred_check_branch
      %96 = sbr.rel (0) target = $region57
    $region56: #{usr_forward.1} parent=1 // pred_region
      %s98 = ssub.s32 16, 16
      %99 = vsyncadd [#allocation9], %s98
      %s101 = sshll.u32 [#allocation10], 4
      %s102 = int_to_ptr.vmem [resolvable:$true] %s101
      %104 = dma.hbm_to_vmem [thread:$0]  %s13, 16, %s102, [#allocation9]
    $region57: #{usr_forward.1} parent=1 // pred_fallthru
      _
    // Predicated region
    $region58: #{usr_forward.1} parent=1 // pred_check
      _
    $region59: #{usr_forward.1} parent=1 // pred_check_branch
      %106 = sbr.rel (0) target = $region61
    $region60: #{usr_forward.1} parent=1 // pred_region
      %s108 = ssub.s32 16, 16
      %109 = vsyncadd [#allocation12], %s108
      %s111 = sshll.u32 [#allocation11], 4
      %s112 = int_to_ptr.vmem [resolvable:$true] %s111
      %114 = dma.hbm_to_vmem [thread:$0]  %s14, 16, %s112, [#allocation12]
    $region61: #{usr_forward.1} parent=1 // pred_fallthru
      _
    // Predicated region
    $region62: #{usr_forward.1} parent=1 // pred_check
      _
    $region63: #{usr_forward.1} parent=1 // pred_check_branch
      %116 = sbr.rel (0) target = $region65
    $region64: #{usr_forward.1} parent=1 // pred_region
      %s118 = ssub.s32 16, 16
      %119 = vsyncadd [#allocation12], %s118
      %s121 = sshll.u32 [#allocation13], 4
      %s122 = int_to_ptr.vmem [resolvable:$true] %s121
      %124 = dma.hbm_to_vmem [thread:$0]  %s15, 16, %s122, [#allocation12]
    $region65: #{usr_forward.1} parent=1 // pred_fallthru
      _
    // Predicated region
    $region66: #{usr_forward.1} parent=1 // pred_check
      _
    $region67: #{usr_forward.1} parent=1 // pred_check_branch
      %126 = sbr.rel (0) target = $region69
    $region68: #{usr_forward.1} parent=1 // pred_region
      _
    $region69: #{usr_forward.1} parent=1 // pred_fallthru
      _
    // Predicated region
    $region70: #{usr_forward.1} parent=1 // pred_check
      _
    $region71: #{usr_forward.1} parent=1 // pred_check_branch
      %128 = sbr.rel (0) target = $region73
    $region72: #{usr_forward.1} parent=1 // pred_region
      _
    $region73: #{usr_forward.1} parent=1 // pred_fallthru
      _
    // Predicated region
    $region74: #{usr_forward.1} parent=1 // pred_check
      _
    $region75: #{usr_forward.1} parent=1 // pred_check_branch
      %130 = sbr.rel (0) target = $region77
    $region76: #{usr_forward.1} parent=1 // pred_region
      _
    $region77: #{usr_forward.1} parent=1 // pred_fallthru
      _
    // Predicated region
    $region78: #{usr_forward.1} parent=1 // pred_check
      _
    $region79: #{usr_forward.1} parent=1 // pred_check_branch
      %132 = sbr.rel (0) target = $region81
    $region80: #{usr_forward.1} parent=1 // pred_region
      _
    $region81: #{usr_forward.1} parent=1 // pred_fallthru
      _
    // Predicated region
    $region82: #{usr_forward.1} parent=1 // pred_check
      _
    $region83: #{usr_forward.1} parent=1 // pred_check_branch
      %134 = sbr.rel (0) target = $region85
    $region84: #{usr_forward.1} parent=1 // pred_region
      %135 = dma.done [#allocation4], 384
    $region85: #{usr_forward.1} parent=1 // pred_fallthru
      _
    // Predicated region
    $region86: #{usr_forward.1} parent=1 // pred_check
      _
    $region87: #{usr_forward.1} parent=1 // pred_check_branch
      %137 = sbr.rel (0) target = $region89
    $region88: #{usr_forward.1} parent=1 // pred_region
      %138 = dma.done [#allocation6], 512
    $region89: #{usr_forward.1} parent=1 // pred_fallthru
      _
    // Predicated region
    $region90: #{usr_forward.1} parent=1 // pred_check
      _
    $region91: #{usr_forward.1} parent=1 // pred_check_branch
      %140 = sbr.rel (0) target = $region93
    $region92: #{usr_forward.1} parent=1 // pred_region
      %141 = dma.done [#allocation6], 512
    $region93: #{usr_forward.1} parent=1 // pred_fallthru
      _
    // Predicated region
    $region94: #{usr_forward.1} parent=1 // pred_check
      _
    $region95: #{usr_forward.1} parent=1 // pred_check_branch
      %143 = sbr.rel (0) target = $region97
    $region96: #{usr_forward.1} parent=1 // pred_region
      %144 = dma.done [#allocation9], 16
    $region97: #{usr_forward.1} parent=1 // pred_fallthru
      _
    // Predicated region
    $region98: #{usr_forward.1} parent=1 // pred_check
      _
    $region99: #{usr_forward.1} parent=1 // pred_check_branch
      %146 = sbr.rel (0) target = $region101
    $region100: #{usr_forward.1} parent=1 // pred_region
      %147 = dma.done [#allocation9], 16
    $region101: #{usr_forward.1} parent=1 // pred_fallthru
      _
    // Predicated region
    $region102: #{usr_forward.1} parent=1 // pred_check
      _
    $region103: #{usr_forward.1} parent=1 // pred_check_branch
      %149 = sbr.rel (0) target = $region105
    $region104: #{usr_forward.1} parent=1 // pred_region
      %150 = dma.done [#allocation12], 16
    $region105: #{usr_forward.1} parent=1 // pred_fallthru
      _
    // Predicated region
    $region106: #{usr_forward.1} parent=1 // pred_check
      _
    $region107: #{usr_forward.1} parent=1 // pred_check_branch
      %152 = sbr.rel (0) target = $region109
    $region108: #{usr_forward.1} parent=1 // pred_region
      %153 = dma.done [#allocation12], 16
    $region109: #{usr_forward.1} parent=1 // pred_fallthru
      _
    %v154 = vld [vmem:[%s0] sm:$0xff]
    %v155 = vld [vmem:[%s0 + $0x8] sm:$0xff]
    %v156 = vld [vmem:[%s0 + $0x10] sm:$0xff]
    %v157 = vld [vmem:[%s0 + $0x18] sm:$0xff]
    %v158 = vld [vmem:[%s1] sm:$0xff]
    %v159 = vld [vmem:[%s1 + $0x8] sm:$0xff]
    %v160 = vld [vmem:[%s1 + $0x10] sm:$0xff]
    %v161 = vld [vmem:[%s1 + $0x18] sm:$0xff]
    %vm162 = vcmask 261120
    %v164 = vsel %vm162, %v154, 0
    %v167 = vsel %vm162, %v155, 0
    %v170 = vsel %vm162, %v156, 0
    %v173 = vsel %vm162, %v157, 0
    %175 = vmatprep.subr.mxu0 0.0
    %176 = vmatpush1.msra.mxu0 %v158
    %177 = vmatprep.subr.mxu0 0.0
    %178 = vmatpush1.msra.mxu0 %v159
    %179 = vmatprep.subr.mxu0 0.0
    %180 = vmatpush1.msra.mxu0 %v160
    %181 = vmatprep.subr.mxu0 0.0
    %182 = vmatpush1.msra.mxu0 %v161
    %183 = vmatprep.subr.mxu0 0.0
    %184 = vmatpush1.msra.mxu0 0.0
    %185 = vmatprep.subr.mxu0 0.0
    %186 = vmatpush1.msra.mxu0 0.0
    %187 = vmatprep.subr.mxu0 0.0
    %188 = vmatpush1.msra.mxu0 0.0
    %189 = vmatprep.subr.mxu0 0.0
    %190 = vmatpush1.msra.mxu0 0.0
    %191 = vmatprep.subr.mxu0 0.0
    %192 = vmatpush1.msra.mxu0 0.0
    %193 = vmatprep.subr.mxu0 0.0
    %194 = vmatpush1.msra.mxu0 0.0
    %195 = vmatprep.subr.mxu0 0.0
    %196 = vmatpush1.msra.mxu0 0.0
    %197 = vmatprep.subr.mxu0 0.0
    %198 = vmatpush1.msra.mxu0 0.0
    %199 = vmatprep.subr.mxu0 0.0
    %200 = vmatpush1.msra.mxu0 0.0
    %201 = vmatprep.subr.mxu0 0.0
    %202 = vmatpush1.msra.mxu0 0.0
    %203 = vmatprep.subr.mxu0 0.0
    %204 = vmatpush1.msra.mxu0 0.0
    %205 = vmatprep.subr.mxu0 0.0
    %206 = vmatpush1.msra.mxu0 0.0
    %207 = vmatprep.subr.mxu0 0.0
    %208 = vmatpush1.msra.mxu0 0.0
    %209 = vmatprep.subr.mxu0 0.0
    %210 = vmatpush1.msra.mxu0 0.0
    %211 = vmatprep.subr.mxu0 0.0
    %212 = vmatpush1.msra.mxu0 0.0
    %213 = vmatprep.subr.mxu0 0.0
    %214 = vmatpush1.msra.mxu0 0.0
    %215 = vmatprep.subr.mxu0 0.0
    %216 = vmatpush1.msra.mxu0 0.0
    %217 = vmatprep.subr.mxu0 0.0
    %218 = vmatpush1.msra.mxu0 0.0
    %219 = vmatprep.subr.mxu0 0.0
    %220 = vmatpush1.msra.mxu0 0.0
    %221 = vmatprep.subr.mxu0 0.0
    %222 = vmatpush1.msra.mxu0 0.0
    %223 = vmatprep.subr.mxu0 0.0
    %224 = vmatpush1.msra.mxu0 0.0
    %225 = vmatprep.subr.mxu0 0.0
    %226 = vmatpush1.msra.mxu0 0.0
    %227 = vmatprep.subr.mxu0 0.0
    %228 = vmatpush1.msra.mxu0 0.0
    %229 = vmatprep.subr.mxu0 0.0
    %230 = vmatpush1.msra.mxu0 0.0
    %231 = vmatprep.subr.mxu0 0.0
    %232 = vmatpush1.msra.mxu0 0.0
    %233 = vmatprep.subr.mxu0 0.0
    %234 = vmatpush1.msra.mxu0 0.0
    %235 = vmatprep.subr.mxu0 0.0
    %236 = vmatpush1.msra.mxu0 0.0
    %237 = vmatprep.subr.mxu0 0.0
    %238 = vmatpush1.msra.mxu0 0.0
    %239 = vmatprep.mubr.f32.mxu0 0.0
    %240 = vmatmul.mubr.f32.gmra.mrb[0].mxu0 %v164
    %v241 = vpop.f32.mrb[0].mxu0
    %v242 = vadd.f32 0.0, %v241
    %v243 = vpop.f32.mrb[0].mxu0
    %244 = vmatprep.mubr.f32.mxu0 0.0
    %245 = vmatmul.mubr.f32.gmra.mrb[0].mxu0 %v167
    %v246 = vpop.f32.mrb[0].mxu0
    %v247 = vadd.f32 0.0, %v246
    %v248 = vpop.f32.mrb[0].mxu0
    %249 = vmatprep.mubr.f32.mxu0 0.0
    %250 = vmatmul.mubr.f32.gmra.mrb[0].mxu0 %v170
    %v251 = vpop.f32.mrb[0].mxu0
    %v252 = vadd.f32 0.0, %v251
    %v253 = vpop.f32.mrb[0].mxu0
    %254 = vmatprep.mubr.f32.mxu0 0.0
    %255 = vmatmul.mubr.f32.gmra.mrb[0].mxu0 %v173
    %v256 = vpop.f32.mrb[0].mxu0
    %v257 = vadd.f32 0.0, %v256
    %v258 = vpop.f32.mrb[0].mxu0
    %259 = vdwg.mxu0
    %v260 = vadd.f32 %v158, %v242
    %v261 = vadd.f32 %v159, %v247
    %v262 = vadd.f32 %v160, %v252
    %v263 = vadd.f32 %v161, %v257
    %264 = vmatprep.subr.mxu0 0.0
    %265 = vmatpush1.msra.mxu0 %v242
    %266 = vmatprep.subr.mxu0 0.0
    %267 = vmatpush1.msra.mxu0 %v247
    %268 = vmatprep.subr.mxu0 0.0
    %269 = vmatpush1.msra.mxu0 %v252
    %270 = vmatprep.subr.mxu0 0.0
    %271 = vmatpush1.msra.mxu0 %v257
    %272 = vmatprep.subr.mxu0 0.0
    %273 = vmatpush1.msra.mxu0 0.0
    %274 = vmatprep.subr.mxu0 0.0
    %275 = vmatpush1.msra.mxu0 0.0
    %276 = vmatprep.subr.mxu0 0.0
    %277 = vmatpush1.msra.mxu0 0.0
    %278 = vmatprep.subr.mxu0 0.0
    %279 = vmatpush1.msra.mxu0 0.0
    %280 = vmatprep.subr.mxu0 0.0
    %281 = vmatpush1.msra.mxu0 0.0
    %282 = vmatprep.subr.mxu0 0.0
    %283 = vmatpush1.msra.mxu0 0.0
    %284 = vmatprep.subr.mxu0 0.0
    %285 = vmatpush1.msra.mxu0 0.0
    %286 = vmatprep.subr.mxu0 0.0
    %287 = vmatpush1.msra.mxu0 0.0
    %288 = vmatprep.subr.mxu0 0.0
    %289 = vmatpush1.msra.mxu0 0.0
    %290 = vmatprep.subr.mxu0 0.0
    %291 = vmatpush1.msra.mxu0 0.0
    %292 = vmatprep.subr.mxu0 0.0
    %293 = vmatpush1.msra.mxu0 0.0
    %294 = vmatprep.subr.mxu0 0.0
    %295 = vmatpush1.msra.mxu0 0.0
    %296 = vmatprep.subr.mxu0 0.0
    %297 = vmatpush1.msra.mxu0 0.0
    %298 = vmatprep.subr.mxu0 0.0
    %299 = vmatpush1.msra.mxu0 0.0
    %300 = vmatprep.subr.mxu0 0.0
    %301 = vmatpush1.msra.mxu0 0.0
    %302 = vmatprep.subr.mxu0 0.0
    %303 = vmatpush1.msra.mxu0 0.0
    %304 = vmatprep.subr.mxu0 0.0
    %305 = vmatpush1.msra.mxu0 0.0
    %306 = vmatprep.subr.mxu0 0.0
    %307 = vmatpush1.msra.mxu0 0.0
    %308 = vmatprep.subr.mxu0 0.0
    %309 = vmatpush1.msra.mxu0 0.0
    %310 = vmatprep.subr.mxu0 0.0
    %311 = vmatpush1.msra.mxu0 0.0
    %312 = vmatprep.subr.mxu0 0.0
    %313 = vmatpush1.msra.mxu0 0.0
    %314 = vmatprep.subr.mxu0 0.0
    %315 = vmatpush1.msra.mxu0 0.0
    %316 = vmatprep.subr.mxu0 0.0
    %317 = vmatpush1.msra.mxu0 0.0
    %318 = vmatprep.subr.mxu0 0.0
    %319 = vmatpush1.msra.mxu0 0.0
    %320 = vmatprep.subr.mxu0 0.0
    %321 = vmatpush1.msra.mxu0 0.0
    %322 = vmatprep.subr.mxu0 0.0
    %323 = vmatpush1.msra.mxu0 0.0
    %324 = vmatprep.subr.mxu0 0.0
    %325 = vmatpush1.msra.mxu0 0.0
    %326 = vmatprep.subr.mxu0 0.0
    %327 = vmatpush1.msra.mxu0 0.0
    %328 = vmatprep.mubr.f32.mxu0 0.0
    %329 = vmatmul.mubr.f32.gmra.mrb[0].mxu0 %v164
    %v330 = vpop.f32.mrb[0].mxu0
    %v331 = vadd.f32 0.0, %v330
    %v332 = vpop.f32.mrb[0].mxu0
    %333 = vmatprep.mubr.f32.mxu0 0.0
    %334 = vmatmul.mubr.f32.gmra.mrb[0].mxu0 %v167
    %v335 = vpop.f32.mrb[0].mxu0
    %v336 = vadd.f32 0.0, %v335
    %v337 = vpop.f32.mrb[0].mxu0
    %338 = vmatprep.mubr.f32.mxu0 0.0
    %339 = vmatmul.mubr.f32.gmra.mrb[0].mxu0 %v170
    %v340 = vpop.f32.mrb[0].mxu0
    %v341 = vadd.f32 0.0, %v340
    %v342 = vpop.f32.mrb[0].mxu0
    %343 = vmatprep.mubr.f32.mxu0 0.0
    %344 = vmatmul.mubr.f32.gmra.mrb[0].mxu0 %v173
    %v345 = vpop.f32.mrb[0].mxu0
    %v346 = vadd.f32 0.0, %v345
    %v347 = vpop.f32.mrb[0].mxu0
    %348 = vdwg.mxu0
    %v349 = vadd.f32 %v260, %v331
    %v350 = vadd.f32 %v261, %v336
    %v351 = vadd.f32 %v262, %v341
    %v352 = vadd.f32 %v263, %v346
    %v353 = vmul.f32 %v349, 0.33333334
    %v354 = vmul.f32 %v350, 0.33333334
    %v355 = vmul.f32 %v351, 0.33333334
    %v356 = vmul.f32 %v352, 0.33333334
    %v357 = vlaneseq
    %v358 = vand.u32 %v357, 127
    %v359 = vld [vmem:[%s3] sm:$0xff]
    %360 = vset.pattern.permute.xlu0 0
    %361 = vperm.xlu0 %360, %v359
    %v362 = vpop.permute.xlu0 %361
    %vm363 = vcmp.eq.s32.totalorder %v358, %v362
    %v364 = vsel %vm363, 1.0, 0.0
    %v365 = vld [vmem:[%s4] sm:$0xff]
    %366 = vset.pattern.permute.xlu0 0
    %367 = vperm.xlu0 %366, %v365
    %v368 = vpop.permute.xlu0 %367
    %vm369 = vcmp.eq.s32.totalorder %v358, %v368
    %v370 = vsel %vm369, 1.0, 0.0
    %v372 = vsel %vm162, %v364, 0
    %374 = vmatprep.subr.mxu0 0.0
    %375 = vmatpush1.msra.mxu0 %v353
    %376 = vmatprep.subr.mxu0 0.0
    %377 = vmatpush1.msra.mxu0 %v354
    %378 = vmatprep.subr.mxu0 0.0
    %379 = vmatpush1.msra.mxu0 %v355
    %380 = vmatprep.subr.mxu0 0.0
    %381 = vmatpush1.msra.mxu0 %v356
    %382 = vmatprep.subr.mxu0 0.0
    %383 = vmatpush1.msra.mxu0 0.0
    %384 = vmatprep.subr.mxu0 0.0
    %385 = vmatpush1.msra.mxu0 0.0
    %386 = vmatprep.subr.mxu0 0.0
    %387 = vmatpush1.msra.mxu0 0.0
    %388 = vmatprep.subr.mxu0 0.0
    %389 = vmatpush1.msra.mxu0 0.0
    %390 = vmatprep.subr.mxu0 0.0
    %391 = vmatpush1.msra.mxu0 0.0
    %392 = vmatprep.subr.mxu0 0.0
    %393 = vmatpush1.msra.mxu0 0.0
    %394 = vmatprep.subr.mxu0 0.0
    %395 = vmatpush1.msra.mxu0 0.0
    %396 = vmatprep.subr.mxu0 0.0
    %397 = vmatpush1.msra.mxu0 0.0
    %398 = vmatprep.subr.mxu0 0.0
    %399 = vmatpush1.msra.mxu0 0.0
    %400 = vmatprep.subr.mxu0 0.0
    %401 = vmatpush1.msra.mxu0 0.0
    %402 = vmatprep.subr.mxu0 0.0
    %403 = vmatpush1.msra.mxu0 0.0
    %404 = vmatprep.subr.mxu0 0.0
    %405 = vmatpush1.msra.mxu0 0.0
    %406 = vmatprep.subr.mxu0 0.0
    %407 = vmatpush1.msra.mxu0 0.0
    %408 = vmatprep.subr.mxu0 0.0
    %409 = vmatpush1.msra.mxu0 0.0
    %410 = vmatprep.subr.mxu0 0.0
    %411 = vmatpush1.msra.mxu0 0.0
    %412 = vmatprep.subr.mxu0 0.0
    %413 = vmatpush1.msra.mxu0 0.0
    %414 = vmatprep.subr.mxu0 0.0
    %415 = vmatpush1.msra.mxu0 0.0
    %416 = vmatprep.subr.mxu0 0.0
    %417 = vmatpush1.msra.mxu0 0.0
    %418 = vmatprep.subr.mxu0 0.0
    %419 = vmatpush1.msra.mxu0 0.0
    %420 = vmatprep.subr.mxu0 0.0
    %421 = vmatpush1.msra.mxu0 0.0
    %422 = vmatprep.subr.mxu0 0.0
    %423 = vmatpush1.msra.mxu0 0.0
    %424 = vmatprep.subr.mxu0 0.0
    %425 = vmatpush1.msra.mxu0 0.0
    %426 = vmatprep.subr.mxu0 0.0
    %427 = vmatpush1.msra.mxu0 0.0
    %428 = vmatprep.subr.mxu0 0.0
    %429 = vmatpush1.msra.mxu0 0.0
    %430 = vmatprep.subr.mxu0 0.0
    %431 = vmatpush1.msra.mxu0 0.0
    %432 = vmatprep.subr.mxu0 0.0
    %433 = vmatpush1.msra.mxu0 0.0
    %434 = vmatprep.subr.mxu0 0.0
    %435 = vmatpush1.msra.mxu0 0.0
    %436 = vmatprep.subr.mxu0 0.0
    %437 = vmatpush1.msra.mxu0 0.0
    %438 = vmatprep.mubr.f32.mxu0 0.0
    %439 = vmatmul.mubr.f32.gmra.mrb[0].mxu0 %v372
    %v440 = vpop.f32.mrb[0].mxu0
    %v441 = vadd.f32 0.0, %v440
    %v442 = vpop.f32.mrb[0].mxu0
    %443 = vdwg.mxu0
    %444 = vmatprep.subr.mxu0 0.0
    %445 = vmatpush1.msra.mxu0 %v158
    %446 = vmatprep.subr.mxu0 0.0
    %447 = vmatpush1.msra.mxu0 %v159
    %448 = vmatprep.subr.mxu0 0.0
    %449 = vmatpush1.msra.mxu0 %v160
    %450 = vmatprep.subr.mxu0 0.0
    %451 = vmatpush1.msra.mxu0 %v161
    %452 = vmatprep.subr.mxu0 0.0
    %453 = vmatpush1.msra.mxu0 0.0
    %454 = vmatprep.subr.mxu0 0.0
    %455 = vmatpush1.msra.mxu0 0.0
    %456 = vmatprep.subr.mxu0 0.0
    %457 = vmatpush1.msra.mxu0 0.0
    %458 = vmatprep.subr.mxu0 0.0
    %459 = vmatpush1.msra.mxu0 0.0
    %460 = vmatprep.subr.mxu0 0.0
    %461 = vmatpush1.msra.mxu0 0.0
    %462 = vmatprep.subr.mxu0 0.0
    %463 = vmatpush1.msra.mxu0 0.0
    %464 = vmatprep.subr.mxu0 0.0
    %465 = vmatpush1.msra.mxu0 0.0
    %466 = vmatprep.subr.mxu0 0.0
    %467 = vmatpush1.msra.mxu0 0.0
    %468 = vmatprep.subr.mxu0 0.0
    %469 = vmatpush1.msra.mxu0 0.0
    %470 = vmatprep.subr.mxu0 0.0
    %471 = vmatpush1.msra.mxu0 0.0
    %472 = vmatprep.subr.mxu0 0.0
    %473 = vmatpush1.msra.mxu0 0.0
    %474 = vmatprep.subr.mxu0 0.0
    %475 = vmatpush1.msra.mxu0 0.0
    %476 = vmatprep.subr.mxu0 0.0
    %477 = vmatpush1.msra.mxu0 0.0
    %478 = vmatprep.subr.mxu0 0.0
    %479 = vmatpush1.msra.mxu0 0.0
    %480 = vmatprep.subr.mxu0 0.0
    %481 = vmatpush1.msra.mxu0 0.0
    %482 = vmatprep.subr.mxu0 0.0
    %483 = vmatpush1.msra.mxu0 0.0
    %484 = vmatprep.subr.mxu0 0.0
    %485 = vmatpush1.msra.mxu0 0.0
    %486 = vmatprep.subr.mxu0 0.0
    %487 = vmatpush1.msra.mxu0 0.0
    %488 = vmatprep.subr.mxu0 0.0
    %489 = vmatpush1.msra.mxu0 0.0
    %490 = vmatprep.subr.mxu0 0.0
    %491 = vmatpush1.msra.mxu0 0.0
    %492 = vmatprep.subr.mxu0 0.0
    %493 = vmatpush1.msra.mxu0 0.0
    %494 = vmatprep.subr.mxu0 0.0
    %495 = vmatpush1.msra.mxu0 0.0
    %496 = vmatprep.subr.mxu0 0.0
    %497 = vmatpush1.msra.mxu0 0.0
    %498 = vmatprep.subr.mxu0 0.0
    %499 = vmatpush1.msra.mxu0 0.0
    %500 = vmatprep.subr.mxu0 0.0
    %501 = vmatpush1.msra.mxu0 0.0
    %502 = vmatprep.subr.mxu0 0.0
    %503 = vmatpush1.msra.mxu0 0.0
    %504 = vmatprep.subr.mxu0 0.0
    %505 = vmatpush1.msra.mxu0 0.0
    %506 = vmatprep.subr.mxu0 0.0
    %507 = vmatpush1.msra.mxu0 0.0
    %508 = vmatprep.mubr.f32.mxu0 0.0
    %509 = vmatmul.mubr.f32.gmra.mrb[0].mxu0 %v372
    %v510 = vpop.f32.mrb[0].mxu0
    %v511 = vadd.f32 0.0, %v510
    %v512 = vpop.f32.mrb[0].mxu0
    %513 = vdwg.mxu0
    %v514 = vadd.f32 %v353, %v158
    %v515 = vadd.f32 %v354, %v159
    %v516 = vadd.f32 %v355, %v160
    %v517 = vadd.f32 %v356, %v161
    %v519 = vsel %vm162, %v370, 0
    %521 = vmatprep.subr.mxu0 0.0
    %522 = vmatpush1.msra.mxu0 %v514
    %523 = vmatprep.subr.mxu0 0.0
    %524 = vmatpush1.msra.mxu0 %v515
    %525 = vmatprep.subr.mxu0 0.0
    %526 = vmatpush1.msra.mxu0 %v516
    %527 = vmatprep.subr.mxu0 0.0
    %528 = vmatpush1.msra.mxu0 %v517
    %529 = vmatprep.subr.mxu0 0.0
    %530 = vmatpush1.msra.mxu0 0.0
    %531 = vmatprep.subr.mxu0 0.0
    %532 = vmatpush1.msra.mxu0 0.0
    %533 = vmatprep.subr.mxu0 0.0
    %534 = vmatpush1.msra.mxu0 0.0
    %535 = vmatprep.subr.mxu0 0.0
    %536 = vmatpush1.msra.mxu0 0.0
    %537 = vmatprep.subr.mxu0 0.0
    %538 = vmatpush1.msra.mxu0 0.0
    %539 = vmatprep.subr.mxu0 0.0
    %540 = vmatpush1.msra.mxu0 0.0
    %541 = vmatprep.subr.mxu0 0.0
    %542 = vmatpush1.msra.mxu0 0.0
    %543 = vmatprep.subr.mxu0 0.0
    %544 = vmatpush1.msra.mxu0 0.0
    %545 = vmatprep.subr.mxu0 0.0
    %546 = vmatpush1.msra.mxu0 0.0
    %547 = vmatprep.subr.mxu0 0.0
    %548 = vmatpush1.msra.mxu0 0.0
    %549 = vmatprep.subr.mxu0 0.0
    %550 = vmatpush1.msra.mxu0 0.0
    %551 = vmatprep.subr.mxu0 0.0
    %552 = vmatpush1.msra.mxu0 0.0
    %553 = vmatprep.subr.mxu0 0.0
    %554 = vmatpush1.msra.mxu0 0.0
    %555 = vmatprep.subr.mxu0 0.0
    %556 = vmatpush1.msra.mxu0 0.0
    %557 = vmatprep.subr.mxu0 0.0
    %558 = vmatpush1.msra.mxu0 0.0
    %559 = vmatprep.subr.mxu0 0.0
    %560 = vmatpush1.msra.mxu0 0.0
    %561 = vmatprep.subr.mxu0 0.0
    %562 = vmatpush1.msra.mxu0 0.0
    %563 = vmatprep.subr.mxu0 0.0
    %564 = vmatpush1.msra.mxu0 0.0
    %565 = vmatprep.subr.mxu0 0.0
    %566 = vmatpush1.msra.mxu0 0.0
    %567 = vmatprep.subr.mxu0 0.0
    %568 = vmatpush1.msra.mxu0 0.0
    %569 = vmatprep.subr.mxu0 0.0
    %570 = vmatpush1.msra.mxu0 0.0
    %571 = vmatprep.subr.mxu0 0.0
    %572 = vmatpush1.msra.mxu0 0.0
    %573 = vmatprep.subr.mxu0 0.0
    %574 = vmatpush1.msra.mxu0 0.0
    %575 = vmatprep.subr.mxu0 0.0
    %576 = vmatpush1.msra.mxu0 0.0
    %577 = vmatprep.subr.mxu0 0.0
    %578 = vmatpush1.msra.mxu0 0.0
    %579 = vmatprep.subr.mxu0 0.0
    %580 = vmatpush1.msra.mxu0 0.0
    %581 = vmatprep.subr.mxu0 0.0
    %582 = vmatpush1.msra.mxu0 0.0
    %583 = vmatprep.subr.mxu0 0.0
    %584 = vmatpush1.msra.mxu0 0.0
    %585 = vmatprep.mubr.f32.mxu0 0.0
    %586 = vmatmul.mubr.f32.gmra.mrb[0].mxu0 %v519
    %v587 = vpop.f32.mrb[0].mxu0
    %v588 = vadd.f32 0.0, %v587
    %v589 = vpop.f32.mrb[0].mxu0
    %590 = vdwg.mxu0
    %v591 = vld [vmem:[%s5] sm:$0xff]
    %v592 = vld [vmem:[%s5 + $0x8] sm:$0xff]
    %v593 = vld [vmem:[%s5 + $0x10] sm:$0xff]
    %v594 = vld [vmem:[%s5 + $0x18] sm:$0xff]
    %v595 = vld [vmem:[%s5 + $0x20] sm:$0xff]
    %v596 = vld [vmem:[%s5 + $0x28] sm:$0xff]
    %v597 = vld [vmem:[%s5 + $0x30] sm:$0xff]
    %v598 = vld [vmem:[%s5 + $0x38] sm:$0xff]
    %599 = vset.pattern.permute.xlu0 0
    %600 = vperm.xlu0 %599, %v591
    %v601 = vpop.permute.xlu0 %600
    %602 = vset.pattern.permute.xlu0 0
    %603 = vperm.xlu0 %602, %v592
    %v604 = vpop.permute.xlu0 %603
    %605 = vset.pattern.permute.xlu0 0
    %606 = vperm.xlu0 %605, %v593
    %v607 = vpop.permute.xlu0 %606
    %608 = vset.pattern.permute.xlu0 0
    %609 = vperm.xlu0 %608, %v594
    %v610 = vpop.permute.xlu0 %609
    %611 = vset.pattern.permute.xlu0 0
    %612 = vperm.xlu0 %611, %v595
    %v613 = vpop.permute.xlu0 %612
    %614 = vset.pattern.permute.xlu0 0
    %615 = vperm.xlu0 %614, %v596
    %v616 = vpop.permute.xlu0 %615
    %617 = vset.pattern.permute.xlu0 0
    %618 = vperm.xlu0 %617, %v597
    %v619 = vpop.permute.xlu0 %618
    %620 = vset.pattern.permute.xlu0 0
    %621 = vperm.xlu0 %620, %v598
    %v622 = vpop.permute.xlu0 %621
    %vm623 = vcmp.eq.s32.totalorder %v358, %v601
    %vm624 = vcmp.eq.s32.totalorder %v358, %v604
    %vm625 = vcmp.eq.s32.totalorder %v358, %v607
    %vm626 = vcmp.eq.s32.totalorder %v358, %v610
    %vm627 = vcmp.eq.s32.totalorder %v358, %v613
    %vm628 = vcmp.eq.s32.totalorder %v358, %v616
    %vm629 = vcmp.eq.s32.totalorder %v358, %v619
    %vm630 = vcmp.eq.s32.totalorder %v358, %v622
    %v631 = vsel %vm623, 1.0, 0.0
    %v632 = vsel %vm624, 1.0, 0.0
    %v633 = vsel %vm625, 1.0, 0.0
    %v634 = vsel %vm626, 1.0, 0.0
    %v635 = vsel %vm627, 1.0, 0.0
    %v636 = vsel %vm628, 1.0, 0.0
    %v637 = vsel %vm629, 1.0, 0.0
    %v638 = vsel %vm630, 1.0, 0.0
    %v639 = vld [vmem:[#allocation3] sm:$0xff]
    %v640 = vld [vmem:[#allocation3 + $0x8] sm:$0xff]
    %v641 = vld [vmem:[#allocation3 + $0x10] sm:$0xf]
    %vm642 = vcmask 162816
    %v644 = vsel %vm642, %v631, 0
    %v647 = vsel %vm642, %v632, 0
    %v650 = vsel %vm642, %v633, 0
    %v653 = vsel %vm642, %v634, 0
    %v656 = vsel %vm642, %v635, 0
    %v659 = vsel %vm642, %v636, 0
    %v662 = vsel %vm642, %v637, 0
    %v665 = vsel %vm642, %v638, 0
    %vm667 = vcmask 1043456
    %v669 = vsel %vm667, %v641, 0
    %671 = vmatprep.subr.mxu0 0.0
    %672 = vmatpush1.msra.mxu0 %v639
    %673 = vmatprep.subr.mxu0 0.0
    %674 = vmatpush1.msra.mxu0 %v640
    %675 = vmatprep.subr.mxu0 0.0
    %676 = vmatpush1.msra.mxu0 %v669
    %677 = vmatprep.subr.mxu0 0.0
    %678 = vmatpush1.msra.mxu0 0.0
    %679 = vmatprep.subr.mxu0 0.0
    %680 = vmatpush1.msra.mxu0 0.0
    %681 = vmatprep.subr.mxu0 0.0
    %682 = vmatpush1.msra.mxu0 0.0
    %683 = vmatprep.subr.mxu0 0.0
    %684 = vmatpush1.msra.mxu0 0.0
    %685 = vmatprep.subr.mxu0 0.0
    %686 = vmatpush1.msra.mxu0 0.0
    %687 = vmatprep.subr.mxu0 0.0
    %688 = vmatpush1.msra.mxu0 0.0
    %689 = vmatprep.subr.mxu0 0.0
    %690 = vmatpush1.msra.mxu0 0.0
    %691 = vmatprep.subr.mxu0 0.0
    %692 = vmatpush1.msra.mxu0 0.0
    %693 = vmatprep.subr.mxu0 0.0
    %694 = vmatpush1.msra.mxu0 0.0
    %695 = vmatprep.subr.mxu0 0.0
    %696 = vmatpush1.msra.mxu0 0.0
    %697 = vmatprep.subr.mxu0 0.0
    %698 = vmatpush1.msra.mxu0 0.0
    %699 = vmatprep.subr.mxu0 0.0
    %700 = vmatpush1.msra.mxu0 0.0
    %701 = vmatprep.subr.mxu0 0.0
    %702 = vmatpush1.msra.mxu0 0.0
    %703 = vmatprep.subr.mxu0 0.0
    %704 = vmatpush1.msra.mxu0 0.0
    %705 = vmatprep.subr.mxu0 0.0
    %706 = vmatpush1.msra.mxu0 0.0
    %707 = vmatprep.subr.mxu0 0.0
    %708 = vmatpush1.msra.mxu0 0.0
    %709 = vmatprep.subr.mxu0 0.0
    %710 = vmatpush1.msra.mxu0 0.0
    %711 = vmatprep.subr.mxu0 0.0
    %712 = vmatpush1.msra.mxu0 0.0
    %713 = vmatprep.subr.mxu0 0.0
    %714 = vmatpush1.msra.mxu0 0.0
    %715 = vmatprep.subr.mxu0 0.0
    %716 = vmatpush1.msra.mxu0 0.0
    %717 = vmatprep.subr.mxu0 0.0
    %718 = vmatpush1.msra.mxu0 0.0
    %719 = vmatprep.subr.mxu0 0.0
    %720 = vmatpush1.msra.mxu0 0.0
    %721 = vmatprep.subr.mxu0 0.0
    %722 = vmatpush1.msra.mxu0 0.0
    %723 = vmatprep.subr.mxu0 0.0
    %724 = vmatpush1.msra.mxu0 0.0
    %725 = vmatprep.subr.mxu0 0.0
    %726 = vmatpush1.msra.mxu0 0.0
    %727 = vmatprep.subr.mxu0 0.0
    %728 = vmatpush1.msra.mxu0 0.0
    %729 = vmatprep.subr.mxu0 0.0
    %730 = vmatpush1.msra.mxu0 0.0
    %731 = vmatprep.subr.mxu0 0.0
    %732 = vmatpush1.msra.mxu0 0.0
    %733 = vmatprep.subr.mxu0 0.0
    %734 = vmatpush1.msra.mxu0 0.0
    %735 = vmatprep.mubr.f32.mxu0 0.0
    %736 = vmatmul.mubr.f32.gmra.mrb[0].mxu0 %v644
    %v737 = vpop.f32.mrb[0].mxu0
    %v738 = vadd.f32 0.0, %v737
    %v739 = vpop.f32.mrb[0].mxu0
    %740 = vmatprep.mubr.f32.mxu0 0.0
    %741 = vmatmul.mubr.f32.gmra.mrb[0].mxu0 %v647
    %v742 = vpop.f32.mrb[0].mxu0
    %v743 = vadd.f32 0.0, %v742
    %v744 = vpop.f32.mrb[0].mxu0
    %745 = vmatprep.mubr.f32.mxu0 0.0
    %746 = vmatmul.mubr.f32.gmra.mrb[0].mxu0 %v650
    %v747 = vpop.f32.mrb[0].mxu0
    %v748 = vadd.f32 0.0, %v747
    %v749 = vpop.f32.mrb[0].mxu0
    %750 = vmatprep.mubr.f32.mxu0 0.0
    %751 = vmatmul.mubr.f32.gmra.mrb[0].mxu0 %v653
    %v752 = vpop.f32.mrb[0].mxu0
    %v753 = vadd.f32 0.0, %v752
    %v754 = vpop.f32.mrb[0].mxu0
    %755 = vmatprep.mubr.f32.mxu0 0.0
    %756 = vmatmul.mubr.f32.gmra.mrb[0].mxu0 %v656
    %v757 = vpop.f32.mrb[0].mxu0
    %v758 = vadd.f32 0.0, %v757
    %v759 = vpop.f32.mrb[0].mxu0
    %760 = vmatprep.mubr.f32.mxu0 0.0
    %761 = vmatmul.mubr.f32.gmra.mrb[0].mxu0 %v659
    %v762 = vpop.f32.mrb[0].mxu0
    %v763 = vadd.f32 0.0, %v762
    %v764 = vpop.f32.mrb[0].mxu0
    %765 = vmatprep.mubr.f32.mxu0 0.0
    %766 = vmatmul.mubr.f32.gmra.mrb[0].mxu0 %v662
    %v767 = vpop.f32.mrb[0].mxu0
    %v768 = vadd.f32 0.0, %v767
    %v769 = vpop.f32.mrb[0].mxu0
    %770 = vmatprep.mubr.f32.mxu0 0.0
    %771 = vmatmul.mubr.f32.gmra.mrb[0].mxu0 %v665
    %v772 = vpop.f32.mrb[0].mxu0
    %v773 = vadd.f32 0.0, %v772
    %v774 = vpop.f32.mrb[0].mxu0
    %775 = vdwg.mxu0
    %v776 = vld [vmem:[%s6] sm:$0xff]
    %v777 = vld [vmem:[%s6 + $0x8] sm:$0xff]
    %v778 = vld [vmem:[%s6 + $0x10] sm:$0xff]
    %v779 = vld [vmem:[%s6 + $0x18] sm:$0xff]
    %v780 = vld [vmem:[#allocation8] sm:$0x1]
    %v782 = vlaneseq
    %v783 = vshrl.u32 %v782, 7
    %v784 = vsub.s32 0, %v783
    %v785 = vrot.slane %v780, %v784
    %v788 = vsel %vm162, %v738, 0
    %v791 = vsel %vm162, %v743, 0
    %v794 = vsel %vm162, %v748, 0
    %v797 = vsel %vm162, %v753, 0
    %v800 = vsel %vm162, %v758, 0
    %v803 = vsel %vm162, %v763, 0
    %v806 = vsel %vm162, %v768, 0
    %v809 = vsel %vm162, %v773, 0
    %811 = vmatprep.subr.mxu0 0.0
    %812 = vmatpush1.msra.mxu0 %v776
    %813 = vmatprep.subr.mxu0 0.0
    %814 = vmatpush1.msra.mxu0 %v777
    %815 = vmatprep.subr.mxu0 0.0
    %816 = vmatpush1.msra.mxu0 %v778
    %817 = vmatprep.subr.mxu0 0.0
    %818 = vmatpush1.msra.mxu0 %v779
    %819 = vmatprep.subr.mxu0 0.0
    %820 = vmatpush1.msra.mxu0 0.0
    %821 = vmatprep.subr.mxu0 0.0
    %822 = vmatpush1.msra.mxu0 0.0
    %823 = vmatprep.subr.mxu0 0.0
    %824 = vmatpush1.msra.mxu0 0.0
    %825 = vmatprep.subr.mxu0 0.0
    %826 = vmatpush1.msra.mxu0 0.0
    %827 = vmatprep.subr.mxu0 0.0
    %828 = vmatpush1.msra.mxu0 0.0
    %829 = vmatprep.subr.mxu0 0.0
    %830 = vmatpush1.msra.mxu0 0.0
    %831 = vmatprep.subr.mxu0 0.0
    %832 = vmatpush1.msra.mxu0 0.0
    %833 = vmatprep.subr.mxu0 0.0
    %834 = vmatpush1.msra.mxu0 0.0
    %835 = vmatprep.subr.mxu0 0.0
    %836 = vmatpush1.msra.mxu0 0.0
    %837 = vmatprep.subr.mxu0 0.0
    %838 = vmatpush1.msra.mxu0 0.0
    %839 = vmatprep.subr.mxu0 0.0
    %840 = vmatpush1.msra.mxu0 0.0
    %841 = vmatprep.subr.mxu0 0.0
    %842 = vmatpush1.msra.mxu0 0.0
    %843 = vmatprep.subr.mxu0 0.0
    %844 = vmatpush1.msra.mxu0 0.0
    %845 = vmatprep.subr.mxu0 0.0
    %846 = vmatpush1.msra.mxu0 0.0
    %847 = vmatprep.subr.mxu0 0.0
    %848 = vmatpush1.msra.mxu0 0.0
    %849 = vmatprep.subr.mxu0 0.0
    %850 = vmatpush1.msra.mxu0 0.0
    %851 = vmatprep.subr.mxu0 0.0
    %852 = vmatpush1.msra.mxu0 0.0
    %853 = vmatprep.subr.mxu0 0.0
    %854 = vmatpush1.msra.mxu0 0.0
    %855 = vmatprep.subr.mxu0 0.0
    %856 = vmatpush1.msra.mxu0 0.0
    %857 = vmatprep.subr.mxu0 0.0
    %858 = vmatpush1.msra.mxu0 0.0
    %859 = vmatprep.subr.mxu0 0.0
    %860 = vmatpush1.msra.mxu0 0.0
    %861 = vmatprep.subr.mxu0 0.0
    %862 = vmatpush1.msra.mxu0 0.0
    %863 = vmatprep.subr.mxu0 0.0
    %864 = vmatpush1.msra.mxu0 0.0
    %865 = vmatprep.subr.mxu0 0.0
    %866 = vmatpush1.msra.mxu0 0.0
    %867 = vmatprep.subr.mxu0 0.0
    %868 = vmatpush1.msra.mxu0 0.0
    %869 = vmatprep.subr.mxu0 0.0
    %870 = vmatpush1.msra.mxu0 0.0
    %871 = vmatprep.subr.mxu0 0.0
    %872 = vmatpush1.msra.mxu0 0.0
    %873 = vmatprep.subr.mxu0 0.0
    %874 = vmatpush1.msra.mxu0 0.0
    %875 = vmatprep.mubr.f32.mxu0 0.0
    %876 = vmatmul.mubr.f32.gmra.mrb[0].mxu0 %v788
    %v877 = vpop.f32.mrb[0].mxu0
    %v878 = vadd.f32 %v785, %v877
    %v879 = vpop.f32.mrb[0].mxu0
    %880 = vmatprep.mubr.f32.mxu0 0.0
    %881 = vmatmul.mubr.f32.gmra.mrb[0].mxu0 %v791
    %v882 = vpop.f32.mrb[0].mxu0
    %v883 = vadd.f32 %v785, %v882
    %v884 = vpop.f32.mrb[0].mxu0
    %885 = vmatprep.mubr.f32.mxu0 0.0
    %886 = vmatmul.mubr.f32.gmra.mrb[0].mxu0 %v794
    %v887 = vpop.f32.mrb[0].mxu0
    %v888 = vadd.f32 %v785, %v887
    %v889 = vpop.f32.mrb[0].mxu0
    %890 = vmatprep.mubr.f32.mxu0 0.0
    %891 = vmatmul.mubr.f32.gmra.mrb[0].mxu0 %v797
    %v892 = vpop.f32.mrb[0].mxu0
    %v893 = vadd.f32 %v785, %v892
    %v894 = vpop.f32.mrb[0].mxu0
    %895 = vmatprep.mubr.f32.mxu0 0.0
    %896 = vmatmul.mubr.f32.gmra.mrb[0].mxu0 %v800
    %v897 = vpop.f32.mrb[0].mxu0
    %v898 = vadd.f32 %v785, %v897
    %v899 = vpop.f32.mrb[0].mxu0
    %900 = vmatprep.mubr.f32.mxu0 0.0
    %901 = vmatmul.mubr.f32.gmra.mrb[0].mxu0 %v803
    %v902 = vpop.f32.mrb[0].mxu0
    %v903 = vadd.f32 %v785, %v902
    %v904 = vpop.f32.mrb[0].mxu0
    %905 = vmatprep.mubr.f32.mxu0 0.0
    %906 = vmatmul.mubr.f32.gmra.mrb[0].mxu0 %v806
    %v907 = vpop.f32.mrb[0].mxu0
    %v908 = vadd.f32 %v785, %v907
    %v909 = vpop.f32.mrb[0].mxu0
    %910 = vmatprep.mubr.f32.mxu0 0.0
    %911 = vmatmul.mubr.f32.gmra.mrb[0].mxu0 %v809
    %v912 = vpop.f32.mrb[0].mxu0
    %v913 = vadd.f32 %v785, %v912
    %v914 = vpop.f32.mrb[0].mxu0
    %915 = vdwg.mxu0
    %v916 = vld [vmem:[%s7] sm:$0xff]
    %v917 = vld [vmem:[%s7 + $0x8] sm:$0xff]
    %v918 = vld [vmem:[%s7 + $0x10] sm:$0xff]
    %v919 = vld [vmem:[%s7 + $0x18] sm:$0xff]
    %v920 = vld [vmem:[#allocation10] sm:$0x1]
    %v922 = vlaneseq
    %v923 = vshrl.u32 %v922, 7
    %v924 = vsub.s32 0, %v923
    %v925 = vrot.slane %v920, %v924
    %927 = vmatprep.subr.mxu0 0.0
    %928 = vmatpush1.msra.mxu0 %v916
    %929 = vmatprep.subr.mxu0 0.0
    %930 = vmatpush1.msra.mxu0 %v917
    %931 = vmatprep.subr.mxu0 0.0
    %932 = vmatpush1.msra.mxu0 %v918
    %933 = vmatprep.subr.mxu0 0.0
    %934 = vmatpush1.msra.mxu0 %v919
    %935 = vmatprep.subr.mxu0 0.0
    %936 = vmatpush1.msra.mxu0 0.0
    %937 = vmatprep.subr.mxu0 0.0
    %938 = vmatpush1.msra.mxu0 0.0
    %939 = vmatprep.subr.mxu0 0.0
    %940 = vmatpush1.msra.mxu0 0.0
    %941 = vmatprep.subr.mxu0 0.0
    %942 = vmatpush1.msra.mxu0 0.0
    %943 = vmatprep.subr.mxu0 0.0
    %944 = vmatpush1.msra.mxu0 0.0
    %945 = vmatprep.subr.mxu0 0.0
    %946 = vmatpush1.msra.mxu0 0.0
    %947 = vmatprep.subr.mxu0 0.0
    %948 = vmatpush1.msra.mxu0 0.0
    %949 = vmatprep.subr.mxu0 0.0
    %950 = vmatpush1.msra.mxu0 0.0
    %951 = vmatprep.subr.mxu0 0.0
    %952 = vmatpush1.msra.mxu0 0.0
    %953 = vmatprep.subr.mxu0 0.0
    %954 = vmatpush1.msra.mxu0 0.0
    %955 = vmatprep.subr.mxu0 0.0
    %956 = vmatpush1.msra.mxu0 0.0
    %957 = vmatprep.subr.mxu0 0.0
    %958 = vmatpush1.msra.mxu0 0.0
    %959 = vmatprep.subr.mxu0 0.0
    %960 = vmatpush1.msra.mxu0 0.0
    %961 = vmatprep.subr.mxu0 0.0
    %962 = vmatpush1.msra.mxu0 0.0
    %963 = vmatprep.subr.mxu0 0.0
    %964 = vmatpush1.msra.mxu0 0.0
    %965 = vmatprep.subr.mxu0 0.0
    %966 = vmatpush1.msra.mxu0 0.0
    %967 = vmatprep.subr.mxu0 0.0
    %968 = vmatpush1.msra.mxu0 0.0
    %969 = vmatprep.subr.mxu0 0.0
    %970 = vmatpush1.msra.mxu0 0.0
    %971 = vmatprep.subr.mxu0 0.0
    %972 = vmatpush1.msra.mxu0 0.0
    %973 = vmatprep.subr.mxu0 0.0
    %974 = vmatpush1.msra.mxu0 0.0
    %975 = vmatprep.subr.mxu0 0.0
    %976 = vmatpush1.msra.mxu0 0.0
    %977 = vmatprep.subr.mxu0 0.0
    %978 = vmatpush1.msra.mxu0 0.0
    %979 = vmatprep.subr.mxu0 0.0
    %980 = vmatpush1.msra.mxu0 0.0
    %981 = vmatprep.subr.mxu0 0.0
    %982 = vmatpush1.msra.mxu0 0.0
    %983 = vmatprep.subr.mxu0 0.0
    %984 = vmatpush1.msra.mxu0 0.0
    %985 = vmatprep.subr.mxu0 0.0
    %986 = vmatpush1.msra.mxu0 0.0
    %987 = vmatprep.subr.mxu0 0.0
    %988 = vmatpush1.msra.mxu0 0.0
    %989 = vmatprep.subr.mxu0 0.0
    %990 = vmatpush1.msra.mxu0 0.0
    %991 = vmatprep.mubr.f32.mxu0 0.0
    %992 = vmatmul.mubr.f32.gmra.mrb[0].mxu0 %v788
    %v993 = vpop.f32.mrb[0].mxu0
    %v994 = vadd.f32 %v925, %v993
    %v995 = vpop.f32.mrb[0].mxu0
    %996 = vmatprep.mubr.f32.mxu0 0.0
    %997 = vmatmul.mubr.f32.gmra.mrb[0].mxu0 %v791
    %v998 = vpop.f32.mrb[0].mxu0
    %v999 = vadd.f32 %v925, %v998
    %v1000 = vpop.f32.mrb[0].mxu0
    %1001 = vmatprep.mubr.f32.mxu0 0.0
    %1002 = vmatmul.mubr.f32.gmra.mrb[0].mxu0 %v794
    %v1003 = vpop.f32.mrb[0].mxu0
    %v1004 = vadd.f32 %v925, %v1003
    %v1005 = vpop.f32.mrb[0].mxu0
    %1006 = vmatprep.mubr.f32.mxu0 0.0
    %1007 = vmatmul.mubr.f32.gmra.mrb[0].mxu0 %v797
    %v1008 = vpop.f32.mrb[0].mxu0
    %v1009 = vadd.f32 %v925, %v1008
    %v1010 = vpop.f32.mrb[0].mxu0
    %1011 = vmatprep.mubr.f32.mxu0 0.0
    %1012 = vmatmul.mubr.f32.gmra.mrb[0].mxu0 %v800
    %v1013 = vpop.f32.mrb[0].mxu0
    %v1014 = vadd.f32 %v925, %v1013
    %v1015 = vpop.f32.mrb[0].mxu0
    %1016 = vmatprep.mubr.f32.mxu0 0.0
    %1017 = vmatmul.mubr.f32.gmra.mrb[0].mxu0 %v803
    %v1018 = vpop.f32.mrb[0].mxu0
    %v1019 = vadd.f32 %v925, %v1018
    %v1020 = vpop.f32.mrb[0].mxu0
    %1021 = vmatprep.mubr.f32.mxu0 0.0
    %1022 = vmatmul.mubr.f32.gmra.mrb[0].mxu0 %v806
    %v1023 = vpop.f32.mrb[0].mxu0
    %v1024 = vadd.f32 %v925, %v1023
    %v1025 = vpop.f32.mrb[0].mxu0
    %1026 = vmatprep.mubr.f32.mxu0 0.0
    %1027 = vmatmul.mubr.f32.gmra.mrb[0].mxu0 %v809
    %v1028 = vpop.f32.mrb[0].mxu0
    %v1029 = vadd.f32 %v925, %v1028
    %v1030 = vpop.f32.mrb[0].mxu0
    %1031 = vdwg.mxu0
    %v1032 = vld [vmem:[%s8] sm:$0xff]
    %v1033 = vld [vmem:[%s8 + $0x8] sm:$0xff]
    %v1034 = vld [vmem:[%s8 + $0x10] sm:$0xff]
    %v1035 = vld [vmem:[%s8 + $0x18] sm:$0xff]
    %v1036 = vld [vmem:[#allocation11] sm:$0x1]
    %v1038 = vlaneseq
    %v1039 = vshrl.u32 %v1038, 7
    %v1040 = vsub.s32 0, %v1039
    %v1041 = vrot.slane %v1036, %v1040
    %1043 = vmatprep.subr.mxu0 0.0
    %1044 = vmatpush1.msra.mxu0 %v1032
    %1045 = vmatprep.subr.mxu0 0.0
    %1046 = vmatpush1.msra.mxu0 %v1033
    %1047 = vmatprep.subr.mxu0 0.0
    %1048 = vmatpush1.msra.mxu0 %v1034
    %1049 = vmatprep.subr.mxu0 0.0
    %1050 = vmatpush1.msra.mxu0 %v1035
    %1051 = vmatprep.subr.mxu0 0.0
    %1052 = vmatpush1.msra.mxu0 0.0
    %1053 = vmatprep.subr.mxu0 0.0
    %1054 = vmatpush1.msra.mxu0 0.0
    %1055 = vmatprep.subr.mxu0 0.0
    %1056 = vmatpush1.msra.mxu0 0.0
    %1057 = vmatprep.subr.mxu0 0.0
    %1058 = vmatpush1.msra.mxu0 0.0
    %1059 = vmatprep.subr.mxu0 0.0
    %1060 = vmatpush1.msra.mxu0 0.0
    %1061 = vmatprep.subr.mxu0 0.0
    %1062 = vmatpush1.msra.mxu0 0.0
    %1063 = vmatprep.subr.mxu0 0.0
    %1064 = vmatpush1.msra.mxu0 0.0
    %1065 = vmatprep.subr.mxu0 0.0
    %1066 = vmatpush1.msra.mxu0 0.0
    %1067 = vmatprep.subr.mxu0 0.0
    %1068 = vmatpush1.msra.mxu0 0.0
    %1069 = vmatprep.subr.mxu0 0.0
    %1070 = vmatpush1.msra.mxu0 0.0
    %1071 = vmatprep.subr.mxu0 0.0
    %1072 = vmatpush1.msra.mxu0 0.0
    %1073 = vmatprep.subr.mxu0 0.0
    %1074 = vmatpush1.msra.mxu0 0.0
    %1075 = vmatprep.subr.mxu0 0.0
    %1076 = vmatpush1.msra.mxu0 0.0
    %1077 = vmatprep.subr.mxu0 0.0
    %1078 = vmatpush1.msra.mxu0 0.0
    %1079 = vmatprep.subr.mxu0 0.0
    %1080 = vmatpush1.msra.mxu0 0.0
    %1081 = vmatprep.subr.mxu0 0.0
    %1082 = vmatpush1.msra.mxu0 0.0
    %1083 = vmatprep.subr.mxu0 0.0
    %1084 = vmatpush1.msra.mxu0 0.0
    %1085 = vmatprep.subr.mxu0 0.0
    %1086 = vmatpush1.msra.mxu0 0.0
    %1087 = vmatprep.subr.mxu0 0.0
    %1088 = vmatpush1.msra.mxu0 0.0
    %1089 = vmatprep.subr.mxu0 0.0
    %1090 = vmatpush1.msra.mxu0 0.0
    %1091 = vmatprep.subr.mxu0 0.0
    %1092 = vmatpush1.msra.mxu0 0.0
    %1093 = vmatprep.subr.mxu0 0.0
    %1094 = vmatpush1.msra.mxu0 0.0
    %1095 = vmatprep.subr.mxu0 0.0
    %1096 = vmatpush1.msra.mxu0 0.0
    %1097 = vmatprep.subr.mxu0 0.0
    %1098 = vmatpush1.msra.mxu0 0.0
    %1099 = vmatprep.subr.mxu0 0.0
    %1100 = vmatpush1.msra.mxu0 0.0
    %1101 = vmatprep.subr.mxu0 0.0
    %1102 = vmatpush1.msra.mxu0 0.0
    %1103 = vmatprep.subr.mxu0 0.0
    %1104 = vmatpush1.msra.mxu0 0.0
    %1105 = vmatprep.subr.mxu0 0.0
    %1106 = vmatpush1.msra.mxu0 0.0
    %1107 = vmatprep.mubr.f32.mxu0 0.0
    %1108 = vmatmul.mubr.f32.gmra.mrb[0].mxu0 %v788
    %v1109 = vpop.f32.mrb[0].mxu0
    %v1110 = vadd.f32 %v1041, %v1109
    %v1111 = vpop.f32.mrb[0].mxu0
    %1112 = vmatprep.mubr.f32.mxu0 0.0
    %1113 = vmatmul.mubr.f32.gmra.mrb[0].mxu0 %v791
    %v1114 = vpop.f32.mrb[0].mxu0
    %v1115 = vadd.f32 %v1041, %v1114
    %v1116 = vpop.f32.mrb[0].mxu0
    %1117 = vmatprep.mubr.f32.mxu0 0.0
    %1118 = vmatmul.mubr.f32.gmra.mrb[0].mxu0 %v794
    %v1119 = vpop.f32.mrb[0].mxu0
    %v1120 = vadd.f32 %v1041, %v1119
    %v1121 = vpop.f32.mrb[0].mxu0
    %1122 = vmatprep.mubr.f32.mxu0 0.0
    %1123 = vmatmul.mubr.f32.gmra.mrb[0].mxu0 %v797
    %v1124 = vpop.f32.mrb[0].mxu0
    %v1125 = vadd.f32 %v1041, %v1124
    %v1126 = vpop.f32.mrb[0].mxu0
    %1127 = vmatprep.mubr.f32.mxu0 0.0
    %1128 = vmatmul.mubr.f32.gmra.mrb[0].mxu0 %v800
    %v1129 = vpop.f32.mrb[0].mxu0
    %v1130 = vadd.f32 %v1041, %v1129
    %v1131 = vpop.f32.mrb[0].mxu0
    %1132 = vmatprep.mubr.f32.mxu0 0.0
    %1133 = vmatmul.mubr.f32.gmra.mrb[0].mxu0 %v803
    %v1134 = vpop.f32.mrb[0].mxu0
    %v1135 = vadd.f32 %v1041, %v1134
    %v1136 = vpop.f32.mrb[0].mxu0
    %1137 = vmatprep.mubr.f32.mxu0 0.0
    %1138 = vmatmul.mubr.f32.gmra.mrb[0].mxu0 %v806
    %v1139 = vpop.f32.mrb[0].mxu0
    %v1140 = vadd.f32 %v1041, %v1139
    %v1141 = vpop.f32.mrb[0].mxu0
    %1142 = vmatprep.mubr.f32.mxu0 0.0
    %1143 = vmatmul.mubr.f32.gmra.mrb[0].mxu0 %v809
    %v1144 = vpop.f32.mrb[0].mxu0
    %v1145 = vadd.f32 %v1041, %v1144
    %v1146 = vpop.f32.mrb[0].mxu0
    %1147 = vdwg.mxu0
    %v1148 = vld [vmem:[%s9] sm:$0xff]
    %v1149 = vld [vmem:[%s9 + $0x8] sm:$0xff]
    %v1150 = vld [vmem:[%s9 + $0x10] sm:$0xff]
    %v1151 = vld [vmem:[%s9 + $0x18] sm:$0xff]
    %v1152 = vld [vmem:[#allocation5] sm:$0xff]
    %v1153 = vld [vmem:[#allocation5 + $0x8] sm:$0xff]
    %v1154 = vld [vmem:[#allocation5 + $0x10] sm:$0xff]
    %v1155 = vld [vmem:[#allocation5 + $0x18] sm:$0xff]
    %v1156 = vld [vmem:[#allocation7] sm:$0xff]
    %v1157 = vld [vmem:[#allocation7 + $0x8] sm:$0xff]
    %v1158 = vld [vmem:[#allocation7 + $0x10] sm:$0xff]
    %v1159 = vld [vmem:[#allocation7 + $0x18] sm:$0xff]
    %v1160 = vld [vmem:[#allocation13] sm:$0x1]
    %v1162 = vsel %vm162, 0.0, 0
    %1164 = vmatprep.subr.mxu0 0.0
    %1165 = vmatpush1.msra.mxu0 %v1148
    %1166 = vmatprep.subr.mxu0 0.0
    %1167 = vmatpush1.msra.mxu0 %v1149
    %1168 = vmatprep.subr.mxu0 0.0
    %1169 = vmatpush1.msra.mxu0 %v1150
    %1170 = vmatprep.subr.mxu0 0.0
    %1171 = vmatpush1.msra.mxu0 %v1151
    %1172 = vmatprep.subr.mxu0 0.0
    %1173 = vmatpush1.msra.mxu0 0.0
    %1174 = vmatprep.subr.mxu0 0.0
    %1175 = vmatpush1.msra.mxu0 0.0
    %1176 = vmatprep.subr.mxu0 0.0
    %1177 = vmatpush1.msra.mxu0 0.0
    %1178 = vmatprep.subr.mxu0 0.0
    %1179 = vmatpush1.msra.mxu0 0.0
    %1180 = vmatprep.subr.mxu0 0.0
    %1181 = vmatpush1.msra.mxu0 0.0
    %1182 = vmatprep.subr.mxu0 0.0
    %1183 = vmatpush1.msra.mxu0 0.0
    %1184 = vmatprep.subr.mxu0 0.0
    %1185 = vmatpush1.msra.mxu0 0.0
    %1186 = vmatprep.subr.mxu0 0.0
    %1187 = vmatpush1.msra.mxu0 0.0
    %1188 = vmatprep.subr.mxu0 0.0
    %1189 = vmatpush1.msra.mxu0 0.0
    %1190 = vmatprep.subr.mxu0 0.0
    %1191 = vmatpush1.msra.mxu0 0.0
    %1192 = vmatprep.subr.mxu0 0.0
    %1193 = vmatpush1.msra.mxu0 0.0
    %1194 = vmatprep.subr.mxu0 0.0
    %1195 = vmatpush1.msra.mxu0 0.0
    %1196 = vmatprep.subr.mxu0 0.0
    %1197 = vmatpush1.msra.mxu0 0.0
    %1198 = vmatprep.subr.mxu0 0.0
    %1199 = vmatpush1.msra.mxu0 0.0
    %1200 = vmatprep.subr.mxu0 0.0
    %1201 = vmatpush1.msra.mxu0 0.0
    %1202 = vmatprep.subr.mxu0 0.0
    %1203 = vmatpush1.msra.mxu0 0.0
    %1204 = vmatprep.subr.mxu0 0.0
    %1205 = vmatpush1.msra.mxu0 0.0
    %1206 = vmatprep.subr.mxu0 0.0
    %1207 = vmatpush1.msra.mxu0 0.0
    %1208 = vmatprep.subr.mxu0 0.0
    %1209 = vmatpush1.msra.mxu0 0.0
    %1210 = vmatprep.subr.mxu0 0.0
    %1211 = vmatpush1.msra.mxu0 0.0
    %1212 = vmatprep.subr.mxu0 0.0
    %1213 = vmatpush1.msra.mxu0 0.0
    %1214 = vmatprep.subr.mxu0 0.0
    %1215 = vmatpush1.msra.mxu0 0.0
    %1216 = vmatprep.subr.mxu0 0.0
    %1217 = vmatpush1.msra.mxu0 0.0
    %1218 = vmatprep.subr.mxu0 0.0
    %1219 = vmatpush1.msra.mxu0 0.0
    %1220 = vmatprep.subr.mxu0 0.0
    %1221 = vmatpush1.msra.mxu0 0.0
    %1222 = vmatprep.subr.mxu0 0.0
    %1223 = vmatpush1.msra.mxu0 0.0
    %1224 = vmatprep.subr.mxu0 0.0
    %1225 = vmatpush1.msra.mxu0 0.0
    %1226 = vmatprep.subr.mxu0 0.0
    %1227 = vmatpush1.msra.mxu0 0.0
    %1228 = vmatprep.mubr.f32.mxu0 0.0
    %1229 = vmatmul.mubr.f32.gmra.mrb[0].mxu0 %v1162
    %v1230 = vpop.f32.mrb[0].mxu0
    %v1231 = vadd.f32 0.0, %v1230
    %v1232 = vpop.f32.mrb[0].mxu0
    %1233 = vdwg.mxu0
    %v1234 = vadd.f32 %v878, %v1231
    %v1235 = vxor.u32 %v1234, 2147483648
    %v1236 = vmul.f32 %v1235, 1.442695
    %v1237 = vpow.pop %v1236
    %v1238 = vadd.f32 %v1237, 1.0
    %v1239 = vrcp.pop %v1238
    %v1240 = vmul.f32 1.0, %v1239
    %1241 = vmatprep.subr.mxu0 0.0
    %1242 = vmatpush1.msra.mxu0 %v1152
    %1243 = vmatprep.subr.mxu0 0.0
    %1244 = vmatpush1.msra.mxu0 %v1153
    %1245 = vmatprep.subr.mxu0 0.0
    %1246 = vmatpush1.msra.mxu0 %v1154
    %1247 = vmatprep.subr.mxu0 0.0
    %1248 = vmatpush1.msra.mxu0 %v1155
    %1249 = vmatprep.subr.mxu0 0.0
    %1250 = vmatpush1.msra.mxu0 0.0
    %1251 = vmatprep.subr.mxu0 0.0
    %1252 = vmatpush1.msra.mxu0 0.0
    %1253 = vmatprep.subr.mxu0 0.0
    %1254 = vmatpush1.msra.mxu0 0.0
    %1255 = vmatprep.subr.mxu0 0.0
    %1256 = vmatpush1.msra.mxu0 0.0
    %1257 = vmatprep.subr.mxu0 0.0
    %1258 = vmatpush1.msra.mxu0 0.0
    %1259 = vmatprep.subr.mxu0 0.0
    %1260 = vmatpush1.msra.mxu0 0.0
    %1261 = vmatprep.subr.mxu0 0.0
    %1262 = vmatpush1.msra.mxu0 0.0
    %1263 = vmatprep.subr.mxu0 0.0
    %1264 = vmatpush1.msra.mxu0 0.0
    %1265 = vmatprep.subr.mxu0 0.0
    %1266 = vmatpush1.msra.mxu0 0.0
    %1267 = vmatprep.subr.mxu0 0.0
    %1268 = vmatpush1.msra.mxu0 0.0
    %1269 = vmatprep.subr.mxu0 0.0
    %1270 = vmatpush1.msra.mxu0 0.0
    %1271 = vmatprep.subr.mxu0 0.0
    %1272 = vmatpush1.msra.mxu0 0.0
    %1273 = vmatprep.subr.mxu0 0.0
    %1274 = vmatpush1.msra.mxu0 0.0
    %1275 = vmatprep.subr.mxu0 0.0
    %1276 = vmatpush1.msra.mxu0 0.0
    %1277 = vmatprep.subr.mxu0 0.0
    %1278 = vmatpush1.msra.mxu0 0.0
    %1279 = vmatprep.subr.mxu0 0.0
    %1280 = vmatpush1.msra.mxu0 0.0
    %1281 = vmatprep.subr.mxu0 0.0
    %1282 = vmatpush1.msra.mxu0 0.0
    %1283 = vmatprep.subr.mxu0 0.0
    %1284 = vmatpush1.msra.mxu0 0.0
    %1285 = vmatprep.subr.mxu0 0.0
    %1286 = vmatpush1.msra.mxu0 0.0
    %1287 = vmatprep.subr.mxu0 0.0
    %1288 = vmatpush1.msra.mxu0 0.0
    %1289 = vmatprep.subr.mxu0 0.0
    %1290 = vmatpush1.msra.mxu0 0.0
    %1291 = vmatprep.subr.mxu0 0.0
    %1292 = vmatpush1.msra.mxu0 0.0
    %1293 = vmatprep.subr.mxu0 0.0
    %1294 = vmatpush1.msra.mxu0 0.0
    %1295 = vmatprep.subr.mxu0 0.0
    %1296 = vmatpush1.msra.mxu0 0.0
    %1297 = vmatprep.subr.mxu0 0.0
    %1298 = vmatpush1.msra.mxu0 0.0
    %1299 = vmatprep.subr.mxu0 0.0
    %1300 = vmatpush1.msra.mxu0 0.0
    %1301 = vmatprep.subr.mxu0 0.0
    %1302 = vmatpush1.msra.mxu0 0.0
    %1303 = vmatprep.subr.mxu0 0.0
    %1304 = vmatpush1.msra.mxu0 0.0
    %1305 = vmatprep.mubr.f32.mxu0 0.0
    %1306 = vmatmul.mubr.f32.gmra.mrb[0].mxu0 %v1162
    %v1307 = vpop.f32.mrb[0].mxu0
    %v1308 = vadd.f32 0.0, %v1307
    %v1309 = vpop.f32.mrb[0].mxu0
    %1310 = vdwg.mxu0
    %v1311 = vadd.f32 %v994, %v1308
    %v1312 = vxor.u32 %v1311, 2147483648
    %v1313 = vmul.f32 %v1312, 1.442695
    %v1314 = vpow.pop %v1313
    %v1315 = vadd.f32 %v1314, 1.0
    %v1316 = vrcp.pop %v1315
    %v1317 = vmul.f32 1.0, %v1316
    %v1319 = vlaneseq
    %v1320 = vshrl.u32 %v1319, 7
    %v1321 = vsub.s32 0, %v1320
    %v1322 = vrot.slane %v1160, %v1321
    %1324 = vmatprep.subr.mxu0 0.0
    %1325 = vmatpush1.msra.mxu0 %v1156
    %1326 = vmatprep.subr.mxu0 0.0
    %1327 = vmatpush1.msra.mxu0 %v1157
    %1328 = vmatprep.subr.mxu0 0.0
    %1329 = vmatpush1.msra.mxu0 %v1158
    %1330 = vmatprep.subr.mxu0 0.0
    %1331 = vmatpush1.msra.mxu0 %v1159
    %1332 = vmatprep.subr.mxu0 0.0
    %1333 = vmatpush1.msra.mxu0 0.0
    %1334 = vmatprep.subr.mxu0 0.0
    %1335 = vmatpush1.msra.mxu0 0.0
    %1336 = vmatprep.subr.mxu0 0.0
    %1337 = vmatpush1.msra.mxu0 0.0
    %1338 = vmatprep.subr.mxu0 0.0
    %1339 = vmatpush1.msra.mxu0 0.0
    %1340 = vmatprep.subr.mxu0 0.0
    %1341 = vmatpush1.msra.mxu0 0.0
    %1342 = vmatprep.subr.mxu0 0.0
    %1343 = vmatpush1.msra.mxu0 0.0
    %1344 = vmatprep.subr.mxu0 0.0
    %1345 = vmatpush1.msra.mxu0 0.0
    %1346 = vmatprep.subr.mxu0 0.0
    %1347 = vmatpush1.msra.mxu0 0.0
    %1348 = vmatprep.subr.mxu0 0.0
    %1349 = vmatpush1.msra.mxu0 0.0
    %1350 = vmatprep.subr.mxu0 0.0
    %1351 = vmatpush1.msra.mxu0 0.0
    %1352 = vmatprep.subr.mxu0 0.0
    %1353 = vmatpush1.msra.mxu0 0.0
    %1354 = vmatprep.subr.mxu0 0.0
    %1355 = vmatpush1.msra.mxu0 0.0
    %1356 = vmatprep.subr.mxu0 0.0
    %1357 = vmatpush1.msra.mxu0 0.0
    %1358 = vmatprep.subr.mxu0 0.0
    %1359 = vmatpush1.msra.mxu0 0.0
    %1360 = vmatprep.subr.mxu0 0.0
    %1361 = vmatpush1.msra.mxu0 0.0
    %1362 = vmatprep.subr.mxu0 0.0
    %1363 = vmatpush1.msra.mxu0 0.0
    %1364 = vmatprep.subr.mxu0 0.0
    %1365 = vmatpush1.msra.mxu0 0.0
    %1366 = vmatprep.subr.mxu0 0.0
    %1367 = vmatpush1.msra.mxu0 0.0
    %1368 = vmatprep.subr.mxu0 0.0
    %1369 = vmatpush1.msra.mxu0 0.0
    %1370 = vmatprep.subr.mxu0 0.0
    %1371 = vmatpush1.msra.mxu0 0.0
    %1372 = vmatprep.subr.mxu0 0.0
    %1373 = vmatpush1.msra.mxu0 0.0
    %1374 = vmatprep.subr.mxu0 0.0
    %1375 = vmatpush1.msra.mxu0 0.0
    %1376 = vmatprep.subr.mxu0 0.0
    %1377 = vmatpush1.msra.mxu0 0.0
    %1378 = vmatprep.subr.mxu0 0.0
    %1379 = vmatpush1.msra.mxu0 0.0
    %1380 = vmatprep.subr.mxu0 0.0
    %1381 = vmatpush1.msra.mxu0 0.0
    %1382 = vmatprep.subr.mxu0 0.0
    %1383 = vmatpush1.msra.mxu0 0.0
    %1384 = vmatprep.subr.mxu0 0.0
    %1385 = vmatpush1.msra.mxu0 0.0
    %1386 = vmatprep.subr.mxu0 0.0
    %1387 = vmatpush1.msra.mxu0 0.0
    %1388 = vmatprep.mubr.f32.mxu0 0.0
    %1389 = vmatmul.mubr.f32.gmra.mrb[0].mxu0 %v1162
    %v1390 = vpop.f32.mrb[0].mxu0
    %v1391 = vadd.f32 %v1322, %v1390
    %v1392 = vpop.f32.mrb[0].mxu0
    %1393 = vdwg.mxu0
    %v1394 = vmul.f32 %v1240, %v1391
    %v1395 = vadd.f32 %v1110, %v1394
    %v1396 = vtanh.pop %v1395
    %v1397 = vsub.f32 1.0, %v1317
    %v1398 = vmul.f32 %v1397, %v1396
    %v1399 = vmul.f32 %v1317, 0.0
    %v1400 = vadd.f32 %v1398, %v1399
    %v1402 = vsel %vm162, %v1400, 0
    %1404 = vmatprep.subr.mxu0 0.0
    %1405 = vmatpush1.msra.mxu0 %v1148
    %1406 = vmatprep.subr.mxu0 0.0
    %1407 = vmatpush1.msra.mxu0 %v1149
    %1408 = vmatprep.subr.mxu0 0.0
    %1409 = vmatpush1.msra.mxu0 %v1150
    %1410 = vmatprep.subr.mxu0 0.0
    %1411 = vmatpush1.msra.mxu0 %v1151
    %1412 = vmatprep.subr.mxu0 0.0
    %1413 = vmatpush1.msra.mxu0 0.0
    %1414 = vmatprep.subr.mxu0 0.0
    %1415 = vmatpush1.msra.mxu0 0.0
    %1416 = vmatprep.subr.mxu0 0.0
    %1417 = vmatpush1.msra.mxu0 0.0
    %1418 = vmatprep.subr.mxu0 0.0
    %1419 = vmatpush1.msra.mxu0 0.0
    %1420 = vmatprep.subr.mxu0 0.0
    %1421 = vmatpush1.msra.mxu0 0.0
    %1422 = vmatprep.subr.mxu0 0.0
    %1423 = vmatpush1.msra.mxu0 0.0
    %1424 = vmatprep.subr.mxu0 0.0
    %1425 = vmatpush1.msra.mxu0 0.0
    %1426 = vmatprep.subr.mxu0 0.0
    %1427 = vmatpush1.msra.mxu0 0.0
    %1428 = vmatprep.subr.mxu0 0.0
    %1429 = vmatpush1.msra.mxu0 0.0
    %1430 = vmatprep.subr.mxu0 0.0
    %1431 = vmatpush1.msra.mxu0 0.0
    %1432 = vmatprep.subr.mxu0 0.0
    %1433 = vmatpush1.msra.mxu0 0.0
    %1434 = vmatprep.subr.mxu0 0.0
    %1435 = vmatpush1.msra.mxu0 0.0
    %1436 = vmatprep.subr.mxu0 0.0
    %1437 = vmatpush1.msra.mxu0 0.0
    %1438 = vmatprep.subr.mxu0 0.0
    %1439 = vmatpush1.msra.mxu0 0.0
    %1440 = vmatprep.subr.mxu0 0.0
    %1441 = vmatpush1.msra.mxu0 0.0
    %1442 = vmatprep.subr.mxu0 0.0
    %1443 = vmatpush1.msra.mxu0 0.0
    %1444 = vmatprep.subr.mxu0 0.0
    %1445 = vmatpush1.msra.mxu0 0.0
    %1446 = vmatprep.subr.mxu0 0.0
    %1447 = vmatpush1.msra.mxu0 0.0
    %1448 = vmatprep.subr.mxu0 0.0
    %1449 = vmatpush1.msra.mxu0 0.0
    %1450 = vmatprep.subr.mxu0 0.0
    %1451 = vmatpush1.msra.mxu0 0.0
    %1452 = vmatprep.subr.mxu0 0.0
    %1453 = vmatpush1.msra.mxu0 0.0
    %1454 = vmatprep.subr.mxu0 0.0
    %1455 = vmatpush1.msra.mxu0 0.0
    %1456 = vmatprep.subr.mxu0 0.0
    %1457 = vmatpush1.msra.mxu0 0.0
    %1458 = vmatprep.subr.mxu0 0.0
    %1459 = vmatpush1.msra.mxu0 0.0
    %1460 = vmatprep.subr.mxu0 0.0
    %1461 = vmatpush1.msra.mxu0 0.0
    %1462 = vmatprep.subr.mxu0 0.0
    %1463 = vmatpush1.msra.mxu0 0.0
    %1464 = vmatprep.subr.mxu0 0.0
    %1465 = vmatpush1.msra.mxu0 0.0
    %1466 = vmatprep.subr.mxu0 0.0
    %1467 = vmatpush1.msra.mxu0 0.0
    %1468 = vmatprep.mubr.f32.mxu0 0.0
    %1469 = vmatmul.mubr.f32.gmra.mrb[0].mxu0 %v1402
    %v1470 = vpop.f32.mrb[0].mxu0
    %v1471 = vadd.f32 0.0, %v1470
    %v1472 = vpop.f32.mrb[0].mxu0
    %1473 = vdwg.mxu0
    %v1474 = vadd.f32 %v883, %v1471
    %v1475 = vxor.u32 %v1474, 2147483648
    %v1476 = vmul.f32 %v1475, 1.442695
    %v1477 = vpow.pop %v1476
    %v1478 = vadd.f32 %v1477, 1.0
    %v1479 = vrcp.pop %v1478
    %v1480 = vmul.f32 1.0, %v1479
    %1481 = vmatprep.subr.mxu0 0.0
    %1482 = vmatpush1.msra.mxu0 %v1152
    %1483 = vmatprep.subr.mxu0 0.0
    %1484 = vmatpush1.msra.mxu0 %v1153
    %1485 = vmatprep.subr.mxu0 0.0
    %1486 = vmatpush1.msra.mxu0 %v1154
    %1487 = vmatprep.subr.mxu0 0.0
    %1488 = vmatpush1.msra.mxu0 %v1155
    %1489 = vmatprep.subr.mxu0 0.0
    %1490 = vmatpush1.msra.mxu0 0.0
    %1491 = vmatprep.subr.mxu0 0.0
    %1492 = vmatpush1.msra.mxu0 0.0
    %1493 = vmatprep.subr.mxu0 0.0
    %1494 = vmatpush1.msra.mxu0 0.0
    %1495 = vmatprep.subr.mxu0 0.0
    %1496 = vmatpush1.msra.mxu0 0.0
    %1497 = vmatprep.subr.mxu0 0.0
    %1498 = vmatpush1.msra.mxu0 0.0
    %1499 = vmatprep.subr.mxu0 0.0
    %1500 = vmatpush1.msra.mxu0 0.0
    %1501 = vmatprep.subr.mxu0 0.0
    %1502 = vmatpush1.msra.mxu0 0.0
    %1503 = vmatprep.subr.mxu0 0.0
    %1504 = vmatpush1.msra.mxu0 0.0
    %1505 = vmatprep.subr.mxu0 0.0
    %1506 = vmatpush1.msra.mxu0 0.0
    %1507 = vmatprep.subr.mxu0 0.0
    %1508 = vmatpush1.msra.mxu0 0.0
    %1509 = vmatprep.subr.mxu0 0.0
    %1510 = vmatpush1.msra.mxu0 0.0
    %1511 = vmatprep.subr.mxu0 0.0
    %1512 = vmatpush1.msra.mxu0 0.0
    %1513 = vmatprep.subr.mxu0 0.0
    %1514 = vmatpush1.msra.mxu0 0.0
    %1515 = vmatprep.subr.mxu0 0.0
    %1516 = vmatpush1.msra.mxu0 0.0
    %1517 = vmatprep.subr.mxu0 0.0
    %1518 = vmatpush1.msra.mxu0 0.0
    %1519 = vmatprep.subr.mxu0 0.0
    %1520 = vmatpush1.msra.mxu0 0.0
    %1521 = vmatprep.subr.mxu0 0.0
    %1522 = vmatpush1.msra.mxu0 0.0
    %1523 = vmatprep.subr.mxu0 0.0
    %1524 = vmatpush1.msra.mxu0 0.0
    %1525 = vmatprep.subr.mxu0 0.0
    %1526 = vmatpush1.msra.mxu0 0.0
    %1527 = vmatprep.subr.mxu0 0.0
    %1528 = vmatpush1.msra.mxu0 0.0
    %1529 = vmatprep.subr.mxu0 0.0
    %1530 = vmatpush1.msra.mxu0 0.0
    %1531 = vmatprep.subr.mxu0 0.0
    %1532 = vmatpush1.msra.mxu0 0.0
    %1533 = vmatprep.subr.mxu0 0.0
    %1534 = vmatpush1.msra.mxu0 0.0
    %1535 = vmatprep.subr.mxu0 0.0
    %1536 = vmatpush1.msra.mxu0 0.0
    %1537 = vmatprep.subr.mxu0 0.0
    %1538 = vmatpush1.msra.mxu0 0.0
    %1539 = vmatprep.subr.mxu0 0.0
    %1540 = vmatpush1.msra.mxu0 0.0
    %1541 = vmatprep.subr.mxu0 0.0
    %1542 = vmatpush1.msra.mxu0 0.0
    %1543 = vmatprep.subr.mxu0 0.0
    %1544 = vmatpush1.msra.mxu0 0.0
    %1545 = vmatprep.mubr.f32.mxu0 0.0
    %1546 = vmatmul.mubr.f32.gmra.mrb[0].mxu0 %v1402
    %v1547 = vpop.f32.mrb[0].mxu0
    %v1548 = vadd.f32 0.0, %v1547
    %v1549 = vpop.f32.mrb[0].mxu0
    %1550 = vdwg.mxu0
    %v1551 = vadd.f32 %v999, %v1548
    %v1552 = vxor.u32 %v1551, 2147483648
    %v1553 = vmul.f32 %v1552, 1.442695
    %v1554 = vpow.pop %v1553
    %v1555 = vadd.f32 %v1554, 1.0
    %v1556 = vrcp.pop %v1555
    %v1557 = vmul.f32 1.0, %v1556
    %1558 = vmatprep.subr.mxu0 0.0
    %1559 = vmatpush1.msra.mxu0 %v1156
    %1560 = vmatprep.subr.mxu0 0.0
    %1561 = vmatpush1.msra.mxu0 %v1157
    %1562 = vmatprep.subr.mxu0 0.0
    %1563 = vmatpush1.msra.mxu0 %v1158
    %1564 = vmatprep.subr.mxu0 0.0
    %1565 = vmatpush1.msra.mxu0 %v1159
    %1566 = vmatprep.subr.mxu0 0.0
    %1567 = vmatpush1.msra.mxu0 0.0
    %1568 = vmatprep.subr.mxu0 0.0
    %1569 = vmatpush1.msra.mxu0 0.0
    %1570 = vmatprep.subr.mxu0 0.0
    %1571 = vmatpush1.msra.mxu0 0.0
    %1572 = vmatprep.subr.mxu0 0.0
    %1573 = vmatpush1.msra.mxu0 0.0
    %1574 = vmatprep.subr.mxu0 0.0
    %1575 = vmatpush1.msra.mxu0 0.0
    %1576 = vmatprep.subr.mxu0 0.0
    %1577 = vmatpush1.msra.mxu0 0.0
    %1578 = vmatprep.subr.mxu0 0.0
    %1579 = vmatpush1.msra.mxu0 0.0
    %1580 = vmatprep.subr.mxu0 0.0
    %1581 = vmatpush1.msra.mxu0 0.0
    %1582 = vmatprep.subr.mxu0 0.0
    %1583 = vmatpush1.msra.mxu0 0.0
    %1584 = vmatprep.subr.mxu0 0.0
    %1585 = vmatpush1.msra.mxu0 0.0
    %1586 = vmatprep.subr.mxu0 0.0
    %1587 = vmatpush1.msra.mxu0 0.0
    %1588 = vmatprep.subr.mxu0 0.0
    %1589 = vmatpush1.msra.mxu0 0.0
    %1590 = vmatprep.subr.mxu0 0.0
    %1591 = vmatpush1.msra.mxu0 0.0
    %1592 = vmatprep.subr.mxu0 0.0
    %1593 = vmatpush1.msra.mxu0 0.0
    %1594 = vmatprep.subr.mxu0 0.0
    %1595 = vmatpush1.msra.mxu0 0.0
    %1596 = vmatprep.subr.mxu0 0.0
    %1597 = vmatpush1.msra.mxu0 0.0
    %1598 = vmatprep.subr.mxu0 0.0
    %1599 = vmatpush1.msra.mxu0 0.0
    %1600 = vmatprep.subr.mxu0 0.0
    %1601 = vmatpush1.msra.mxu0 0.0
    %1602 = vmatprep.subr.mxu0 0.0
    %1603 = vmatpush1.msra.mxu0 0.0
    %1604 = vmatprep.subr.mxu0 0.0
    %1605 = vmatpush1.msra.mxu0 0.0
    %1606 = vmatprep.subr.mxu0 0.0
    %1607 = vmatpush1.msra.mxu0 0.0
    %1608 = vmatprep.subr.mxu0 0.0
    %1609 = vmatpush1.msra.mxu0 0.0
    %1610 = vmatprep.subr.mxu0 0.0
    %1611 = vmatpush1.msra.mxu0 0.0
    %1612 = vmatprep.subr.mxu0 0.0
    %1613 = vmatpush1.msra.mxu0 0.0
    %1614 = vmatprep.subr.mxu0 0.0
    %1615 = vmatpush1.msra.mxu0 0.0
    %1616 = vmatprep.subr.mxu0 0.0
    %1617 = vmatpush1.msra.mxu0 0.0
    %1618 = vmatprep.subr.mxu0 0.0
    %1619 = vmatpush1.msra.mxu0 0.0
    %1620 = vmatprep.subr.mxu0 0.0
    %1621 = vmatpush1.msra.mxu0 0.0
    %1622 = vmatprep.mubr.f32.mxu0 0.0
    %1623 = vmatmul.mubr.f32.gmra.mrb[0].mxu0 %v1402
    %v1624 = vpop.f32.mrb[0].mxu0
    %v1625 = vadd.f32 %v1322, %v1624
    %v1626 = vpop.f32.mrb[0].mxu0
    %1627 = vdwg.mxu0
    %v1628 = vmul.f32 %v1480, %v1625
    %v1629 = vadd.f32 %v1115, %v1628
    %v1630 = vtanh.pop %v1629
    %v1631 = vsub.f32 1.0, %v1557
    %v1632 = vmul.f32 %v1631, %v1630
    %v1633 = vmul.f32 %v1557, %v1400
    %v1634 = vadd.f32 %v1632, %v1633
    %v1636 = vsel %vm162, %v1634, 0
    %1638 = vmatprep.subr.mxu0 0.0
    %1639 = vmatpush1.msra.mxu0 %v1148
    %1640 = vmatprep.subr.mxu0 0.0
    %1641 = vmatpush1.msra.mxu0 %v1149
    %1642 = vmatprep.subr.mxu0 0.0
    %1643 = vmatpush1.msra.mxu0 %v1150
    %1644 = vmatprep.subr.mxu0 0.0
    %1645 = vmatpush1.msra.mxu0 %v1151
    %1646 = vmatprep.subr.mxu0 0.0
    %1647 = vmatpush1.msra.mxu0 0.0
    %1648 = vmatprep.subr.mxu0 0.0
    %1649 = vmatpush1.msra.mxu0 0.0
    %1650 = vmatprep.subr.mxu0 0.0
    %1651 = vmatpush1.msra.mxu0 0.0
    %1652 = vmatprep.subr.mxu0 0.0
    %1653 = vmatpush1.msra.mxu0 0.0
    %1654 = vmatprep.subr.mxu0 0.0
    %1655 = vmatpush1.msra.mxu0 0.0
    %1656 = vmatprep.subr.mxu0 0.0
    %1657 = vmatpush1.msra.mxu0 0.0
    %1658 = vmatprep.subr.mxu0 0.0
    %1659 = vmatpush1.msra.mxu0 0.0
    %1660 = vmatprep.subr.mxu0 0.0
    %1661 = vmatpush1.msra.mxu0 0.0
    %1662 = vmatprep.subr.mxu0 0.0
    %1663 = vmatpush1.msra.mxu0 0.0
    %1664 = vmatprep.subr.mxu0 0.0
    %1665 = vmatpush1.msra.mxu0 0.0
    %1666 = vmatprep.subr.mxu0 0.0
    %1667 = vmatpush1.msra.mxu0 0.0
    %1668 = vmatprep.subr.mxu0 0.0
    %1669 = vmatpush1.msra.mxu0 0.0
    %1670 = vmatprep.subr.mxu0 0.0
    %1671 = vmatpush1.msra.mxu0 0.0
    %1672 = vmatprep.subr.mxu0 0.0
    %1673 = vmatpush1.msra.mxu0 0.0
    %1674 = vmatprep.subr.mxu0 0.0
    %1675 = vmatpush1.msra.mxu0 0.0
    %1676 = vmatprep.subr.mxu0 0.0
    %1677 = vmatpush1.msra.mxu0 0.0
    %1678 = vmatprep.subr.mxu0 0.0
    %1679 = vmatpush1.msra.mxu0 0.0
    %1680 = vmatprep.subr.mxu0 0.0
    %1681 = vmatpush1.msra.mxu0 0.0
    %1682 = vmatprep.subr.mxu0 0.0
    %1683 = vmatpush1.msra.mxu0 0.0
    %1684 = vmatprep.subr.mxu0 0.0
    %1685 = vmatpush1.msra.mxu0 0.0
    %1686 = vmatprep.subr.mxu0 0.0
    %1687 = vmatpush1.msra.mxu0 0.0
    %1688 = vmatprep.subr.mxu0 0.0
    %1689 = vmatpush1.msra.mxu0 0.0
    %1690 = vmatprep.subr.mxu0 0.0
    %1691 = vmatpush1.msra.mxu0 0.0
    %1692 = vmatprep.subr.mxu0 0.0
    %1693 = vmatpush1.msra.mxu0 0.0
    %1694 = vmatprep.subr.mxu0 0.0
    %1695 = vmatpush1.msra.mxu0 0.0
    %1696 = vmatprep.subr.mxu0 0.0
    %1697 = vmatpush1.msra.mxu0 0.0
    %1698 = vmatprep.subr.mxu0 0.0
    %1699 = vmatpush1.msra.mxu0 0.0
    %1700 = vmatprep.subr.mxu0 0.0
    %1701 = vmatpush1.msra.mxu0 0.0
    %1702 = vmatprep.mubr.f32.mxu0 0.0
    %1703 = vmatmul.mubr.f32.gmra.mrb[0].mxu0 %v1636
    %v1704 = vpop.f32.mrb[0].mxu0
    %v1705 = vadd.f32 0.0, %v1704
    %v1706 = vpop.f32.mrb[0].mxu0
    %1707 = vdwg.mxu0
    %v1708 = vadd.f32 %v888, %v1705
    %v1709 = vxor.u32 %v1708, 2147483648
    %v1710 = vmul.f32 %v1709, 1.442695
    %v1711 = vpow.pop %v1710
    %v1712 = vadd.f32 %v1711, 1.0
    %v1713 = vrcp.pop %v1712
    %v1714 = vmul.f32 1.0, %v1713
    %1715 = vmatprep.subr.mxu0 0.0
    %1716 = vmatpush1.msra.mxu0 %v1152
    %1717 = vmatprep.subr.mxu0 0.0
    %1718 = vmatpush1.msra.mxu0 %v1153
    %1719 = vmatprep.subr.mxu0 0.0
    %1720 = vmatpush1.msra.mxu0 %v1154
    %1721 = vmatprep.subr.mxu0 0.0
    %1722 = vmatpush1.msra.mxu0 %v1155
    %1723 = vmatprep.subr.mxu0 0.0
    %1724 = vmatpush1.msra.mxu0 0.0
    %1725 = vmatprep.subr.mxu0 0.0
    %1726 = vmatpush1.msra.mxu0 0.0
    %1727 = vmatprep.subr.mxu0 0.0
    %1728 = vmatpush1.msra.mxu0 0.0
    %1729 = vmatprep.subr.mxu0 0.0
    %1730 = vmatpush1.msra.mxu0 0.0
    %1731 = vmatprep.subr.mxu0 0.0
    %1732 = vmatpush1.msra.mxu0 0.0
    %1733 = vmatprep.subr.mxu0 0.0
    %1734 = vmatpush1.msra.mxu0 0.0
    %1735 = vmatprep.subr.mxu0 0.0
    %1736 = vmatpush1.msra.mxu0 0.0
    %1737 = vmatprep.subr.mxu0 0.0
    %1738 = vmatpush1.msra.mxu0 0.0
    %1739 = vmatprep.subr.mxu0 0.0
    %1740 = vmatpush1.msra.mxu0 0.0
    %1741 = vmatprep.subr.mxu0 0.0
    %1742 = vmatpush1.msra.mxu0 0.0
    %1743 = vmatprep.subr.mxu0 0.0
    %1744 = vmatpush1.msra.mxu0 0.0
    %1745 = vmatprep.subr.mxu0 0.0
    %1746 = vmatpush1.msra.mxu0 0.0
    %1747 = vmatprep.subr.mxu0 0.0
    %1748 = vmatpush1.msra.mxu0 0.0
    %1749 = vmatprep.subr.mxu0 0.0
    %1750 = vmatpush1.msra.mxu0 0.0
    %1751 = vmatprep.subr.mxu0 0.0
    %1752 = vmatpush1.msra.mxu0 0.0
    %1753 = vmatprep.subr.mxu0 0.0
    %1754 = vmatpush1.msra.mxu0 0.0
    %1755 = vmatprep.subr.mxu0 0.0
    %1756 = vmatpush1.msra.mxu0 0.0
    %1757 = vmatprep.subr.mxu0 0.0
    %1758 = vmatpush1.msra.mxu0 0.0
    %1759 = vmatprep.subr.mxu0 0.0
    %1760 = vmatpush1.msra.mxu0 0.0
    %1761 = vmatprep.subr.mxu0 0.0
    %1762 = vmatpush1.msra.mxu0 0.0
    %1763 = vmatprep.subr.mxu0 0.0
    %1764 = vmatpush1.msra.mxu0 0.0
    %1765 = vmatprep.subr.mxu0 0.0
    %1766 = vmatpush1.msra.mxu0 0.0
    %1767 = vmatprep.subr.mxu0 0.0
    %1768 = vmatpush1.msra.mxu0 0.0
    %1769 = vmatprep.subr.mxu0 0.0
    %1770 = vmatpush1.msra.mxu0 0.0
    %1771 = vmatprep.subr.mxu0 0.0
    %1772 = vmatpush1.msra.mxu0 0.0
    %1773 = vmatprep.subr.mxu0 0.0
    %1774 = vmatpush1.msra.mxu0 0.0
    %1775 = vmatprep.subr.mxu0 0.0
    %1776 = vmatpush1.msra.mxu0 0.0
    %1777 = vmatprep.subr.mxu0 0.0
    %1778 = vmatpush1.msra.mxu0 0.0
    %1779 = vmatprep.mubr.f32.mxu0 0.0
    %1780 = vmatmul.mubr.f32.gmra.mrb[0].mxu0 %v1636
    %v1781 = vpop.f32.mrb[0].mxu0
    %v1782 = vadd.f32 0.0, %v1781
    %v1783 = vpop.f32.mrb[0].mxu0
    %1784 = vdwg.mxu0
    %v1785 = vadd.f32 %v1004, %v1782
    %v1786 = vxor.u32 %v1785, 2147483648
    %v1787 = vmul.f32 %v1786, 1.442695
    %v1788 = vpow.pop %v1787
    %v1789 = vadd.f32 %v1788, 1.0
    %v1790 = vrcp.pop %v1789
    %v1791 = vmul.f32 1.0, %v1790
    %1792 = vmatprep.subr.mxu0 0.0
    %1793 = vmatpush1.msra.mxu0 %v1156
    %1794 = vmatprep.subr.mxu0 0.0
    %1795 = vmatpush1.msra.mxu0 %v1157
    %1796 = vmatprep.subr.mxu0 0.0
    %1797 = vmatpush1.msra.mxu0 %v1158
    %1798 = vmatprep.subr.mxu0 0.0
    %1799 = vmatpush1.msra.mxu0 %v1159
    %1800 = vmatprep.subr.mxu0 0.0
    %1801 = vmatpush1.msra.mxu0 0.0
    %1802 = vmatprep.subr.mxu0 0.0
    %1803 = vmatpush1.msra.mxu0 0.0
    %1804 = vmatprep.subr.mxu0 0.0
    %1805 = vmatpush1.msra.mxu0 0.0
    %1806 = vmatprep.subr.mxu0 0.0
    %1807 = vmatpush1.msra.mxu0 0.0
    %1808 = vmatprep.subr.mxu0 0.0
    %1809 = vmatpush1.msra.mxu0 0.0
    %1810 = vmatprep.subr.mxu0 0.0
    %1811 = vmatpush1.msra.mxu0 0.0
    %1812 = vmatprep.subr.mxu0 0.0
    %1813 = vmatpush1.msra.mxu0 0.0
    %1814 = vmatprep.subr.mxu0 0.0
    %1815 = vmatpush1.msra.mxu0 0.0
    %1816 = vmatprep.subr.mxu0 0.0
    %1817 = vmatpush1.msra.mxu0 0.0
    %1818 = vmatprep.subr.mxu0 0.0
    %1819 = vmatpush1.msra.mxu0 0.0
    %1820 = vmatprep.subr.mxu0 0.0
    %1821 = vmatpush1.msra.mxu0 0.0
    %1822 = vmatprep.subr.mxu0 0.0
    %1823 = vmatpush1.msra.mxu0 0.0
    %1824 = vmatprep.subr.mxu0 0.0
    %1825 = vmatpush1.msra.mxu0 0.0
    %1826 = vmatprep.subr.mxu0 0.0
    %1827 = vmatpush1.msra.mxu0 0.0
    %1828 = vmatprep.subr.mxu0 0.0
    %1829 = vmatpush1.msra.mxu0 0.0
    %1830 = vmatprep.subr.mxu0 0.0
    %1831 = vmatpush1.msra.mxu0 0.0
    %1832 = vmatprep.subr.mxu0 0.0
    %1833 = vmatpush1.msra.mxu0 0.0
    %1834 = vmatprep.subr.mxu0 0.0
    %1835 = vmatpush1.msra.mxu0 0.0
    %1836 = vmatprep.subr.mxu0 0.0
    %1837 = vmatpush1.msra.mxu0 0.0
    %1838 = vmatprep.subr.mxu0 0.0
    %1839 = vmatpush1.msra.mxu0 0.0
    %1840 = vmatprep.subr.mxu0 0.0
    %1841 = vmatpush1.msra.mxu0 0.0
    %1842 = vmatprep.subr.mxu0 0.0
    %1843 = vmatpush1.msra.mxu0 0.0
    %1844 = vmatprep.subr.mxu0 0.0
    %1845 = vmatpush1.msra.mxu0 0.0
    %1846 = vmatprep.subr.mxu0 0.0
    %1847 = vmatpush1.msra.mxu0 0.0
    %1848 = vmatprep.subr.mxu0 0.0
    %1849 = vmatpush1.msra.mxu0 0.0
    %1850 = vmatprep.subr.mxu0 0.0
    %1851 = vmatpush1.msra.mxu0 0.0
    %1852 = vmatprep.subr.mxu0 0.0
    %1853 = vmatpush1.msra.mxu0 0.0
    %1854 = vmatprep.subr.mxu0 0.0
    %1855 = vmatpush1.msra.mxu0 0.0
    %1856 = vmatprep.mubr.f32.mxu0 0.0
    %1857 = vmatmul.mubr.f32.gmra.mrb[0].mxu0 %v1636
    %v1858 = vpop.f32.mrb[0].mxu0
    %v1859 = vadd.f32 %v1322, %v1858
    %v1860 = vpop.f32.mrb[0].mxu0
    %1861 = vdwg.mxu0
    %v1862 = vmul.f32 %v1714, %v1859
    %v1863 = vadd.f32 %v1120, %v1862
    %v1864 = vtanh.pop %v1863
    %v1865 = vsub.f32 1.0, %v1791
    %v1866 = vmul.f32 %v1865, %v1864
    %v1867 = vmul.f32 %v1791, %v1634
    %v1868 = vadd.f32 %v1866, %v1867
    %v1870 = vsel %vm162, %v1868, 0
    %1872 = vmatprep.subr.mxu0 0.0
    %1873 = vmatpush1.msra.mxu0 %v1148
    %1874 = vmatprep.subr.mxu0 0.0
    %1875 = vmatpush1.msra.mxu0 %v1149
    %1876 = vmatprep.subr.mxu0 0.0
    %1877 = vmatpush1.msra.mxu0 %v1150
    %1878 = vmatprep.subr.mxu0 0.0
    %1879 = vmatpush1.msra.mxu0 %v1151
    %1880 = vmatprep.subr.mxu0 0.0
    %1881 = vmatpush1.msra.mxu0 0.0
    %1882 = vmatprep.subr.mxu0 0.0
    %1883 = vmatpush1.msra.mxu0 0.0
    %1884 = vmatprep.subr.mxu0 0.0
    %1885 = vmatpush1.msra.mxu0 0.0
    %1886 = vmatprep.subr.mxu0 0.0
    %1887 = vmatpush1.msra.mxu0 0.0
    %1888 = vmatprep.subr.mxu0 0.0
    %1889 = vmatpush1.msra.mxu0 0.0
    %1890 = vmatprep.subr.mxu0 0.0
    %1891 = vmatpush1.msra.mxu0 0.0
    %1892 = vmatprep.subr.mxu0 0.0
    %1893 = vmatpush1.msra.mxu0 0.0
    %1894 = vmatprep.subr.mxu0 0.0
    %1895 = vmatpush1.msra.mxu0 0.0
    %1896 = vmatprep.subr.mxu0 0.0
    %1897 = vmatpush1.msra.mxu0 0.0
    %1898 = vmatprep.subr.mxu0 0.0
    %1899 = vmatpush1.msra.mxu0 0.0
    %1900 = vmatprep.subr.mxu0 0.0
    %1901 = vmatpush1.msra.mxu0 0.0
    %1902 = vmatprep.subr.mxu0 0.0
    %1903 = vmatpush1.msra.mxu0 0.0
    %1904 = vmatprep.subr.mxu0 0.0
    %1905 = vmatpush1.msra.mxu0 0.0
    %1906 = vmatprep.subr.mxu0 0.0
    %1907 = vmatpush1.msra.mxu0 0.0
    %1908 = vmatprep.subr.mxu0 0.0
    %1909 = vmatpush1.msra.mxu0 0.0
    %1910 = vmatprep.subr.mxu0 0.0
    %1911 = vmatpush1.msra.mxu0 0.0
    %1912 = vmatprep.subr.mxu0 0.0
    %1913 = vmatpush1.msra.mxu0 0.0
    %1914 = vmatprep.subr.mxu0 0.0
    %1915 = vmatpush1.msra.mxu0 0.0
    %1916 = vmatprep.subr.mxu0 0.0
    %1917 = vmatpush1.msra.mxu0 0.0
    %1918 = vmatprep.subr.mxu0 0.0
    %1919 = vmatpush1.msra.mxu0 0.0
    %1920 = vmatprep.subr.mxu0 0.0
    %1921 = vmatpush1.msra.mxu0 0.0
    %1922 = vmatprep.subr.mxu0 0.0
    %1923 = vmatpush1.msra.mxu0 0.0
    %1924 = vmatprep.subr.mxu0 0.0
    %1925 = vmatpush1.msra.mxu0 0.0
    %1926 = vmatprep.subr.mxu0 0.0
    %1927 = vmatpush1.msra.mxu0 0.0
    %1928 = vmatprep.subr.mxu0 0.0
    %1929 = vmatpush1.msra.mxu0 0.0
    %1930 = vmatprep.subr.mxu0 0.0
    %1931 = vmatpush1.msra.mxu0 0.0
    %1932 = vmatprep.subr.mxu0 0.0
    %1933 = vmatpush1.msra.mxu0 0.0
    %1934 = vmatprep.subr.mxu0 0.0
    %1935 = vmatpush1.msra.mxu0 0.0
    %1936 = vmatprep.mubr.f32.mxu0 0.0
    %1937 = vmatmul.mubr.f32.gmra.mrb[0].mxu0 %v1870
    %v1938 = vpop.f32.mrb[0].mxu0
    %v1939 = vadd.f32 0.0, %v1938
    %v1940 = vpop.f32.mrb[0].mxu0
    %1941 = vdwg.mxu0
    %v1942 = vadd.f32 %v893, %v1939
    %v1943 = vxor.u32 %v1942, 2147483648
    %v1944 = vmul.f32 %v1943, 1.442695
    %v1945 = vpow.pop %v1944
    %v1946 = vadd.f32 %v1945, 1.0
    %v1947 = vrcp.pop %v1946
    %v1948 = vmul.f32 1.0, %v1947
    %1949 = vmatprep.subr.mxu0 0.0
    %1950 = vmatpush1.msra.mxu0 %v1152
    %1951 = vmatprep.subr.mxu0 0.0
    %1952 = vmatpush1.msra.mxu0 %v1153
    %1953 = vmatprep.subr.mxu0 0.0
    %1954 = vmatpush1.msra.mxu0 %v1154
    %1955 = vmatprep.subr.mxu0 0.0
    %1956 = vmatpush1.msra.mxu0 %v1155
    %1957 = vmatprep.subr.mxu0 0.0
    %1958 = vmatpush1.msra.mxu0 0.0
    %1959 = vmatprep.subr.mxu0 0.0
    %1960 = vmatpush1.msra.mxu0 0.0
    %1961 = vmatprep.subr.mxu0 0.0
    %1962 = vmatpush1.msra.mxu0 0.0
    %1963 = vmatprep.subr.mxu0 0.0
    %1964 = vmatpush1.msra.mxu0 0.0
    %1965 = vmatprep.subr.mxu0 0.0
    %1966 = vmatpush1.msra.mxu0 0.0
    %1967 = vmatprep.subr.mxu0 0.0
    %1968 = vmatpush1.msra.mxu0 0.0
    %1969 = vmatprep.subr.mxu0 0.0
    %1970 = vmatpush1.msra.mxu0 0.0
    %1971 = vmatprep.subr.mxu0 0.0
    %1972 = vmatpush1.msra.mxu0 0.0
    %1973 = vmatprep.subr.mxu0 0.0
    %1974 = vmatpush1.msra.mxu0 0.0
    %1975 = vmatprep.subr.mxu0 0.0
    %1976 = vmatpush1.msra.mxu0 0.0
    %1977 = vmatprep.subr.mxu0 0.0
    %1978 = vmatpush1.msra.mxu0 0.0
    %1979 = vmatprep.subr.mxu0 0.0
    %1980 = vmatpush1.msra.mxu0 0.0
    %1981 = vmatprep.subr.mxu0 0.0
    %1982 = vmatpush1.msra.mxu0 0.0
    %1983 = vmatprep.subr.mxu0 0.0
    %1984 = vmatpush1.msra.mxu0 0.0
    %1985 = vmatprep.subr.mxu0 0.0
    %1986 = vmatpush1.msra.mxu0 0.0
    %1987 = vmatprep.subr.mxu0 0.0
    %1988 = vmatpush1.msra.mxu0 0.0
    %1989 = vmatprep.subr.mxu0 0.0
    %1990 = vmatpush1.msra.mxu0 0.0
    %1991 = vmatprep.subr.mxu0 0.0
    %1992 = vmatpush1.msra.mxu0 0.0
    %1993 = vmatprep.subr.mxu0 0.0
    %1994 = vmatpush1.msra.mxu0 0.0
    %1995 = vmatprep.subr.mxu0 0.0
    %1996 = vmatpush1.msra.mxu0 0.0
    %1997 = vmatprep.subr.mxu0 0.0
    %1998 = vmatpush1.msra.mxu0 0.0
    %1999 = vmatprep.subr.mxu0 0.0
    %2000 = vmatpush1.msra.mxu0 0.0
    %2001 = vmatprep.subr.mxu0 0.0
    %2002 = vmatpush1.msra.mxu0 0.0
    %2003 = vmatprep.subr.mxu0 0.0
    %2004 = vmatpush1.msra.mxu0 0.0
    %2005 = vmatprep.subr.mxu0 0.0
    %2006 = vmatpush1.msra.mxu0 0.0
    %2007 = vmatprep.subr.mxu0 0.0
    %2008 = vmatpush1.msra.mxu0 0.0
    %2009 = vmatprep.subr.mxu0 0.0
    %2010 = vmatpush1.msra.mxu0 0.0
    %2011 = vmatprep.subr.mxu0 0.0
    %2012 = vmatpush1.msra.mxu0 0.0
    %2013 = vmatprep.mubr.f32.mxu0 0.0
    %2014 = vmatmul.mubr.f32.gmra.mrb[0].mxu0 %v1870
    %v2015 = vpop.f32.mrb[0].mxu0
    %v2016 = vadd.f32 0.0, %v2015
    %v2017 = vpop.f32.mrb[0].mxu0
    %2018 = vdwg.mxu0
    %v2019 = vadd.f32 %v1009, %v2016
    %v2020 = vxor.u32 %v2019, 2147483648
    %v2021 = vmul.f32 %v2020, 1.442695
    %v2022 = vpow.pop %v2021
    %v2023 = vadd.f32 %v2022, 1.0
    %v2024 = vrcp.pop %v2023
    %v2025 = vmul.f32 1.0, %v2024
    %2026 = vmatprep.subr.mxu0 0.0
    %2027 = vmatpush1.msra.mxu0 %v1156
    %2028 = vmatprep.subr.mxu0 0.0
    %2029 = vmatpush1.msra.mxu0 %v1157
    %2030 = vmatprep.subr.mxu0 0.0
    %2031 = vmatpush1.msra.mxu0 %v1158
    %2032 = vmatprep.subr.mxu0 0.0
    %2033 = vmatpush1.msra.mxu0 %v1159
    %2034 = vmatprep.subr.mxu0 0.0
    %2035 = vmatpush1.msra.mxu0 0.0
    %2036 = vmatprep.subr.mxu0 0.0
    %2037 = vmatpush1.msra.mxu0 0.0
    %2038 = vmatprep.subr.mxu0 0.0
    %2039 = vmatpush1.msra.mxu0 0.0
    %2040 = vmatprep.subr.mxu0 0.0
    %2041 = vmatpush1.msra.mxu0 0.0
    %2042 = vmatprep.subr.mxu0 0.0
    %2043 = vmatpush1.msra.mxu0 0.0
    %2044 = vmatprep.subr.mxu0 0.0
    %2045 = vmatpush1.msra.mxu0 0.0
    %2046 = vmatprep.subr.mxu0 0.0
    %2047 = vmatpush1.msra.mxu0 0.0
    %2048 = vmatprep.subr.mxu0 0.0
    %2049 = vmatpush1.msra.mxu0 0.0
    %2050 = vmatprep.subr.mxu0 0.0
    %2051 = vmatpush1.msra.mxu0 0.0
    %2052 = vmatprep.subr.mxu0 0.0
    %2053 = vmatpush1.msra.mxu0 0.0
    %2054 = vmatprep.subr.mxu0 0.0
    %2055 = vmatpush1.msra.mxu0 0.0
    %2056 = vmatprep.subr.mxu0 0.0
    %2057 = vmatpush1.msra.mxu0 0.0
    %2058 = vmatprep.subr.mxu0 0.0
    %2059 = vmatpush1.msra.mxu0 0.0
    %2060 = vmatprep.subr.mxu0 0.0
    %2061 = vmatpush1.msra.mxu0 0.0
    %2062 = vmatprep.subr.mxu0 0.0
    %2063 = vmatpush1.msra.mxu0 0.0
    %2064 = vmatprep.subr.mxu0 0.0
    %2065 = vmatpush1.msra.mxu0 0.0
    %2066 = vmatprep.subr.mxu0 0.0
    %2067 = vmatpush1.msra.mxu0 0.0
    %2068 = vmatprep.subr.mxu0 0.0
    %2069 = vmatpush1.msra.mxu0 0.0
    %2070 = vmatprep.subr.mxu0 0.0
    %2071 = vmatpush1.msra.mxu0 0.0
    %2072 = vmatprep.subr.mxu0 0.0
    %2073 = vmatpush1.msra.mxu0 0.0
    %2074 = vmatprep.subr.mxu0 0.0
    %2075 = vmatpush1.msra.mxu0 0.0
    %2076 = vmatprep.subr.mxu0 0.0
    %2077 = vmatpush1.msra.mxu0 0.0
    %2078 = vmatprep.subr.mxu0 0.0
    %2079 = vmatpush1.msra.mxu0 0.0
    %2080 = vmatprep.subr.mxu0 0.0
    %2081 = vmatpush1.msra.mxu0 0.0
    %2082 = vmatprep.subr.mxu0 0.0
    %2083 = vmatpush1.msra.mxu0 0.0
    %2084 = vmatprep.subr.mxu0 0.0
    %2085 = vmatpush1.msra.mxu0 0.0
    %2086 = vmatprep.subr.mxu0 0.0
    %2087 = vmatpush1.msra.mxu0 0.0
    %2088 = vmatprep.subr.mxu0 0.0
    %2089 = vmatpush1.msra.mxu0 0.0
    %2090 = vmatprep.mubr.f32.mxu0 0.0
    %2091 = vmatmul.mubr.f32.gmra.mrb[0].mxu0 %v1870
    %v2092 = vpop.f32.mrb[0].mxu0
    %v2093 = vadd.f32 %v1322, %v2092
    %v2094 = vpop.f32.mrb[0].mxu0
    %2095 = vdwg.mxu0
    %v2096 = vmul.f32 %v1948, %v2093
    %v2097 = vadd.f32 %v1125, %v2096
    %v2098 = vtanh.pop %v2097
    %v2099 = vsub.f32 1.0, %v2025
    %v2100 = vmul.f32 %v2099, %v2098
    %v2101 = vmul.f32 %v2025, %v1868
    %v2102 = vadd.f32 %v2100, %v2101
    %v2104 = vsel %vm162, %v2102, 0
    %2106 = vmatprep.subr.mxu0 0.0
    %2107 = vmatpush1.msra.mxu0 %v1148
    %2108 = vmatprep.subr.mxu0 0.0
    %2109 = vmatpush1.msra.mxu0 %v1149
    %2110 = vmatprep.subr.mxu0 0.0
    %2111 = vmatpush1.msra.mxu0 %v1150
    %2112 = vmatprep.subr.mxu0 0.0
    %2113 = vmatpush1.msra.mxu0 %v1151
    %2114 = vmatprep.subr.mxu0 0.0
    %2115 = vmatpush1.msra.mxu0 0.0
    %2116 = vmatprep.subr.mxu0 0.0
    %2117 = vmatpush1.msra.mxu0 0.0
    %2118 = vmatprep.subr.mxu0 0.0
    %2119 = vmatpush1.msra.mxu0 0.0
    %2120 = vmatprep.subr.mxu0 0.0
    %2121 = vmatpush1.msra.mxu0 0.0
    %2122 = vmatprep.subr.mxu0 0.0
    %2123 = vmatpush1.msra.mxu0 0.0
    %2124 = vmatprep.subr.mxu0 0.0
    %2125 = vmatpush1.msra.mxu0 0.0
    %2126 = vmatprep.subr.mxu0 0.0
    %2127 = vmatpush1.msra.mxu0 0.0
    %2128 = vmatprep.subr.mxu0 0.0
    %2129 = vmatpush1.msra.mxu0 0.0
    %2130 = vmatprep.subr.mxu0 0.0
    %2131 = vmatpush1.msra.mxu0 0.0
    %2132 = vmatprep.subr.mxu0 0.0
    %2133 = vmatpush1.msra.mxu0 0.0
    %2134 = vmatprep.subr.mxu0 0.0
    %2135 = vmatpush1.msra.mxu0 0.0
    %2136 = vmatprep.subr.mxu0 0.0
    %2137 = vmatpush1.msra.mxu0 0.0
    %2138 = vmatprep.subr.mxu0 0.0
    %2139 = vmatpush1.msra.mxu0 0.0
    %2140 = vmatprep.subr.mxu0 0.0
    %2141 = vmatpush1.msra.mxu0 0.0
    %2142 = vmatprep.subr.mxu0 0.0
    %2143 = vmatpush1.msra.mxu0 0.0
    %2144 = vmatprep.subr.mxu0 0.0
    %2145 = vmatpush1.msra.mxu0 0.0
    %2146 = vmatprep.subr.mxu0 0.0
    %2147 = vmatpush1.msra.mxu0 0.0
    %2148 = vmatprep.subr.mxu0 0.0
    %2149 = vmatpush1.msra.mxu0 0.0
    %2150 = vmatprep.subr.mxu0 0.0
    %2151 = vmatpush1.msra.mxu0 0.0
    %2152 = vmatprep.subr.mxu0 0.0
    %2153 = vmatpush1.msra.mxu0 0.0
    %2154 = vmatprep.subr.mxu0 0.0
    %2155 = vmatpush1.msra.mxu0 0.0
    %2156 = vmatprep.subr.mxu0 0.0
    %2157 = vmatpush1.msra.mxu0 0.0
    %2158 = vmatprep.subr.mxu0 0.0
    %2159 = vmatpush1.msra.mxu0 0.0
    %2160 = vmatprep.subr.mxu0 0.0
    %2161 = vmatpush1.msra.mxu0 0.0
    %2162 = vmatprep.subr.mxu0 0.0
    %2163 = vmatpush1.msra.mxu0 0.0
    %2164 = vmatprep.subr.mxu0 0.0
    %2165 = vmatpush1.msra.mxu0 0.0
    %2166 = vmatprep.subr.mxu0 0.0
    %2167 = vmatpush1.msra.mxu0 0.0
    %2168 = vmatprep.subr.mxu0 0.0
    %2169 = vmatpush1.msra.mxu0 0.0
    %2170 = vmatprep.mubr.f32.mxu0 0.0
    %2171 = vmatmul.mubr.f32.gmra.mrb[0].mxu0 %v2104
    %v2172 = vpop.f32.mrb[0].mxu0
    %v2173 = vadd.f32 0.0, %v2172
    %v2174 = vpop.f32.mrb[0].mxu0
    %2175 = vdwg.mxu0
    %v2176 = vadd.f32 %v898, %v2173
    %v2177 = vxor.u32 %v2176, 2147483648
    %v2178 = vmul.f32 %v2177, 1.442695
    %v2179 = vpow.pop %v2178
    %v2180 = vadd.f32 %v2179, 1.0
    %v2181 = vrcp.pop %v2180
    %v2182 = vmul.f32 1.0, %v2181
    %2183 = vmatprep.subr.mxu0 0.0
    %2184 = vmatpush1.msra.mxu0 %v1152
    %2185 = vmatprep.subr.mxu0 0.0
    %2186 = vmatpush1.msra.mxu0 %v1153
    %2187 = vmatprep.subr.mxu0 0.0
    %2188 = vmatpush1.msra.mxu0 %v1154
    %2189 = vmatprep.subr.mxu0 0.0
    %2190 = vmatpush1.msra.mxu0 %v1155
    %2191 = vmatprep.subr.mxu0 0.0
    %2192 = vmatpush1.msra.mxu0 0.0
    %2193 = vmatprep.subr.mxu0 0.0
    %2194 = vmatpush1.msra.mxu0 0.0
    %2195 = vmatprep.subr.mxu0 0.0
    %2196 = vmatpush1.msra.mxu0 0.0
    %2197 = vmatprep.subr.mxu0 0.0
    %2198 = vmatpush1.msra.mxu0 0.0
    %2199 = vmatprep.subr.mxu0 0.0
    %2200 = vmatpush1.msra.mxu0 0.0
    %2201 = vmatprep.subr.mxu0 0.0
    %2202 = vmatpush1.msra.mxu0 0.0
    %2203 = vmatprep.subr.mxu0 0.0
    %2204 = vmatpush1.msra.mxu0 0.0
    %2205 = vmatprep.subr.mxu0 0.0
    %2206 = vmatpush1.msra.mxu0 0.0
    %2207 = vmatprep.subr.mxu0 0.0
    %2208 = vmatpush1.msra.mxu0 0.0
    %2209 = vmatprep.subr.mxu0 0.0
    %2210 = vmatpush1.msra.mxu0 0.0
    %2211 = vmatprep.subr.mxu0 0.0
    %2212 = vmatpush1.msra.mxu0 0.0
    %2213 = vmatprep.subr.mxu0 0.0
    %2214 = vmatpush1.msra.mxu0 0.0
    %2215 = vmatprep.subr.mxu0 0.0
    %2216 = vmatpush1.msra.mxu0 0.0
    %2217 = vmatprep.subr.mxu0 0.0
    %2218 = vmatpush1.msra.mxu0 0.0
    %2219 = vmatprep.subr.mxu0 0.0
    %2220 = vmatpush1.msra.mxu0 0.0
    %2221 = vmatprep.subr.mxu0 0.0
    %2222 = vmatpush1.msra.mxu0 0.0
    %2223 = vmatprep.subr.mxu0 0.0
    %2224 = vmatpush1.msra.mxu0 0.0
    %2225 = vmatprep.subr.mxu0 0.0
    %2226 = vmatpush1.msra.mxu0 0.0
    %2227 = vmatprep.subr.mxu0 0.0
    %2228 = vmatpush1.msra.mxu0 0.0
    %2229 = vmatprep.subr.mxu0 0.0
    %2230 = vmatpush1.msra.mxu0 0.0
    %2231 = vmatprep.subr.mxu0 0.0
    %2232 = vmatpush1.msra.mxu0 0.0
    %2233 = vmatprep.subr.mxu0 0.0
    %2234 = vmatpush1.msra.mxu0 0.0
    %2235 = vmatprep.subr.mxu0 0.0
    %2236 = vmatpush1.msra.mxu0 0.0
    %2237 = vmatprep.subr.mxu0 0.0
    %2238 = vmatpush1.msra.mxu0 0.0
    %2239 = vmatprep.subr.mxu0 0.0
    %2240 = vmatpush1.msra.mxu0 0.0
    %2241 = vmatprep.subr.mxu0 0.0
    %2242 = vmatpush1.msra.mxu0 0.0
    %2243 = vmatprep.subr.mxu0 0.0
    %2244 = vmatpush1.msra.mxu0 0.0
    %2245 = vmatprep.subr.mxu0 0.0
    %2246 = vmatpush1.msra.mxu0 0.0
    %2247 = vmatprep.mubr.f32.mxu0 0.0
    %2248 = vmatmul.mubr.f32.gmra.mrb[0].mxu0 %v2104
    %v2249 = vpop.f32.mrb[0].mxu0
    %v2250 = vadd.f32 0.0, %v2249
    %v2251 = vpop.f32.mrb[0].mxu0
    %2252 = vdwg.mxu0
    %v2253 = vadd.f32 %v1014, %v2250
    %v2254 = vxor.u32 %v2253, 2147483648
    %v2255 = vmul.f32 %v2254, 1.442695
    %v2256 = vpow.pop %v2255
    %v2257 = vadd.f32 %v2256, 1.0
    %v2258 = vrcp.pop %v2257
    %v2259 = vmul.f32 1.0, %v2258
    %2260 = vmatprep.subr.mxu0 0.0
    %2261 = vmatpush1.msra.mxu0 %v1156
    %2262 = vmatprep.subr.mxu0 0.0
    %2263 = vmatpush1.msra.mxu0 %v1157
    %2264 = vmatprep.subr.mxu0 0.0
    %2265 = vmatpush1.msra.mxu0 %v1158
    %2266 = vmatprep.subr.mxu0 0.0
    %2267 = vmatpush1.msra.mxu0 %v1159
    %2268 = vmatprep.subr.mxu0 0.0
    %2269 = vmatpush1.msra.mxu0 0.0
    %2270 = vmatprep.subr.mxu0 0.0
    %2271 = vmatpush1.msra.mxu0 0.0
    %2272 = vmatprep.subr.mxu0 0.0
    %2273 = vmatpush1.msra.mxu0 0.0
    %2274 = vmatprep.subr.mxu0 0.0
    %2275 = vmatpush1.msra.mxu0 0.0
    %2276 = vmatprep.subr.mxu0 0.0
    %2277 = vmatpush1.msra.mxu0 0.0
    %2278 = vmatprep.subr.mxu0 0.0
    %2279 = vmatpush1.msra.mxu0 0.0
    %2280 = vmatprep.subr.mxu0 0.0
    %2281 = vmatpush1.msra.mxu0 0.0
    %2282 = vmatprep.subr.mxu0 0.0
    %2283 = vmatpush1.msra.mxu0 0.0
    %2284 = vmatprep.subr.mxu0 0.0
    %2285 = vmatpush1.msra.mxu0 0.0
    %2286 = vmatprep.subr.mxu0 0.0
    %2287 = vmatpush1.msra.mxu0 0.0
    %2288 = vmatprep.subr.mxu0 0.0
    %2289 = vmatpush1.msra.mxu0 0.0
    %2290 = vmatprep.subr.mxu0 0.0
    %2291 = vmatpush1.msra.mxu0 0.0
    %2292 = vmatprep.subr.mxu0 0.0
    %2293 = vmatpush1.msra.mxu0 0.0
    %2294 = vmatprep.subr.mxu0 0.0
    %2295 = vmatpush1.msra.mxu0 0.0
    %2296 = vmatprep.subr.mxu0 0.0
    %2297 = vmatpush1.msra.mxu0 0.0
    %2298 = vmatprep.subr.mxu0 0.0
    %2299 = vmatpush1.msra.mxu0 0.0
    %2300 = vmatprep.subr.mxu0 0.0
    %2301 = vmatpush1.msra.mxu0 0.0
    %2302 = vmatprep.subr.mxu0 0.0
    %2303 = vmatpush1.msra.mxu0 0.0
    %2304 = vmatprep.subr.mxu0 0.0
    %2305 = vmatpush1.msra.mxu0 0.0
    %2306 = vmatprep.subr.mxu0 0.0
    %2307 = vmatpush1.msra.mxu0 0.0
    %2308 = vmatprep.subr.mxu0 0.0
    %2309 = vmatpush1.msra.mxu0 0.0
    %2310 = vmatprep.subr.mxu0 0.0
    %2311 = vmatpush1.msra.mxu0 0.0
    %2312 = vmatprep.subr.mxu0 0.0
    %2313 = vmatpush1.msra.mxu0 0.0
    %2314 = vmatprep.subr.mxu0 0.0
    %2315 = vmatpush1.msra.mxu0 0.0
    %2316 = vmatprep.subr.mxu0 0.0
    %2317 = vmatpush1.msra.mxu0 0.0
    %2318 = vmatprep.subr.mxu0 0.0
    %2319 = vmatpush1.msra.mxu0 0.0
    %2320 = vmatprep.subr.mxu0 0.0
    %2321 = vmatpush1.msra.mxu0 0.0
    %2322 = vmatprep.subr.mxu0 0.0
    %2323 = vmatpush1.msra.mxu0 0.0
    %2324 = vmatprep.mubr.f32.mxu0 0.0
    %2325 = vmatmul.mubr.f32.gmra.mrb[0].mxu0 %v2104
    %v2326 = vpop.f32.mrb[0].mxu0
    %v2327 = vadd.f32 %v1322, %v2326
    %v2328 = vpop.f32.mrb[0].mxu0
    %2329 = vdwg.mxu0
    %v2330 = vmul.f32 %v2182, %v2327
    %v2331 = vadd.f32 %v1130, %v2330
    %v2332 = vtanh.pop %v2331
    %v2333 = vsub.f32 1.0, %v2259
    %v2334 = vmul.f32 %v2333, %v2332
    %v2335 = vmul.f32 %v2259, %v2102
    %v2336 = vadd.f32 %v2334, %v2335
    %v2338 = vsel %vm162, %v2336, 0
    %2340 = vmatprep.subr.mxu0 0.0
    %2341 = vmatpush1.msra.mxu0 %v1148
    %2342 = vmatprep.subr.mxu0 0.0
    %2343 = vmatpush1.msra.mxu0 %v1149
    %2344 = vmatprep.subr.mxu0 0.0
    %2345 = vmatpush1.msra.mxu0 %v1150
    %2346 = vmatprep.subr.mxu0 0.0
    %2347 = vmatpush1.msra.mxu0 %v1151
    %2348 = vmatprep.subr.mxu0 0.0
    %2349 = vmatpush1.msra.mxu0 0.0
    %2350 = vmatprep.subr.mxu0 0.0
    %2351 = vmatpush1.msra.mxu0 0.0
    %2352 = vmatprep.subr.mxu0 0.0
    %2353 = vmatpush1.msra.mxu0 0.0
    %2354 = vmatprep.subr.mxu0 0.0
    %2355 = vmatpush1.msra.mxu0 0.0
    %2356 = vmatprep.subr.mxu0 0.0
    %2357 = vmatpush1.msra.mxu0 0.0
    %2358 = vmatprep.subr.mxu0 0.0
    %2359 = vmatpush1.msra.mxu0 0.0
    %2360 = vmatprep.subr.mxu0 0.0
    %2361 = vmatpush1.msra.mxu0 0.0
    %2362 = vmatprep.subr.mxu0 0.0
    %2363 = vmatpush1.msra.mxu0 0.0
    %2364 = vmatprep.subr.mxu0 0.0
    %2365 = vmatpush1.msra.mxu0 0.0
    %2366 = vmatprep.subr.mxu0 0.0
    %2367 = vmatpush1.msra.mxu0 0.0
    %2368 = vmatprep.subr.mxu0 0.0
    %2369 = vmatpush1.msra.mxu0 0.0
    %2370 = vmatprep.subr.mxu0 0.0
    %2371 = vmatpush1.msra.mxu0 0.0
    %2372 = vmatprep.subr.mxu0 0.0
    %2373 = vmatpush1.msra.mxu0 0.0
    %2374 = vmatprep.subr.mxu0 0.0
    %2375 = vmatpush1.msra.mxu0 0.0
    %2376 = vmatprep.subr.mxu0 0.0
    %2377 = vmatpush1.msra.mxu0 0.0
    %2378 = vmatprep.subr.mxu0 0.0
    %2379 = vmatpush1.msra.mxu0 0.0
    %2380 = vmatprep.subr.mxu0 0.0
    %2381 = vmatpush1.msra.mxu0 0.0
    %2382 = vmatprep.subr.mxu0 0.0
    %2383 = vmatpush1.msra.mxu0 0.0
    %2384 = vmatprep.subr.mxu0 0.0
    %2385 = vmatpush1.msra.mxu0 0.0
    %2386 = vmatprep.subr.mxu0 0.0
    %2387 = vmatpush1.msra.mxu0 0.0
    %2388 = vmatprep.subr.mxu0 0.0
    %2389 = vmatpush1.msra.mxu0 0.0
    %2390 = vmatprep.subr.mxu0 0.0
    %2391 = vmatpush1.msra.mxu0 0.0
    %2392 = vmatprep.subr.mxu0 0.0
    %2393 = vmatpush1.msra.mxu0 0.0
    %2394 = vmatprep.subr.mxu0 0.0
    %2395 = vmatpush1.msra.mxu0 0.0
    %2396 = vmatprep.subr.mxu0 0.0
    %2397 = vmatpush1.msra.mxu0 0.0
    %2398 = vmatprep.subr.mxu0 0.0
    %2399 = vmatpush1.msra.mxu0 0.0
    %2400 = vmatprep.subr.mxu0 0.0
    %2401 = vmatpush1.msra.mxu0 0.0
    %2402 = vmatprep.subr.mxu0 0.0
    %2403 = vmatpush1.msra.mxu0 0.0
    %2404 = vmatprep.mubr.f32.mxu0 0.0
    %2405 = vmatmul.mubr.f32.gmra.mrb[0].mxu0 %v2338
    %v2406 = vpop.f32.mrb[0].mxu0
    %v2407 = vadd.f32 0.0, %v2406
    %v2408 = vpop.f32.mrb[0].mxu0
    %2409 = vdwg.mxu0
    %v2410 = vadd.f32 %v903, %v2407
    %v2411 = vxor.u32 %v2410, 2147483648
    %v2412 = vmul.f32 %v2411, 1.442695
    %v2413 = vpow.pop %v2412
    %v2414 = vadd.f32 %v2413, 1.0
    %v2415 = vrcp.pop %v2414
    %v2416 = vmul.f32 1.0, %v2415
    %2417 = vmatprep.subr.mxu0 0.0
    %2418 = vmatpush1.msra.mxu0 %v1152
    %2419 = vmatprep.subr.mxu0 0.0
    %2420 = vmatpush1.msra.mxu0 %v1153
    %2421 = vmatprep.subr.mxu0 0.0
    %2422 = vmatpush1.msra.mxu0 %v1154
    %2423 = vmatprep.subr.mxu0 0.0
    %2424 = vmatpush1.msra.mxu0 %v1155
    %2425 = vmatprep.subr.mxu0 0.0
    %2426 = vmatpush1.msra.mxu0 0.0
    %2427 = vmatprep.subr.mxu0 0.0
    %2428 = vmatpush1.msra.mxu0 0.0
    %2429 = vmatprep.subr.mxu0 0.0
    %2430 = vmatpush1.msra.mxu0 0.0
    %2431 = vmatprep.subr.mxu0 0.0
    %2432 = vmatpush1.msra.mxu0 0.0
    %2433 = vmatprep.subr.mxu0 0.0
    %2434 = vmatpush1.msra.mxu0 0.0
    %2435 = vmatprep.subr.mxu0 0.0
    %2436 = vmatpush1.msra.mxu0 0.0
    %2437 = vmatprep.subr.mxu0 0.0
    %2438 = vmatpush1.msra.mxu0 0.0
    %2439 = vmatprep.subr.mxu0 0.0
    %2440 = vmatpush1.msra.mxu0 0.0
    %2441 = vmatprep.subr.mxu0 0.0
    %2442 = vmatpush1.msra.mxu0 0.0
    %2443 = vmatprep.subr.mxu0 0.0
    %2444 = vmatpush1.msra.mxu0 0.0
    %2445 = vmatprep.subr.mxu0 0.0
    %2446 = vmatpush1.msra.mxu0 0.0
    %2447 = vmatprep.subr.mxu0 0.0
    %2448 = vmatpush1.msra.mxu0 0.0
    %2449 = vmatprep.subr.mxu0 0.0
    %2450 = vmatpush1.msra.mxu0 0.0
    %2451 = vmatprep.subr.mxu0 0.0
    %2452 = vmatpush1.msra.mxu0 0.0
    %2453 = vmatprep.subr.mxu0 0.0
    %2454 = vmatpush1.msra.mxu0 0.0
    %2455 = vmatprep.subr.mxu0 0.0
    %2456 = vmatpush1.msra.mxu0 0.0
    %2457 = vmatprep.subr.mxu0 0.0
    %2458 = vmatpush1.msra.mxu0 0.0
    %2459 = vmatprep.subr.mxu0 0.0
    %2460 = vmatpush1.msra.mxu0 0.0
    %2461 = vmatprep.subr.mxu0 0.0
    %2462 = vmatpush1.msra.mxu0 0.0
    %2463 = vmatprep.subr.mxu0 0.0
    %2464 = vmatpush1.msra.mxu0 0.0
    %2465 = vmatprep.subr.mxu0 0.0
    %2466 = vmatpush1.msra.mxu0 0.0
    %2467 = vmatprep.subr.mxu0 0.0
    %2468 = vmatpush1.msra.mxu0 0.0
    %2469 = vmatprep.subr.mxu0 0.0
    %2470 = vmatpush1.msra.mxu0 0.0
    %2471 = vmatprep.subr.mxu0 0.0
    %2472 = vmatpush1.msra.mxu0 0.0
    %2473 = vmatprep.subr.mxu0 0.0
    %2474 = vmatpush1.msra.mxu0 0.0
    %2475 = vmatprep.subr.mxu0 0.0
    %2476 = vmatpush1.msra.mxu0 0.0
    %2477 = vmatprep.subr.mxu0 0.0
    %2478 = vmatpush1.msra.mxu0 0.0
    %2479 = vmatprep.subr.mxu0 0.0
    %2480 = vmatpush1.msra.mxu0 0.0
    %2481 = vmatprep.mubr.f32.mxu0 0.0
    %2482 = vmatmul.mubr.f32.gmra.mrb[0].mxu0 %v2338
    %v2483 = vpop.f32.mrb[0].mxu0
    %v2484 = vadd.f32 0.0, %v2483
    %v2485 = vpop.f32.mrb[0].mxu0
    %2486 = vdwg.mxu0
    %v2487 = vadd.f32 %v1019, %v2484
    %v2488 = vxor.u32 %v2487, 2147483648
    %v2489 = vmul.f32 %v2488, 1.442695
    %v2490 = vpow.pop %v2489
    %v2491 = vadd.f32 %v2490, 1.0
    %v2492 = vrcp.pop %v2491
    %v2493 = vmul.f32 1.0, %v2492
    %2494 = vmatprep.subr.mxu0 0.0
    %2495 = vmatpush1.msra.mxu0 %v1156
    %2496 = vmatprep.subr.mxu0 0.0
    %2497 = vmatpush1.msra.mxu0 %v1157
    %2498 = vmatprep.subr.mxu0 0.0
    %2499 = vmatpush1.msra.mxu0 %v1158
    %2500 = vmatprep.subr.mxu0 0.0
    %2501 = vmatpush1.msra.mxu0 %v1159
    %2502 = vmatprep.subr.mxu0 0.0
    %2503 = vmatpush1.msra.mxu0 0.0
    %2504 = vmatprep.subr.mxu0 0.0
    %2505 = vmatpush1.msra.mxu0 0.0
    %2506 = vmatprep.subr.mxu0 0.0
    %2507 = vmatpush1.msra.mxu0 0.0
    %2508 = vmatprep.subr.mxu0 0.0
    %2509 = vmatpush1.msra.mxu0 0.0
    %2510 = vmatprep.subr.mxu0 0.0
    %2511 = vmatpush1.msra.mxu0 0.0
    %2512 = vmatprep.subr.mxu0 0.0
    %2513 = vmatpush1.msra.mxu0 0.0
    %2514 = vmatprep.subr.mxu0 0.0
    %2515 = vmatpush1.msra.mxu0 0.0
    %2516 = vmatprep.subr.mxu0 0.0
    %2517 = vmatpush1.msra.mxu0 0.0
    %2518 = vmatprep.subr.mxu0 0.0
    %2519 = vmatpush1.msra.mxu0 0.0
    %2520 = vmatprep.subr.mxu0 0.0
    %2521 = vmatpush1.msra.mxu0 0.0
    %2522 = vmatprep.subr.mxu0 0.0
    %2523 = vmatpush1.msra.mxu0 0.0
    %2524 = vmatprep.subr.mxu0 0.0
    %2525 = vmatpush1.msra.mxu0 0.0
    %2526 = vmatprep.subr.mxu0 0.0
    %2527 = vmatpush1.msra.mxu0 0.0
    %2528 = vmatprep.subr.mxu0 0.0
    %2529 = vmatpush1.msra.mxu0 0.0
    %2530 = vmatprep.subr.mxu0 0.0
    %2531 = vmatpush1.msra.mxu0 0.0
    %2532 = vmatprep.subr.mxu0 0.0
    %2533 = vmatpush1.msra.mxu0 0.0
    %2534 = vmatprep.subr.mxu0 0.0
    %2535 = vmatpush1.msra.mxu0 0.0
    %2536 = vmatprep.subr.mxu0 0.0
    %2537 = vmatpush1.msra.mxu0 0.0
    %2538 = vmatprep.subr.mxu0 0.0
    %2539 = vmatpush1.msra.mxu0 0.0
    %2540 = vmatprep.subr.mxu0 0.0
    %2541 = vmatpush1.msra.mxu0 0.0
    %2542 = vmatprep.subr.mxu0 0.0
    %2543 = vmatpush1.msra.mxu0 0.0
    %2544 = vmatprep.subr.mxu0 0.0
    %2545 = vmatpush1.msra.mxu0 0.0
    %2546 = vmatprep.subr.mxu0 0.0
    %2547 = vmatpush1.msra.mxu0 0.0
    %2548 = vmatprep.subr.mxu0 0.0
    %2549 = vmatpush1.msra.mxu0 0.0
    %2550 = vmatprep.subr.mxu0 0.0
    %2551 = vmatpush1.msra.mxu0 0.0
    %2552 = vmatprep.subr.mxu0 0.0
    %2553 = vmatpush1.msra.mxu0 0.0
    %2554 = vmatprep.subr.mxu0 0.0
    %2555 = vmatpush1.msra.mxu0 0.0
    %2556 = vmatprep.subr.mxu0 0.0
    %2557 = vmatpush1.msra.mxu0 0.0
    %2558 = vmatprep.mubr.f32.mxu0 0.0
    %2559 = vmatmul.mubr.f32.gmra.mrb[0].mxu0 %v2338
    %v2560 = vpop.f32.mrb[0].mxu0
    %v2561 = vadd.f32 %v1322, %v2560
    %v2562 = vpop.f32.mrb[0].mxu0
    %2563 = vdwg.mxu0
    %v2564 = vmul.f32 %v2416, %v2561
    %v2565 = vadd.f32 %v1135, %v2564
    %v2566 = vtanh.pop %v2565
    %v2567 = vsub.f32 1.0, %v2493
    %v2568 = vmul.f32 %v2567, %v2566
    %v2569 = vmul.f32 %v2493, %v2336
    %v2570 = vadd.f32 %v2568, %v2569
    %v2572 = vsel %vm162, %v2570, 0
    %2574 = vmatprep.subr.mxu0 0.0
    %2575 = vmatpush1.msra.mxu0 %v1148
    %2576 = vmatprep.subr.mxu0 0.0
    %2577 = vmatpush1.msra.mxu0 %v1149
    %2578 = vmatprep.subr.mxu0 0.0
    %2579 = vmatpush1.msra.mxu0 %v1150
    %2580 = vmatprep.subr.mxu0 0.0
    %2581 = vmatpush1.msra.mxu0 %v1151
    %2582 = vmatprep.subr.mxu0 0.0
    %2583 = vmatpush1.msra.mxu0 0.0
    %2584 = vmatprep.subr.mxu0 0.0
    %2585 = vmatpush1.msra.mxu0 0.0
    %2586 = vmatprep.subr.mxu0 0.0
    %2587 = vmatpush1.msra.mxu0 0.0
    %2588 = vmatprep.subr.mxu0 0.0
    %2589 = vmatpush1.msra.mxu0 0.0
    %2590 = vmatprep.subr.mxu0 0.0
    %2591 = vmatpush1.msra.mxu0 0.0
    %2592 = vmatprep.subr.mxu0 0.0
    %2593 = vmatpush1.msra.mxu0 0.0
    %2594 = vmatprep.subr.mxu0 0.0
    %2595 = vmatpush1.msra.mxu0 0.0
    %2596 = vmatprep.subr.mxu0 0.0
    %2597 = vmatpush1.msra.mxu0 0.0
    %2598 = vmatprep.subr.mxu0 0.0
    %2599 = vmatpush1.msra.mxu0 0.0
    %2600 = vmatprep.subr.mxu0 0.0
    %2601 = vmatpush1.msra.mxu0 0.0
    %2602 = vmatprep.subr.mxu0 0.0
    %2603 = vmatpush1.msra.mxu0 0.0
    %2604 = vmatprep.subr.mxu0 0.0
    %2605 = vmatpush1.msra.mxu0 0.0
    %2606 = vmatprep.subr.mxu0 0.0
    %2607 = vmatpush1.msra.mxu0 0.0
    %2608 = vmatprep.subr.mxu0 0.0
    %2609 = vmatpush1.msra.mxu0 0.0
    %2610 = vmatprep.subr.mxu0 0.0
    %2611 = vmatpush1.msra.mxu0 0.0
    %2612 = vmatprep.subr.mxu0 0.0
    %2613 = vmatpush1.msra.mxu0 0.0
    %2614 = vmatprep.subr.mxu0 0.0
    %2615 = vmatpush1.msra.mxu0 0.0
    %2616 = vmatprep.subr.mxu0 0.0
    %2617 = vmatpush1.msra.mxu0 0.0
    %2618 = vmatprep.subr.mxu0 0.0
    %2619 = vmatpush1.msra.mxu0 0.0
    %2620 = vmatprep.subr.mxu0 0.0
    %2621 = vmatpush1.msra.mxu0 0.0
    %2622 = vmatprep.subr.mxu0 0.0
    %2623 = vmatpush1.msra.mxu0 0.0
    %2624 = vmatprep.subr.mxu0 0.0
    %2625 = vmatpush1.msra.mxu0 0.0
    %2626 = vmatprep.subr.mxu0 0.0
    %2627 = vmatpush1.msra.mxu0 0.0
    %2628 = vmatprep.subr.mxu0 0.0
    %2629 = vmatpush1.msra.mxu0 0.0
    %2630 = vmatprep.subr.mxu0 0.0
    %2631 = vmatpush1.msra.mxu0 0.0
    %2632 = vmatprep.subr.mxu0 0.0
    %2633 = vmatpush1.msra.mxu0 0.0
    %2634 = vmatprep.subr.mxu0 0.0
    %2635 = vmatpush1.msra.mxu0 0.0
    %2636 = vmatprep.subr.mxu0 0.0
    %2637 = vmatpush1.msra.mxu0 0.0
    %2638 = vmatprep.mubr.f32.mxu0 0.0
    %2639 = vmatmul.mubr.f32.gmra.mrb[0].mxu0 %v2572
    %v2640 = vpop.f32.mrb[0].mxu0
    %v2641 = vadd.f32 0.0, %v2640
    %v2642 = vpop.f32.mrb[0].mxu0
    %2643 = vdwg.mxu0
    %v2644 = vadd.f32 %v908, %v2641
    %v2645 = vxor.u32 %v2644, 2147483648
    %v2646 = vmul.f32 %v2645, 1.442695
    %v2647 = vpow.pop %v2646
    %v2648 = vadd.f32 %v2647, 1.0
    %v2649 = vrcp.pop %v2648
    %v2650 = vmul.f32 1.0, %v2649
    %2651 = vmatprep.subr.mxu0 0.0
    %2652 = vmatpush1.msra.mxu0 %v1152
    %2653 = vmatprep.subr.mxu0 0.0
    %2654 = vmatpush1.msra.mxu0 %v1153
    %2655 = vmatprep.subr.mxu0 0.0
    %2656 = vmatpush1.msra.mxu0 %v1154
    %2657 = vmatprep.subr.mxu0 0.0
    %2658 = vmatpush1.msra.mxu0 %v1155
    %2659 = vmatprep.subr.mxu0 0.0
    %2660 = vmatpush1.msra.mxu0 0.0
    %2661 = vmatprep.subr.mxu0 0.0
    %2662 = vmatpush1.msra.mxu0 0.0
    %2663 = vmatprep.subr.mxu0 0.0
    %2664 = vmatpush1.msra.mxu0 0.0
    %2665 = vmatprep.subr.mxu0 0.0
    %2666 = vmatpush1.msra.mxu0 0.0
    %2667 = vmatprep.subr.mxu0 0.0
    %2668 = vmatpush1.msra.mxu0 0.0
    %2669 = vmatprep.subr.mxu0 0.0
    %2670 = vmatpush1.msra.mxu0 0.0
    %2671 = vmatprep.subr.mxu0 0.0
    %2672 = vmatpush1.msra.mxu0 0.0
    %2673 = vmatprep.subr.mxu0 0.0
    %2674 = vmatpush1.msra.mxu0 0.0
    %2675 = vmatprep.subr.mxu0 0.0
    %2676 = vmatpush1.msra.mxu0 0.0
    %2677 = vmatprep.subr.mxu0 0.0
    %2678 = vmatpush1.msra.mxu0 0.0
    %2679 = vmatprep.subr.mxu0 0.0
    %2680 = vmatpush1.msra.mxu0 0.0
    %2681 = vmatprep.subr.mxu0 0.0
    %2682 = vmatpush1.msra.mxu0 0.0
    %2683 = vmatprep.subr.mxu0 0.0
    %2684 = vmatpush1.msra.mxu0 0.0
    %2685 = vmatprep.subr.mxu0 0.0
    %2686 = vmatpush1.msra.mxu0 0.0
    %2687 = vmatprep.subr.mxu0 0.0
    %2688 = vmatpush1.msra.mxu0 0.0
    %2689 = vmatprep.subr.mxu0 0.0
    %2690 = vmatpush1.msra.mxu0 0.0
    %2691 = vmatprep.subr.mxu0 0.0
    %2692 = vmatpush1.msra.mxu0 0.0
    %2693 = vmatprep.subr.mxu0 0.0
    %2694 = vmatpush1.msra.mxu0 0.0
    %2695 = vmatprep.subr.mxu0 0.0
    %2696 = vmatpush1.msra.mxu0 0.0
    %2697 = vmatprep.subr.mxu0 0.0
    %2698 = vmatpush1.msra.mxu0 0.0
    %2699 = vmatprep.subr.mxu0 0.0
    %2700 = vmatpush1.msra.mxu0 0.0
    %2701 = vmatprep.subr.mxu0 0.0
    %2702 = vmatpush1.msra.mxu0 0.0
    %2703 = vmatprep.subr.mxu0 0.0
    %2704 = vmatpush1.msra.mxu0 0.0
    %2705 = vmatprep.subr.mxu0 0.0
    %2706 = vmatpush1.msra.mxu0 0.0
    %2707 = vmatprep.subr.mxu0 0.0
    %2708 = vmatpush1.msra.mxu0 0.0
    %2709 = vmatprep.subr.mxu0 0.0
    %2710 = vmatpush1.msra.mxu0 0.0
    %2711 = vmatprep.subr.mxu0 0.0
    %2712 = vmatpush1.msra.mxu0 0.0
    %2713 = vmatprep.subr.mxu0 0.0
    %2714 = vmatpush1.msra.mxu0 0.0
    %2715 = vmatprep.mubr.f32.mxu0 0.0
    %2716 = vmatmul.mubr.f32.gmra.mrb[0].mxu0 %v2572
    %v2717 = vpop.f32.mrb[0].mxu0
    %v2718 = vadd.f32 0.0, %v2717
    %v2719 = vpop.f32.mrb[0].mxu0
    %2720 = vdwg.mxu0
    %v2721 = vadd.f32 %v1024, %v2718
    %v2722 = vxor.u32 %v2721, 2147483648
    %v2723 = vmul.f32 %v2722, 1.442695
    %v2724 = vpow.pop %v2723
    %v2725 = vadd.f32 %v2724, 1.0
    %v2726 = vrcp.pop %v2725
    %v2727 = vmul.f32 1.0, %v2726
    %2728 = vmatprep.subr.mxu0 0.0
    %2729 = vmatpush1.msra.mxu0 %v1156
    %2730 = vmatprep.subr.mxu0 0.0
    %2731 = vmatpush1.msra.mxu0 %v1157
    %2732 = vmatprep.subr.mxu0 0.0
    %2733 = vmatpush1.msra.mxu0 %v1158
    %2734 = vmatprep.subr.mxu0 0.0
    %2735 = vmatpush1.msra.mxu0 %v1159
    %2736 = vmatprep.subr.mxu0 0.0
    %2737 = vmatpush1.msra.mxu0 0.0
    %2738 = vmatprep.subr.mxu0 0.0
    %2739 = vmatpush1.msra.mxu0 0.0
    %2740 = vmatprep.subr.mxu0 0.0
    %2741 = vmatpush1.msra.mxu0 0.0
    %2742 = vmatprep.subr.mxu0 0.0
    %2743 = vmatpush1.msra.mxu0 0.0
    %2744 = vmatprep.subr.mxu0 0.0
    %2745 = vmatpush1.msra.mxu0 0.0
    %2746 = vmatprep.subr.mxu0 0.0
    %2747 = vmatpush1.msra.mxu0 0.0
    %2748 = vmatprep.subr.mxu0 0.0
    %2749 = vmatpush1.msra.mxu0 0.0
    %2750 = vmatprep.subr.mxu0 0.0
    %2751 = vmatpush1.msra.mxu0 0.0
    %2752 = vmatprep.subr.mxu0 0.0
    %2753 = vmatpush1.msra.mxu0 0.0
    %2754 = vmatprep.subr.mxu0 0.0
    %2755 = vmatpush1.msra.mxu0 0.0
    %2756 = vmatprep.subr.mxu0 0.0
    %2757 = vmatpush1.msra.mxu0 0.0
    %2758 = vmatprep.subr.mxu0 0.0
    %2759 = vmatpush1.msra.mxu0 0.0
    %2760 = vmatprep.subr.mxu0 0.0
    %2761 = vmatpush1.msra.mxu0 0.0
    %2762 = vmatprep.subr.mxu0 0.0
    %2763 = vmatpush1.msra.mxu0 0.0
    %2764 = vmatprep.subr.mxu0 0.0
    %2765 = vmatpush1.msra.mxu0 0.0
    %2766 = vmatprep.subr.mxu0 0.0
    %2767 = vmatpush1.msra.mxu0 0.0
    %2768 = vmatprep.subr.mxu0 0.0
    %2769 = vmatpush1.msra.mxu0 0.0
    %2770 = vmatprep.subr.mxu0 0.0
    %2771 = vmatpush1.msra.mxu0 0.0
    %2772 = vmatprep.subr.mxu0 0.0
    %2773 = vmatpush1.msra.mxu0 0.0
    %2774 = vmatprep.subr.mxu0 0.0
    %2775 = vmatpush1.msra.mxu0 0.0
    %2776 = vmatprep.subr.mxu0 0.0
    %2777 = vmatpush1.msra.mxu0 0.0
    %2778 = vmatprep.subr.mxu0 0.0
    %2779 = vmatpush1.msra.mxu0 0.0
    %2780 = vmatprep.subr.mxu0 0.0
    %2781 = vmatpush1.msra.mxu0 0.0
    %2782 = vmatprep.subr.mxu0 0.0
    %2783 = vmatpush1.msra.mxu0 0.0
    %2784 = vmatprep.subr.mxu0 0.0
    %2785 = vmatpush1.msra.mxu0 0.0
    %2786 = vmatprep.subr.mxu0 0.0
    %2787 = vmatpush1.msra.mxu0 0.0
    %2788 = vmatprep.subr.mxu0 0.0
    %2789 = vmatpush1.msra.mxu0 0.0
    %2790 = vmatprep.subr.mxu0 0.0
    %2791 = vmatpush1.msra.mxu0 0.0
    %2792 = vmatprep.mubr.f32.mxu0 0.0
    %2793 = vmatmul.mubr.f32.gmra.mrb[0].mxu0 %v2572
    %v2794 = vpop.f32.mrb[0].mxu0
    %v2795 = vadd.f32 %v1322, %v2794
    %v2796 = vpop.f32.mrb[0].mxu0
    %2797 = vdwg.mxu0
    %v2798 = vmul.f32 %v2650, %v2795
    %v2799 = vadd.f32 %v1140, %v2798
    %v2800 = vtanh.pop %v2799
    %v2801 = vsub.f32 1.0, %v2727
    %v2802 = vmul.f32 %v2801, %v2800
    %v2803 = vmul.f32 %v2727, %v2570
    %v2804 = vadd.f32 %v2802, %v2803
    %v2806 = vsel %vm162, %v2804, 0
    %2808 = vmatprep.subr.mxu0 0.0
    %2809 = vmatpush1.msra.mxu0 %v1148
    %2810 = vmatprep.subr.mxu0 0.0
    %2811 = vmatpush1.msra.mxu0 %v1149
    %2812 = vmatprep.subr.mxu0 0.0
    %2813 = vmatpush1.msra.mxu0 %v1150
    %2814 = vmatprep.subr.mxu0 0.0
    %2815 = vmatpush1.msra.mxu0 %v1151
    %2816 = vmatprep.subr.mxu0 0.0
    %2817 = vmatpush1.msra.mxu0 0.0
    %2818 = vmatprep.subr.mxu0 0.0
    %2819 = vmatpush1.msra.mxu0 0.0
    %2820 = vmatprep.subr.mxu0 0.0
    %2821 = vmatpush1.msra.mxu0 0.0
    %2822 = vmatprep.subr.mxu0 0.0
    %2823 = vmatpush1.msra.mxu0 0.0
    %2824 = vmatprep.subr.mxu0 0.0
    %2825 = vmatpush1.msra.mxu0 0.0
    %2826 = vmatprep.subr.mxu0 0.0
    %2827 = vmatpush1.msra.mxu0 0.0
    %2828 = vmatprep.subr.mxu0 0.0
    %2829 = vmatpush1.msra.mxu0 0.0
    %2830 = vmatprep.subr.mxu0 0.0
    %2831 = vmatpush1.msra.mxu0 0.0
    %2832 = vmatprep.subr.mxu0 0.0
    %2833 = vmatpush1.msra.mxu0 0.0
    %2834 = vmatprep.subr.mxu0 0.0
    %2835 = vmatpush1.msra.mxu0 0.0
    %2836 = vmatprep.subr.mxu0 0.0
    %2837 = vmatpush1.msra.mxu0 0.0
    %2838 = vmatprep.subr.mxu0 0.0
    %2839 = vmatpush1.msra.mxu0 0.0
    %2840 = vmatprep.subr.mxu0 0.0
    %2841 = vmatpush1.msra.mxu0 0.0
    %2842 = vmatprep.subr.mxu0 0.0
    %2843 = vmatpush1.msra.mxu0 0.0
    %2844 = vmatprep.subr.mxu0 0.0
    %2845 = vmatpush1.msra.mxu0 0.0
    %2846 = vmatprep.subr.mxu0 0.0
    %2847 = vmatpush1.msra.mxu0 0.0
    %2848 = vmatprep.subr.mxu0 0.0
    %2849 = vmatpush1.msra.mxu0 0.0
    %2850 = vmatprep.subr.mxu0 0.0
    %2851 = vmatpush1.msra.mxu0 0.0
    %2852 = vmatprep.subr.mxu0 0.0
    %2853 = vmatpush1.msra.mxu0 0.0
    %2854 = vmatprep.subr.mxu0 0.0
    %2855 = vmatpush1.msra.mxu0 0.0
    %2856 = vmatprep.subr.mxu0 0.0
    %2857 = vmatpush1.msra.mxu0 0.0
    %2858 = vmatprep.subr.mxu0 0.0
    %2859 = vmatpush1.msra.mxu0 0.0
    %2860 = vmatprep.subr.mxu0 0.0
    %2861 = vmatpush1.msra.mxu0 0.0
    %2862 = vmatprep.subr.mxu0 0.0
    %2863 = vmatpush1.msra.mxu0 0.0
    %2864 = vmatprep.subr.mxu0 0.0
    %2865 = vmatpush1.msra.mxu0 0.0
    %2866 = vmatprep.subr.mxu0 0.0
    %2867 = vmatpush1.msra.mxu0 0.0
    %2868 = vmatprep.subr.mxu0 0.0
    %2869 = vmatpush1.msra.mxu0 0.0
    %2870 = vmatprep.subr.mxu0 0.0
    %2871 = vmatpush1.msra.mxu0 0.0
    %2872 = vmatprep.mubr.f32.mxu0 0.0
    %2873 = vmatmul.mubr.f32.gmra.mrb[0].mxu0 %v2806
    %v2874 = vpop.f32.mrb[0].mxu0
    %v2875 = vadd.f32 0.0, %v2874
    %v2876 = vpop.f32.mrb[0].mxu0
    %2877 = vdwg.mxu0
    %v2878 = vadd.f32 %v913, %v2875
    %v2879 = vxor.u32 %v2878, 2147483648
    %v2880 = vmul.f32 %v2879, 1.442695
    %v2881 = vpow.pop %v2880
    %v2882 = vadd.f32 %v2881, 1.0
    %v2883 = vrcp.pop %v2882
    %v2884 = vmul.f32 1.0, %v2883
    %2885 = vmatprep.subr.mxu0 0.0
    %2886 = vmatpush1.msra.mxu0 %v1152
    %2887 = vmatprep.subr.mxu0 0.0
    %2888 = vmatpush1.msra.mxu0 %v1153
    %2889 = vmatprep.subr.mxu0 0.0
    %2890 = vmatpush1.msra.mxu0 %v1154
    %2891 = vmatprep.subr.mxu0 0.0
    %2892 = vmatpush1.msra.mxu0 %v1155
    %2893 = vmatprep.subr.mxu0 0.0
    %2894 = vmatpush1.msra.mxu0 0.0
    %2895 = vmatprep.subr.mxu0 0.0
    %2896 = vmatpush1.msra.mxu0 0.0
    %2897 = vmatprep.subr.mxu0 0.0
    %2898 = vmatpush1.msra.mxu0 0.0
    %2899 = vmatprep.subr.mxu0 0.0
    %2900 = vmatpush1.msra.mxu0 0.0
    %2901 = vmatprep.subr.mxu0 0.0
    %2902 = vmatpush1.msra.mxu0 0.0
    %2903 = vmatprep.subr.mxu0 0.0
    %2904 = vmatpush1.msra.mxu0 0.0
    %2905 = vmatprep.subr.mxu0 0.0
    %2906 = vmatpush1.msra.mxu0 0.0
    %2907 = vmatprep.subr.mxu0 0.0
    %2908 = vmatpush1.msra.mxu0 0.0
    %2909 = vmatprep.subr.mxu0 0.0
    %2910 = vmatpush1.msra.mxu0 0.0
    %2911 = vmatprep.subr.mxu0 0.0
    %2912 = vmatpush1.msra.mxu0 0.0
    %2913 = vmatprep.subr.mxu0 0.0
    %2914 = vmatpush1.msra.mxu0 0.0
    %2915 = vmatprep.subr.mxu0 0.0
    %2916 = vmatpush1.msra.mxu0 0.0
    %2917 = vmatprep.subr.mxu0 0.0
    %2918 = vmatpush1.msra.mxu0 0.0
    %2919 = vmatprep.subr.mxu0 0.0
    %2920 = vmatpush1.msra.mxu0 0.0
    %2921 = vmatprep.subr.mxu0 0.0
    %2922 = vmatpush1.msra.mxu0 0.0
    %2923 = vmatprep.subr.mxu0 0.0
    %2924 = vmatpush1.msra.mxu0 0.0
    %2925 = vmatprep.subr.mxu0 0.0
    %2926 = vmatpush1.msra.mxu0 0.0
    %2927 = vmatprep.subr.mxu0 0.0
    %2928 = vmatpush1.msra.mxu0 0.0
    %2929 = vmatprep.subr.mxu0 0.0
    %2930 = vmatpush1.msra.mxu0 0.0
    %2931 = vmatprep.subr.mxu0 0.0
    %2932 = vmatpush1.msra.mxu0 0.0
    %2933 = vmatprep.subr.mxu0 0.0
    %2934 = vmatpush1.msra.mxu0 0.0
    %2935 = vmatprep.subr.mxu0 0.0
    %2936 = vmatpush1.msra.mxu0 0.0
    %2937 = vmatprep.subr.mxu0 0.0
    %2938 = vmatpush1.msra.mxu0 0.0
    %2939 = vmatprep.subr.mxu0 0.0
    %2940 = vmatpush1.msra.mxu0 0.0
    %2941 = vmatprep.subr.mxu0 0.0
    %2942 = vmatpush1.msra.mxu0 0.0
    %2943 = vmatprep.subr.mxu0 0.0
    %2944 = vmatpush1.msra.mxu0 0.0
    %2945 = vmatprep.subr.mxu0 0.0
    %2946 = vmatpush1.msra.mxu0 0.0
    %2947 = vmatprep.subr.mxu0 0.0
    %2948 = vmatpush1.msra.mxu0 0.0
    %2949 = vmatprep.mubr.f32.mxu0 0.0
    %2950 = vmatmul.mubr.f32.gmra.mrb[0].mxu0 %v2806
    %v2951 = vpop.f32.mrb[0].mxu0
    %v2952 = vadd.f32 0.0, %v2951
    %v2953 = vpop.f32.mrb[0].mxu0
    %2954 = vdwg.mxu0
    %v2955 = vadd.f32 %v1029, %v2952
    %v2956 = vxor.u32 %v2955, 2147483648
    %v2957 = vmul.f32 %v2956, 1.442695
    %v2958 = vpow.pop %v2957
    %v2959 = vadd.f32 %v2958, 1.0
    %v2960 = vrcp.pop %v2959
    %v2961 = vmul.f32 1.0, %v2960
    %2962 = vmatprep.subr.mxu0 0.0
    %2963 = vmatpush1.msra.mxu0 %v1156
    %2964 = vmatprep.subr.mxu0 0.0
    %2965 = vmatpush1.msra.mxu0 %v1157
    %2966 = vmatprep.subr.mxu0 0.0
    %2967 = vmatpush1.msra.mxu0 %v1158
    %2968 = vmatprep.subr.mxu0 0.0
    %2969 = vmatpush1.msra.mxu0 %v1159
    %2970 = vmatprep.subr.mxu0 0.0
    %2971 = vmatpush1.msra.mxu0 0.0
    %2972 = vmatprep.subr.mxu0 0.0
    %2973 = vmatpush1.msra.mxu0 0.0
    %2974 = vmatprep.subr.mxu0 0.0
    %2975 = vmatpush1.msra.mxu0 0.0
    %2976 = vmatprep.subr.mxu0 0.0
    %2977 = vmatpush1.msra.mxu0 0.0
    %2978 = vmatprep.subr.mxu0 0.0
    %2979 = vmatpush1.msra.mxu0 0.0
    %2980 = vmatprep.subr.mxu0 0.0
    %2981 = vmatpush1.msra.mxu0 0.0
    %2982 = vmatprep.subr.mxu0 0.0
    %2983 = vmatpush1.msra.mxu0 0.0
    %2984 = vmatprep.subr.mxu0 0.0
    %2985 = vmatpush1.msra.mxu0 0.0
    %2986 = vmatprep.subr.mxu0 0.0
    %2987 = vmatpush1.msra.mxu0 0.0
    %2988 = vmatprep.subr.mxu0 0.0
    %2989 = vmatpush1.msra.mxu0 0.0
    %2990 = vmatprep.subr.mxu0 0.0
    %2991 = vmatpush1.msra.mxu0 0.0
    %2992 = vmatprep.subr.mxu0 0.0
    %2993 = vmatpush1.msra.mxu0 0.0
    %2994 = vmatprep.subr.mxu0 0.0
    %2995 = vmatpush1.msra.mxu0 0.0
    %2996 = vmatprep.subr.mxu0 0.0
    %2997 = vmatpush1.msra.mxu0 0.0
    %2998 = vmatprep.subr.mxu0 0.0
    %2999 = vmatpush1.msra.mxu0 0.0
    %3000 = vmatprep.subr.mxu0 0.0
    %3001 = vmatpush1.msra.mxu0 0.0
    %3002 = vmatprep.subr.mxu0 0.0
    %3003 = vmatpush1.msra.mxu0 0.0
    %3004 = vmatprep.subr.mxu0 0.0
    %3005 = vmatpush1.msra.mxu0 0.0
    %3006 = vmatprep.subr.mxu0 0.0
    %3007 = vmatpush1.msra.mxu0 0.0
    %3008 = vmatprep.subr.mxu0 0.0
    %3009 = vmatpush1.msra.mxu0 0.0
    %3010 = vmatprep.subr.mxu0 0.0
    %3011 = vmatpush1.msra.mxu0 0.0
    %3012 = vmatprep.subr.mxu0 0.0
    %3013 = vmatpush1.msra.mxu0 0.0
    %3014 = vmatprep.subr.mxu0 0.0
    %3015 = vmatpush1.msra.mxu0 0.0
    %3016 = vmatprep.subr.mxu0 0.0
    %3017 = vmatpush1.msra.mxu0 0.0
    %3018 = vmatprep.subr.mxu0 0.0
    %3019 = vmatpush1.msra.mxu0 0.0
    %3020 = vmatprep.subr.mxu0 0.0
    %3021 = vmatpush1.msra.mxu0 0.0
    %3022 = vmatprep.subr.mxu0 0.0
    %3023 = vmatpush1.msra.mxu0 0.0
    %3024 = vmatprep.subr.mxu0 0.0
    %3025 = vmatpush1.msra.mxu0 0.0
    %3026 = vmatprep.mubr.f32.mxu0 0.0
    %3027 = vmatmul.mubr.f32.gmra.mrb[0].mxu0 %v2806
    %v3028 = vpop.f32.mrb[0].mxu0
    %v3029 = vadd.f32 %v1322, %v3028
    %v3030 = vpop.f32.mrb[0].mxu0
    %3031 = vdwg.mxu0
    %v3032 = vmul.f32 %v2884, %v3029
    %v3033 = vadd.f32 %v1145, %v3032
    %v3034 = vtanh.pop %v3033
    %v3035 = vsub.f32 1.0, %v2961
    %v3036 = vmul.f32 %v3035, %v3034
    %v3037 = vmul.f32 %v2961, %v2804
    %v3038 = vadd.f32 %v3036, %v3037
    %v3039 = vmul.f32 %v441, %v441
    %v3040 = vsel %vm162, %v3039, 0.0
    %3041 = vadd.xlane.f32.xlu0 %v3040
    %v3042 = vpop.xlane.xlu0 %3041
    %3043 = vxpose.xlu0.b32.start [1/16] %v441, 128
    %3044 = vxpose.xlu0.b32.cont [2/16] 0.0, 128
    %3045 = vxpose.xlu0.b32.cont [3/16] 0.0, 128
    %3046 = vxpose.xlu0.b32.cont [4/16] 0.0, 128
    %3047 = vxpose.xlu0.b32.cont [5/16] 0.0, 128
    %3048 = vxpose.xlu0.b32.cont [6/16] 0.0, 128
    %3049 = vxpose.xlu0.b32.cont [7/16] 0.0, 128
    %3050 = vxpose.xlu0.b32.cont [8/16] 0.0, 128
    %3051 = vxpose.xlu0.b32.cont [9/16] 0.0, 128
    %3052 = vxpose.xlu0.b32.cont [10/16] 0.0, 128
    %3053 = vxpose.xlu0.b32.cont [11/16] 0.0, 128
    %3054 = vxpose.xlu0.b32.cont [12/16] 0.0, 128
    %3055 = vxpose.xlu0.b32.cont [13/16] 0.0, 128
    %3056 = vxpose.xlu0.b32.cont [14/16] 0.0, 128
    %3057 = vxpose.xlu0.b32.cont [15/16] 0.0, 128
    %3058 = vxpose.xlu0.b32.end [16/16] 0.0, 128
    %v3059 = vpop.trf.xlu0
    %v3060 = vpop.trf.xlu0
    %v3061 = vpop.trf.xlu0
    %v3062 = vpop.trf.xlu0
    %v3063 = vpop.trf.xlu0
    %v3064 = vpop.trf.xlu0
    %v3065 = vpop.trf.xlu0
    %v3066 = vpop.trf.xlu0
    %v3067 = vpop.trf.xlu0
    %v3068 = vpop.trf.xlu0
    %v3069 = vpop.trf.xlu0
    %v3070 = vpop.trf.xlu0
    %v3071 = vpop.trf.xlu0
    %v3072 = vpop.trf.xlu0
    %v3073 = vpop.trf.xlu0
    %v3074 = vpop.trf.xlu0
    %3075 = vxpose.xlu0.b32.start [1/16] %v3042, 128
    %3076 = vxpose.xlu0.b32.cont [2/16] 0.0, 128
    %3077 = vxpose.xlu0.b32.cont [3/16] 0.0, 128
    %3078 = vxpose.xlu0.b32.cont [4/16] 0.0, 128
    %3079 = vxpose.xlu0.b32.cont [5/16] 0.0, 128
    %3080 = vxpose.xlu0.b32.cont [6/16] 0.0, 128
    %3081 = vxpose.xlu0.b32.cont [7/16] 0.0, 128
    %3082 = vxpose.xlu0.b32.cont [8/16] 0.0, 128
    %3083 = vxpose.xlu0.b32.cont [9/16] 0.0, 128
    %3084 = vxpose.xlu0.b32.cont [10/16] 0.0, 128
    %3085 = vxpose.xlu0.b32.cont [11/16] 0.0, 128
    %3086 = vxpose.xlu0.b32.cont [12/16] 0.0, 128
    %3087 = vxpose.xlu0.b32.cont [13/16] 0.0, 128
    %3088 = vxpose.xlu0.b32.cont [14/16] 0.0, 128
    %3089 = vxpose.xlu0.b32.cont [15/16] 0.0, 128
    %3090 = vxpose.xlu0.b32.end [16/16] 0.0, 128
    %v3091 = vpop.trf.xlu0
    %v3092 = vpop.trf.xlu0
    %v3093 = vpop.trf.xlu0
    %v3094 = vpop.trf.xlu0
    %v3095 = vpop.trf.xlu0
    %v3096 = vpop.trf.xlu0
    %v3097 = vpop.trf.xlu0
    %v3098 = vpop.trf.xlu0
    %v3099 = vpop.trf.xlu0
    %v3100 = vpop.trf.xlu0
    %v3101 = vpop.trf.xlu0
    %v3102 = vpop.trf.xlu0
    %v3103 = vpop.trf.xlu0
    %v3104 = vpop.trf.xlu0
    %v3105 = vpop.trf.xlu0
    %v3106 = vpop.trf.xlu0
    %v3107 = vlaneseq
    %v3108 = vshrl.u32 %v3107, 7
    %v3109 = vsub.s32 0, %v3108
    %v3110 = vrot.slane %v3091, %v3109
    %v3111 = vadd.f32 %v3059, %v3110
    %v3112 = vadd.f32 %v3060, %v3110
    %v3113 = vadd.f32 %v3061, %v3110
    %v3114 = vadd.f32 %v3062, %v3110
    %v3116 = vsel %vm162, %v441, 0
    %3118 = vmatprep.subr.mxu0 0.0
    %3119 = vmatpush1.msra.mxu0 %v3111
    %3120 = vmatprep.subr.mxu0 0.0
    %3121 = vmatpush1.msra.mxu0 %v3112
    %3122 = vmatprep.subr.mxu0 0.0
    %3123 = vmatpush1.msra.mxu0 %v3113
    %3124 = vmatprep.subr.mxu0 0.0
    %3125 = vmatpush1.msra.mxu0 %v3114
    %3126 = vmatprep.subr.mxu0 0.0
    %3127 = vmatpush1.msra.mxu0 0.0
    %3128 = vmatprep.subr.mxu0 0.0
    %3129 = vmatpush1.msra.mxu0 0.0
    %3130 = vmatprep.subr.mxu0 0.0
    %3131 = vmatpush1.msra.mxu0 0.0
    %3132 = vmatprep.subr.mxu0 0.0
    %3133 = vmatpush1.msra.mxu0 0.0
    %3134 = vmatprep.subr.mxu0 0.0
    %3135 = vmatpush1.msra.mxu0 0.0
    %3136 = vmatprep.subr.mxu0 0.0
    %3137 = vmatpush1.msra.mxu0 0.0
    %3138 = vmatprep.subr.mxu0 0.0
    %3139 = vmatpush1.msra.mxu0 0.0
    %3140 = vmatprep.subr.mxu0 0.0
    %3141 = vmatpush1.msra.mxu0 0.0
    %3142 = vmatprep.subr.mxu0 0.0
    %3143 = vmatpush1.msra.mxu0 0.0
    %3144 = vmatprep.subr.mxu0 0.0
    %3145 = vmatpush1.msra.mxu0 0.0
    %3146 = vmatprep.subr.mxu0 0.0
    %3147 = vmatpush1.msra.mxu0 0.0
    %3148 = vmatprep.subr.mxu0 0.0
    %3149 = vmatpush1.msra.mxu0 0.0
    %3150 = vmatprep.subr.mxu0 0.0
    %3151 = vmatpush1.msra.mxu0 0.0
    %3152 = vmatprep.subr.mxu0 0.0
    %3153 = vmatpush1.msra.mxu0 0.0
    %3154 = vmatprep.subr.mxu0 0.0
    %3155 = vmatpush1.msra.mxu0 0.0
    %3156 = vmatprep.subr.mxu0 0.0
    %3157 = vmatpush1.msra.mxu0 0.0
    %3158 = vmatprep.subr.mxu0 0.0
    %3159 = vmatpush1.msra.mxu0 0.0
    %3160 = vmatprep.subr.mxu0 0.0
    %3161 = vmatpush1.msra.mxu0 0.0
    %3162 = vmatprep.subr.mxu0 0.0
    %3163 = vmatpush1.msra.mxu0 0.0
    %3164 = vmatprep.subr.mxu0 0.0
    %3165 = vmatpush1.msra.mxu0 0.0
    %3166 = vmatprep.subr.mxu0 0.0
    %3167 = vmatpush1.msra.mxu0 0.0
    %3168 = vmatprep.subr.mxu0 0.0
    %3169 = vmatpush1.msra.mxu0 0.0
    %3170 = vmatprep.subr.mxu0 0.0
    %3171 = vmatpush1.msra.mxu0 0.0
    %3172 = vmatprep.subr.mxu0 0.0
    %3173 = vmatpush1.msra.mxu0 0.0
    %3174 = vmatprep.subr.mxu0 0.0
    %3175 = vmatpush1.msra.mxu0 0.0
    %3176 = vmatprep.subr.mxu0 0.0
    %3177 = vmatpush1.msra.mxu0 0.0
    %3178 = vmatprep.subr.mxu0 0.0
    %3179 = vmatpush1.msra.mxu0 0.0
    %3180 = vmatprep.subr.mxu0 0.0
    %3181 = vmatpush1.msra.mxu0 0.0
    %3182 = vmatprep.mubr.f32.mxu0 0.0
    %3183 = vmatmul.mubr.f32.gmra.mrb[0].mxu0 %v3116
    %v3184 = vpop.f32.mrb[0].mxu0
    %v3185 = vadd.f32 0.0, %v3184
    %v3186 = vpop.f32.mrb[0].mxu0
    %3187 = vdwg.mxu0
    %v3188 = vmul.f32 %v3185, 2.0
    %v3189 = vsub.f32 %v3042, %v3188
    %vm3190 = vcmp.gt.f32.partialorder %v3189, 0.0
    %v3191 = vsel %vm3190, %v3189, 0.0
    %v3192 = vadd.f32 %v3191, 1e-08
    %v3193 = vrsqrt.pop %v3192
    %v3194 = vmul.f32 %v3192, %v3193
    %vm3195 = vcmp.eq.f32.partialorder %v3192, inf
    %v3196 = vsel %vm3195, %v3192, %v3194
    %vm3197 = vcmp.eq.f32.partialorder %v3192, 0.0
    %v3198 = vand.u32 %v3192, 2147483648
    %v3199 = vsel %vm3197, %v3198, %v3196
    %vm3200 = vcmask 64512
    %v3201 = vsel %vm3200, %v3199, 0.0
    %v3202 = vrot.slane %v3201, 4
    %v3203 = vadd.f32 %v3201, %v3202
    %v3204 = vrot.slane %v3203, 2
    %v3205 = vadd.f32 %v3203, %v3204
    %v3206 = vrot.slane %v3205, 1
    %v3207 = vadd.f32 %v3205, %v3206
    %v3208 = vrcp.pop 8.0
    %v3209 = vmul.f32 %v3207, %v3208
    %v3210 = vsub.f32 %v3199, %v3209
    %3211 = vadd.xlane.f32.xlu0 %v3201
    %v3212 = vpop.xlane.xlu0 %3211
    %v3213 = vmul.f32 %v3212, %v3208
    %v3214 = vsub.f32 %v3210, %v3213
    %v3215 = vrot.slane %v3212, 4
    %v3216 = vadd.f32 %v3212, %v3215
    %v3217 = vrot.slane %v3216, 2
    %v3218 = vadd.f32 %v3216, %v3217
    %v3219 = vrot.slane %v3218, 1
    %v3220 = vadd.f32 %v3218, %v3219
    %s3221 = vtos %v3220
    %v3222 = vrcp.pop 64.0
    %s3223 = vtos %v3222
    %s3224 = smul.f32 %s3221, %s3223
    %v3225 = vstv %s3224
    %v3226 = vadd.f32 %v3214, %v3225
    %v3227 = vmul.f32 %v3038, %v3038
    %v3228 = vsel %vm162, %v3227, 0.0
    %3229 = vadd.xlane.f32.xlu0 %v3228
    %v3230 = vpop.xlane.xlu0 %3229
    %3231 = vxpose.xlu0.b32.start [1/16] %v3038, 128
    %3232 = vxpose.xlu0.b32.cont [2/16] 0.0, 128
    %3233 = vxpose.xlu0.b32.cont [3/16] 0.0, 128
    %3234 = vxpose.xlu0.b32.cont [4/16] 0.0, 128
    %3235 = vxpose.xlu0.b32.cont [5/16] 0.0, 128
    %3236 = vxpose.xlu0.b32.cont [6/16] 0.0, 128
    %3237 = vxpose.xlu0.b32.cont [7/16] 0.0, 128
    %3238 = vxpose.xlu0.b32.cont [8/16] 0.0, 128
    %3239 = vxpose.xlu0.b32.cont [9/16] 0.0, 128
    %3240 = vxpose.xlu0.b32.cont [10/16] 0.0, 128
    %3241 = vxpose.xlu0.b32.cont [11/16] 0.0, 128
    %3242 = vxpose.xlu0.b32.cont [12/16] 0.0, 128
    %3243 = vxpose.xlu0.b32.cont [13/16] 0.0, 128
    %3244 = vxpose.xlu0.b32.cont [14/16] 0.0, 128
    %3245 = vxpose.xlu0.b32.cont [15/16] 0.0, 128
    %3246 = vxpose.xlu0.b32.end [16/16] 0.0, 128
    %v3247 = vpop.trf.xlu0
    %v3248 = vpop.trf.xlu0
    %v3249 = vpop.trf.xlu0
    %v3250 = vpop.trf.xlu0
    %v3251 = vpop.trf.xlu0
    %v3252 = vpop.trf.xlu0
    %v3253 = vpop.trf.xlu0
    %v3254 = vpop.trf.xlu0
    %v3255 = vpop.trf.xlu0
    %v3256 = vpop.trf.xlu0
    %v3257 = vpop.trf.xlu0
    %v3258 = vpop.trf.xlu0
    %v3259 = vpop.trf.xlu0
    %v3260 = vpop.trf.xlu0
    %v3261 = vpop.trf.xlu0
    %v3262 = vpop.trf.xlu0
    %3263 = vxpose.xlu0.b32.start [1/16] %v3230, 128
    %3264 = vxpose.xlu0.b32.cont [2/16] 0.0, 128
    %3265 = vxpose.xlu0.b32.cont [3/16] 0.0, 128
    %3266 = vxpose.xlu0.b32.cont [4/16] 0.0, 128
    %3267 = vxpose.xlu0.b32.cont [5/16] 0.0, 128
    %3268 = vxpose.xlu0.b32.cont [6/16] 0.0, 128
    %3269 = vxpose.xlu0.b32.cont [7/16] 0.0, 128
    %3270 = vxpose.xlu0.b32.cont [8/16] 0.0, 128
    %3271 = vxpose.xlu0.b32.cont [9/16] 0.0, 128
    %3272 = vxpose.xlu0.b32.cont [10/16] 0.0, 128
    %3273 = vxpose.xlu0.b32.cont [11/16] 0.0, 128
    %3274 = vxpose.xlu0.b32.cont [12/16] 0.0, 128
    %3275 = vxpose.xlu0.b32.cont [13/16] 0.0, 128
    %3276 = vxpose.xlu0.b32.cont [14/16] 0.0, 128
    %3277 = vxpose.xlu0.b32.cont [15/16] 0.0, 128
    %3278 = vxpose.xlu0.b32.end [16/16] 0.0, 128
    %v3279 = vpop.trf.xlu0
    %v3280 = vpop.trf.xlu0
    %v3281 = vpop.trf.xlu0
    %v3282 = vpop.trf.xlu0
    %v3283 = vpop.trf.xlu0
    %v3284 = vpop.trf.xlu0
    %v3285 = vpop.trf.xlu0
    %v3286 = vpop.trf.xlu0
    %v3287 = vpop.trf.xlu0
    %v3288 = vpop.trf.xlu0
    %v3289 = vpop.trf.xlu0
    %v3290 = vpop.trf.xlu0
    %v3291 = vpop.trf.xlu0
    %v3292 = vpop.trf.xlu0
    %v3293 = vpop.trf.xlu0
    %v3294 = vpop.trf.xlu0
    %v3295 = vlaneseq
    %v3296 = vshrl.u32 %v3295, 7
    %v3297 = vsub.s32 0, %v3296
    %v3298 = vrot.slane %v3279, %v3297
    %v3299 = vadd.f32 %v3247, %v3298
    %v3300 = vadd.f32 %v3248, %v3298
    %v3301 = vadd.f32 %v3249, %v3298
    %v3302 = vadd.f32 %v3250, %v3298
    %v3304 = vsel %vm162, %v3038, 0
    %3306 = vmatprep.subr.mxu0 0.0
    %3307 = vmatpush1.msra.mxu0 %v3299
    %3308 = vmatprep.subr.mxu0 0.0
    %3309 = vmatpush1.msra.mxu0 %v3300
    %3310 = vmatprep.subr.mxu0 0.0
    %3311 = vmatpush1.msra.mxu0 %v3301
    %3312 = vmatprep.subr.mxu0 0.0
    %3313 = vmatpush1.msra.mxu0 %v3302
    %3314 = vmatprep.subr.mxu0 0.0
    %3315 = vmatpush1.msra.mxu0 0.0
    %3316 = vmatprep.subr.mxu0 0.0
    %3317 = vmatpush1.msra.mxu0 0.0
    %3318 = vmatprep.subr.mxu0 0.0
    %3319 = vmatpush1.msra.mxu0 0.0
    %3320 = vmatprep.subr.mxu0 0.0
    %3321 = vmatpush1.msra.mxu0 0.0
    %3322 = vmatprep.subr.mxu0 0.0
    %3323 = vmatpush1.msra.mxu0 0.0
    %3324 = vmatprep.subr.mxu0 0.0
    %3325 = vmatpush1.msra.mxu0 0.0
    %3326 = vmatprep.subr.mxu0 0.0
    %3327 = vmatpush1.msra.mxu0 0.0
    %3328 = vmatprep.subr.mxu0 0.0
    %3329 = vmatpush1.msra.mxu0 0.0
    %3330 = vmatprep.subr.mxu0 0.0
    %3331 = vmatpush1.msra.mxu0 0.0
    %3332 = vmatprep.subr.mxu0 0.0
    %3333 = vmatpush1.msra.mxu0 0.0
    %3334 = vmatprep.subr.mxu0 0.0
    %3335 = vmatpush1.msra.mxu0 0.0
    %3336 = vmatprep.subr.mxu0 0.0
    %3337 = vmatpush1.msra.mxu0 0.0
    %3338 = vmatprep.subr.mxu0 0.0
    %3339 = vmatpush1.msra.mxu0 0.0
    %3340 = vmatprep.subr.mxu0 0.0
    %3341 = vmatpush1.msra.mxu0 0.0
    %3342 = vmatprep.subr.mxu0 0.0
    %3343 = vmatpush1.msra.mxu0 0.0
    %3344 = vmatprep.subr.mxu0 0.0
    %3345 = vmatpush1.msra.mxu0 0.0
    %3346 = vmatprep.subr.mxu0 0.0
    %3347 = vmatpush1.msra.mxu0 0.0
    %3348 = vmatprep.subr.mxu0 0.0
    %3349 = vmatpush1.msra.mxu0 0.0
    %3350 = vmatprep.subr.mxu0 0.0
    %3351 = vmatpush1.msra.mxu0 0.0
    %3352 = vmatprep.subr.mxu0 0.0
    %3353 = vmatpush1.msra.mxu0 0.0
    %3354 = vmatprep.subr.mxu0 0.0
    %3355 = vmatpush1.msra.mxu0 0.0
    %3356 = vmatprep.subr.mxu0 0.0
    %3357 = vmatpush1.msra.mxu0 0.0
    %3358 = vmatprep.subr.mxu0 0.0
    %3359 = vmatpush1.msra.mxu0 0.0
    %3360 = vmatprep.subr.mxu0 0.0
    %3361 = vmatpush1.msra.mxu0 0.0
    %3362 = vmatprep.subr.mxu0 0.0
    %3363 = vmatpush1.msra.mxu0 0.0
    %3364 = vmatprep.subr.mxu0 0.0
    %3365 = vmatpush1.msra.mxu0 0.0
    %3366 = vmatprep.subr.mxu0 0.0
    %3367 = vmatpush1.msra.mxu0 0.0
    %3368 = vmatprep.subr.mxu0 0.0
    %3369 = vmatpush1.msra.mxu0 0.0
    %3370 = vmatprep.mubr.f32.mxu0 0.0
    %3371 = vmatmul.mubr.f32.gmra.mrb[0].mxu0 %v3304
    %v3372 = vpop.f32.mrb[0].mxu0
    %v3373 = vadd.f32 0.0, %v3372
    %v3374 = vpop.f32.mrb[0].mxu0
    %3375 = vdwg.mxu0
    %v3376 = vmul.f32 %v3373, 2.0
    %v3377 = vsub.f32 %v3230, %v3376
    %vm3378 = vcmp.gt.f32.partialorder %v3377, 0.0
    %v3379 = vsel %vm3378, %v3377, 0.0
    %v3380 = vadd.f32 %v3379, 1e-08
    %v3381 = vrsqrt.pop %v3380
    %v3382 = vmul.f32 %v3380, %v3381
    %vm3383 = vcmp.eq.f32.partialorder %v3380, inf
    %v3384 = vsel %vm3383, %v3380, %v3382
    %vm3385 = vcmp.eq.f32.partialorder %v3380, 0.0
    %v3386 = vand.u32 %v3380, 2147483648
    %v3387 = vsel %vm3385, %v3386, %v3384
    %v3388 = vsel %vm3200, %v3387, 0.0
    %v3389 = vrot.slane %v3388, 4
    %v3390 = vadd.f32 %v3388, %v3389
    %v3391 = vrot.slane %v3390, 2
    %v3392 = vadd.f32 %v3390, %v3391
    %v3393 = vrot.slane %v3392, 1
    %v3394 = vadd.f32 %v3392, %v3393
    %v3395 = vmul.f32 %v3394, %v3208
    %v3396 = vsub.f32 %v3387, %v3395
    %3397 = vadd.xlane.f32.xlu0 %v3388
    %v3398 = vpop.xlane.xlu0 %3397
    %v3399 = vmul.f32 %v3398, %v3208
    %v3400 = vsub.f32 %v3396, %v3399
    %v3401 = vrot.slane %v3398, 4
    %v3402 = vadd.f32 %v3398, %v3401
    %v3403 = vrot.slane %v3402, 2
    %v3404 = vadd.f32 %v3402, %v3403
    %v3405 = vrot.slane %v3404, 1
    %v3406 = vadd.f32 %v3404, %v3405
    %s3407 = vtos %v3406
    %v3408 = vrcp.pop 64.0
    %s3409 = vtos %v3408
    %s3410 = smul.f32 %s3407, %s3409
    %v3411 = vstv %s3410
    %v3412 = vadd.f32 %v3400, %v3411
    %v3413 = vmul.f32 %v3226, %v3412
    %v3414 = vsel %vm3200, %v3413, 0.0
    %3415 = vadd.xlane.f32.xlu0 %v3414
    %v3416 = vpop.xlane.xlu0 %3415
    %v3417 = vrot.slane %v3416, 4
    %v3418 = vadd.f32 %v3416, %v3417
    %v3419 = vrot.slane %v3418, 2
    %v3420 = vadd.f32 %v3418, %v3419
    %v3421 = vrot.slane %v3420, 1
    %v3422 = vadd.f32 %v3420, %v3421
    %s3423 = vtos %v3422
    %v3424 = vrcp.pop 64.0
    %s3425 = vtos %v3424
    %s3426 = smul.f32 %s3423, %s3425
    %p3427 = scmp.gt.f32.partialorder %s3426, 0.0
    %s3428 = scalar_select %p3427, %s3426, 0.0
    %s3429 = sadd.f32 %s3428, 1e-08
    %v3430 = vstv %s3429
    %v3431 = vrsqrt.pop %v3430
    %v3432 = vmul.f32 %v3430, %v3431
    %vm3433 = vcmp.eq.f32.partialorder %v3430, inf
    %v3434 = vsel %vm3433, %v3430, %v3432
    %vm3435 = vcmp.eq.f32.partialorder %v3430, 0.0
    %v3436 = vand.u32 %v3430, 2147483648
    %v3437 = vsel %vm3435, %v3436, %v3434
    %s3438 = vtos %v3437
    %v3439 = vmul.f32 %v3226, %v3226
    %v3440 = vsel %vm3200, %v3439, 0.0
    %3441 = vadd.xlane.f32.xlu0 %v3440
    %v3442 = vpop.xlane.xlu0 %3441
    %v3443 = vrot.slane %v3442, 4
    %v3444 = vadd.f32 %v3442, %v3443
    %v3445 = vrot.slane %v3444, 2
    %v3446 = vadd.f32 %v3444, %v3445
    %v3447 = vrot.slane %v3446, 1
    %v3448 = vadd.f32 %v3446, %v3447
    %s3449 = vtos %v3448
    %v3450 = vrcp.pop 64.0
    %s3451 = vtos %v3450
    %s3452 = smul.f32 %s3449, %s3451
    %p3453 = scmp.gt.f32.partialorder %s3452, 0.0
    %s3454 = scalar_select %p3453, %s3452, 0.0
    %s3455 = sadd.f32 %s3454, 1e-08
    %v3456 = vstv %s3455
    %v3457 = vrsqrt.pop %v3456
    %v3458 = vmul.f32 %v3456, %v3457
    %vm3459 = vcmp.eq.f32.partialorder %v3456, inf
    %v3460 = vsel %vm3459, %v3456, %v3458
    %vm3461 = vcmp.eq.f32.partialorder %v3456, 0.0
    %v3462 = vand.u32 %v3456, 2147483648
    %v3463 = vsel %vm3461, %v3462, %v3460
    %s3464 = vtos %v3463
    %v3465 = vmul.f32 %v3412, %v3412
    %v3466 = vsel %vm3200, %v3465, 0.0
    %3467 = vadd.xlane.f32.xlu0 %v3466
    %v3468 = vpop.xlane.xlu0 %3467
    %v3469 = vrot.slane %v3468, 4
    %v3470 = vadd.f32 %v3468, %v3469
    %v3471 = vrot.slane %v3470, 2
    %v3472 = vadd.f32 %v3470, %v3471
    %v3473 = vrot.slane %v3472, 1
    %v3474 = vadd.f32 %v3472, %v3473
    %s3475 = vtos %v3474
    %v3476 = vrcp.pop 64.0
    %s3477 = vtos %v3476
    %s3478 = smul.f32 %s3475, %s3477
    %p3479 = scmp.gt.f32.partialorder %s3478, 0.0
    %s3480 = scalar_select %p3479, %s3478, 0.0
    %s3481 = sadd.f32 %s3480, 1e-08
    %v3482 = vstv %s3481
    %v3483 = vrsqrt.pop %v3482
    %v3484 = vmul.f32 %v3482, %v3483
    %vm3485 = vcmp.eq.f32.partialorder %v3482, inf
    %v3486 = vsel %vm3485, %v3482, %v3484
    %vm3487 = vcmp.eq.f32.partialorder %v3482, 0.0
    %v3488 = vand.u32 %v3482, 2147483648
    %v3489 = vsel %vm3487, %v3488, %v3486
    %s3490 = vtos %v3489
    %s3491 = smul.f32 %s3464, %s3490
    %p3492 = scmp.gt.f32.partialorder %s3491, 0.0
    %s3493 = scalar_select %p3492, %s3491, 0.0
    %v3494 = vstv %s3493
    %v3495 = vrsqrt.pop %v3494
    %v3496 = vmul.f32 %v3494, %v3495
    %vm3497 = vcmp.eq.f32.partialorder %v3494, inf
    %v3498 = vsel %vm3497, %v3494, %v3496
    %vm3499 = vcmp.eq.f32.partialorder %v3494, 0.0
    %v3500 = vand.u32 %v3494, 2147483648
    %v3501 = vsel %vm3499, %v3500, %v3498
    %s3502 = vtos %v3501
    %s3503 = sadd.f32 %s3502, 1e-10
    %v3504 = vstv %s3503
    %v3505 = vrcp.pop %v3504
    %s3506 = vtos %v3505
    %s3507 = smul.f32 %s3438, %s3506
    %v3508 = vmul.f32 %v441, %v588
    %v3509 = vmul.f32 %v3038, %v588
    %v3510 = vmul.f32 %v511, %v588
    %v3511 = vld [vmem:[%s16] sm:$0xff]
    %v3512 = vld [vmem:[%s16 + $0x8] sm:$0xff]
    %v3513 = vld [vmem:[%s16 + $0x10] sm:$0xff]
    %v3514 = vld [vmem:[%s16 + $0x18] sm:$0xff]
    %v3515 = vld [vmem:[%s17] sm:$0x1]
    %v3517 = vlaneseq
    %v3518 = vshrl.u32 %v3517, 7
    %v3519 = vsub.s32 0, %v3518
    %v3520 = vrot.slane %v3515, %v3519
    %v3523 = vsel %vm162, %v3508, 0
    %v3526 = vsel %vm162, %v3509, 0
    %v3529 = vsel %vm162, %v3510, 0
    %3531 = vmatprep.subr.mxu0 0.0
    %3532 = vmatpush1.msra.mxu0 %v3511
    %3533 = vmatprep.subr.mxu0 0.0
    %3534 = vmatpush1.msra.mxu0 %v3512
    %3535 = vmatprep.subr.mxu0 0.0
    %3536 = vmatpush1.msra.mxu0 %v3513
    %3537 = vmatprep.subr.mxu0 0.0
    %3538 = vmatpush1.msra.mxu0 %v3514
    %3539 = vmatprep.subr.mxu0 0.0
    %3540 = vmatpush1.msra.mxu0 0.0
    %3541 = vmatprep.subr.mxu0 0.0
    %3542 = vmatpush1.msra.mxu0 0.0
    %3543 = vmatprep.subr.mxu0 0.0
    %3544 = vmatpush1.msra.mxu0 0.0
    %3545 = vmatprep.subr.mxu0 0.0
    %3546 = vmatpush1.msra.mxu0 0.0
    %3547 = vmatprep.subr.mxu0 0.0
    %3548 = vmatpush1.msra.mxu0 0.0
    %3549 = vmatprep.subr.mxu0 0.0
    %3550 = vmatpush1.msra.mxu0 0.0
    %3551 = vmatprep.subr.mxu0 0.0
    %3552 = vmatpush1.msra.mxu0 0.0
    %3553 = vmatprep.subr.mxu0 0.0
    %3554 = vmatpush1.msra.mxu0 0.0
    %3555 = vmatprep.subr.mxu0 0.0
    %3556 = vmatpush1.msra.mxu0 0.0
    %3557 = vmatprep.subr.mxu0 0.0
    %3558 = vmatpush1.msra.mxu0 0.0
    %3559 = vmatprep.subr.mxu0 0.0
    %3560 = vmatpush1.msra.mxu0 0.0
    %3561 = vmatprep.subr.mxu0 0.0
    %3562 = vmatpush1.msra.mxu0 0.0
    %3563 = vmatprep.subr.mxu0 0.0
    %3564 = vmatpush1.msra.mxu0 0.0
    %3565 = vmatprep.subr.mxu0 0.0
    %3566 = vmatpush1.msra.mxu0 0.0
    %3567 = vmatprep.subr.mxu0 0.0
    %3568 = vmatpush1.msra.mxu0 0.0
    %3569 = vmatprep.subr.mxu0 0.0
    %3570 = vmatpush1.msra.mxu0 0.0
    %3571 = vmatprep.subr.mxu0 0.0
    %3572 = vmatpush1.msra.mxu0 0.0
    %3573 = vmatprep.subr.mxu0 0.0
    %3574 = vmatpush1.msra.mxu0 0.0
    %3575 = vmatprep.subr.mxu0 0.0
    %3576 = vmatpush1.msra.mxu0 0.0
    %3577 = vmatprep.subr.mxu0 0.0
    %3578 = vmatpush1.msra.mxu0 0.0
    %3579 = vmatprep.subr.mxu0 0.0
    %3580 = vmatpush1.msra.mxu0 0.0
    %3581 = vmatprep.subr.mxu0 0.0
    %3582 = vmatpush1.msra.mxu0 0.0
    %3583 = vmatprep.subr.mxu0 0.0
    %3584 = vmatpush1.msra.mxu0 0.0
    %3585 = vmatprep.subr.mxu0 0.0
    %3586 = vmatpush1.msra.mxu0 0.0
    %3587 = vmatprep.subr.mxu0 0.0
    %3588 = vmatpush1.msra.mxu0 0.0
    %3589 = vmatprep.subr.mxu0 0.0
    %3590 = vmatpush1.msra.mxu0 0.0
    %3591 = vmatprep.subr.mxu0 0.0
    %3592 = vmatpush1.msra.mxu0 0.0
    %3593 = vmatprep.subr.mxu0 0.0
    %3594 = vmatpush1.msra.mxu0 0.0
    %3595 = vmatprep.mubr.f32.mxu0 0.0
    %3596 = vmatmul.mubr.f32.gmra.mrb[0].mxu0 %v3523
    %v3597 = vpop.f32.mrb[0].mxu0
    %v3598 = vadd.f32 %v3520, %v3597
    %v3599 = vpop.f32.mrb[0].mxu0
    %3600 = vmatprep.mubr.f32.mxu0 0.0
    %3601 = vmatmul.mubr.f32.gmra.mrb[0].mxu0 %v3526
    %v3602 = vpop.f32.mrb[0].mxu0
    %v3603 = vadd.f32 %v3520, %v3602
    %v3604 = vpop.f32.mrb[0].mxu0
    %3605 = vmatprep.mubr.f32.mxu0 0.0
    %3606 = vmatmul.mubr.f32.gmra.mrb[0].mxu0 %v3529
    %v3607 = vpop.f32.mrb[0].mxu0
    %v3608 = vadd.f32 %v3520, %v3607
    %v3609 = vpop.f32.mrb[0].mxu0
    %3610 = vdwg.mxu0
    %v3611 = vmax.f32 %v3598, 0.0
    %v3612 = vmax.f32 %v3603, 0.0
    %v3613 = vmax.f32 %v3608, 0.0
    %v3614 = vld [vmem:[%s18] sm:$0xff]
    %v3615 = vld [vmem:[#allocation2] sm:$0x1]
    %v3617 = vlaneseq
    %v3618 = vshrl.u32 %v3617, 7
    %v3619 = vsub.s32 0, %v3618
    %v3620 = vrot.slane %v3615, %v3619
    %v3623 = vsel %vm3200, %v3611, 0
    %v3626 = vsel %vm3200, %v3612, 0
    %v3629 = vsel %vm3200, %v3613, 0
    %3631 = vmatprep.subr.mxu0 0.0
    %3632 = vmatpush1.msra.mxu0 %v3614
    %3633 = vmatprep.subr.mxu0 0.0
    %3634 = vmatpush1.msra.mxu0 0.0
    %3635 = vmatprep.subr.mxu0 0.0
    %3636 = vmatpush1.msra.mxu0 0.0
    %3637 = vmatprep.subr.mxu0 0.0
    %3638 = vmatpush1.msra.mxu0 0.0
    %3639 = vmatprep.subr.mxu0 0.0
    %3640 = vmatpush1.msra.mxu0 0.0
    %3641 = vmatprep.subr.mxu0 0.0
    %3642 = vmatpush1.msra.mxu0 0.0
    %3643 = vmatprep.subr.mxu0 0.0
    %3644 = vmatpush1.msra.mxu0 0.0
    %3645 = vmatprep.subr.mxu0 0.0
    %3646 = vmatpush1.msra.mxu0 0.0
    %3647 = vmatprep.subr.mxu0 0.0
    %3648 = vmatpush1.msra.mxu0 0.0
    %3649 = vmatprep.subr.mxu0 0.0
    %3650 = vmatpush1.msra.mxu0 0.0
    %3651 = vmatprep.subr.mxu0 0.0
    %3652 = vmatpush1.msra.mxu0 0.0
    %3653 = vmatprep.subr.mxu0 0.0
    %3654 = vmatpush1.msra.mxu0 0.0
    %3655 = vmatprep.subr.mxu0 0.0
    %3656 = vmatpush1.msra.mxu0 0.0
    %3657 = vmatprep.subr.mxu0 0.0
    %3658 = vmatpush1.msra.mxu0 0.0
    %3659 = vmatprep.subr.mxu0 0.0
    %3660 = vmatpush1.msra.mxu0 0.0
    %3661 = vmatprep.subr.mxu0 0.0
    %3662 = vmatpush1.msra.mxu0 0.0
    %3663 = vmatprep.subr.mxu0 0.0
    %3664 = vmatpush1.msra.mxu0 0.0
    %3665 = vmatprep.subr.mxu0 0.0
    %3666 = vmatpush1.msra.mxu0 0.0
    %3667 = vmatprep.subr.mxu0 0.0
    %3668 = vmatpush1.msra.mxu0 0.0
    %3669 = vmatprep.subr.mxu0 0.0
    %3670 = vmatpush1.msra.mxu0 0.0
    %3671 = vmatprep.subr.mxu0 0.0
    %3672 = vmatpush1.msra.mxu0 0.0
    %3673 = vmatprep.subr.mxu0 0.0
    %3674 = vmatpush1.msra.mxu0 0.0
    %3675 = vmatprep.subr.mxu0 0.0
    %3676 = vmatpush1.msra.mxu0 0.0
    %3677 = vmatprep.subr.mxu0 0.0
    %3678 = vmatpush1.msra.mxu0 0.0
    %3679 = vmatprep.subr.mxu0 0.0
    %3680 = vmatpush1.msra.mxu0 0.0
    %3681 = vmatprep.subr.mxu0 0.0
    %3682 = vmatpush1.msra.mxu0 0.0
    %3683 = vmatprep.subr.mxu0 0.0
    %3684 = vmatpush1.msra.mxu0 0.0
    %3685 = vmatprep.subr.mxu0 0.0
    %3686 = vmatpush1.msra.mxu0 0.0
    %3687 = vmatprep.subr.mxu0 0.0
    %3688 = vmatpush1.msra.mxu0 0.0
    %3689 = vmatprep.subr.mxu0 0.0
    %3690 = vmatpush1.msra.mxu0 0.0
    %3691 = vmatprep.subr.mxu0 0.0
    %3692 = vmatpush1.msra.mxu0 0.0
    %3693 = vmatprep.subr.mxu0 0.0
    %3694 = vmatpush1.msra.mxu0 0.0
    %3695 = vmatprep.mubr.f32.mxu0 0.0
    %3696 = vmatmul.mubr.f32.gmra.mrb[0].mxu0 %v3623
    %v3697 = vpop.f32.mrb[0].mxu0
    %v3698 = vadd.f32 %v3620, %v3697
    %v3699 = vpop.f32.mrb[0].mxu0
    %3700 = vmatprep.mubr.f32.mxu0 0.0
    %3701 = vmatmul.mubr.f32.gmra.mrb[0].mxu0 %v3626
    %v3702 = vpop.f32.mrb[0].mxu0
    %v3703 = vadd.f32 %v3620, %v3702
    %v3704 = vpop.f32.mrb[0].mxu0
    %3705 = vmatprep.mubr.f32.mxu0 0.0
    %3706 = vmatmul.mubr.f32.gmra.mrb[0].mxu0 %v3629
    %v3707 = vpop.f32.mrb[0].mxu0
    %v3708 = vadd.f32 %v3620, %v3707
    %v3709 = vpop.f32.mrb[0].mxu0
    %3710 = vdwg.mxu0
    %v3711 = vadd.f32 %v3698, %v3703
    %v3712 = vadd.f32 %v3711, %v3708
    %v3713 = vrcp.pop 3.0
    %v3714 = vmul.f32 %v3712, %v3713
    %v3715 = vxor.u32 %v3714, 2147483648
    %v3716 = vmul.f32 %v3715, 1.442695
    %v3717 = vpow.pop %v3716
    %v3718 = vadd.f32 %v3717, 1.0
    %v3719 = vrcp.pop %v3718
    %v3720 = vmul.f32 1.0, %v3719
    %vm3721 = vcmp.eq.s32.totalorder %v358, 0
    %3723 = vset.pattern.permute.xlu0 0
    %3724 = vperm.xlu0 %3723, %v3720
    %v3725 = vpop.permute.xlu0 %3724
    %v3727 = vstv %s3507
    %v3728 = vsel %vm3721, %v3725, %v3727
    %vm3729 = vcmask 15360
    %3730 = vst.msk [vmem:[%s20] sm:$0xff] %vm3729, %v3728
    // Predicated region
    $region110: #{usr_forward.1} parent=1 // pred_check
      _
    $region111: #{usr_forward.1} parent=1 // pred_check_branch
      %3732 = sbr.rel (0) target = $region113
    $region112: #{usr_forward.1} parent=1 // pred_region
      _
    $region113: #{usr_forward.1} parent=1 // pred_fallthru
      _
    // Predicated region
    $region114: #{usr_forward.1} parent=1 // pred_check
      _
    $region115: #{usr_forward.1} parent=1 // pred_check_branch
      %3734 = sbr.rel (0) target = $region117
    $region116: #{usr_forward.1} parent=1 // pred_region
      _
    $region117: #{usr_forward.1} parent=1 // pred_fallthru
      _
    %3735 = vsyncpa [#allocation4], 1
    %3736 = vsyncpa [#allocation6], 1
    %3737 = vsyncpa [#allocation9], 1
    %3738 = vsyncpa [#allocation12], 1

</llo_original>
